<compile_context>
chip_gen: v5e
topology: v5e:2x2
jax: 0.10.0
libtpu: 0.0.40
codegen_flags: <defaults>
</compile_context>

<pallas_src>
import functools
import math

import jax
import jax.numpy as jnp
from jax.experimental import pallas as pl
from jax.experimental.pallas import tpu as pltpu


# Tile preferences.  tm=512 with bf16 operands gives ~512 flops/weight-byte,
# enough to be MXU-bound on v7x and close on v5e/v6e.  VMEM per linear step is
# only a few MiB, well under every generation's scoped default.
_TM, _TN, _TK = 512, 256, 512
_ATTN_TQ, _ATTN_TK = 256, 256


def _pick_tile(dim, pref, align):
    """Largest `align`-aligned tile <= pref that divides dim, else the full dim."""
    if dim <= pref:
        return dim
    t = (pref // align) * align
    while t >= align:
        if dim % t == 0:
            return t
        t -= align
    # TODO(synk): pad non-divisible dims to a 128-multiple instead of falling
    # back to a full-dim (possibly lane-sparse / VMEM-heavy) tile.
    return dim


def _apply_act(y, activation):
    if activation == "relu":
        return jnp.maximum(y, 0.0)
    if activation == "gelu_new":  # GPT2 "gelu_new" (tanh approximation)
        c = math.sqrt(2.0 / math.pi)
        return 0.5 * y * (1.0 + jnp.tanh(c * (y + 0.044715 * y * y * y)))
    return y


# ----------------------- tiled linear (K-reduction) -------------------------
# Operands arrive already in bf16 (no in-kernel casts); f32 VMEM accumulator;
# bias / activation / residual applied only on the last K step.

def _linear_kernel(x_ref, w_ref, b_ref, o_ref, acc_ref, *, activation):
    k = pl.program_id(2)

    @pl.when(k == 0)
    def _():
        acc_ref[...] = jnp.zeros_like(acc_ref)

    acc_ref[...] += jnp.dot(x_ref[...], w_ref[...],
                            preferred_element_type=jnp.float32)

    @pl.when(k == pl.num_programs(2) - 1)
    def _():
        y = acc_ref[...] + b_ref[...]
        o_ref[...] = _apply_act(y, activation).astype(o_ref.dtype)


def _linear_res_kernel(x_ref, w_ref, b_ref, r_ref, o_ref, acc_ref, *, activation):
    k = pl.program_id(2)

    @pl.when(k == 0)
    def _():
        acc_ref[...] = jnp.zeros_like(acc_ref)

    acc_ref[...] += jnp.dot(x_ref[...], w_ref[...],
                            preferred_element_type=jnp.float32)

    @pl.when(k == pl.num_programs(2) - 1)
    def _():
        y = acc_ref[...] + b_ref[...]
        y = _apply_act(y, activation) + r_ref[...].astype(jnp.float32)
        o_ref[...] = y.astype(o_ref.dtype)


def linear(x, w, b, activation="none", residual=None, residual_rows=None):
    """y = act(x @ w + b) (+ residual), tiled over (M, N, K).

    If residual_rows=S is given, `residual` has shape (S, N) and is broadcast
    over the leading M // S row groups (used for the positional embedding),
    avoiding any (M, N) broadcast materialization in HBM.
    """
    M, K = x.shape
    N = w.shape[1]
    if residual_rows is not None:
        tm = _pick_tile(residual_rows, _TM, 8)      # tm | S  =>  tm | M
    else:
        tm = _pick_tile(M, _TM, 8)
    tn = _pick_tile(N, _TN, 128)
    tk = _pick_tile(K, _TK, 128)
    assert M % tm == 0 and N % tn == 0 and K % tk == 0
    grid = (M // tm, N // tn, K // tk)

    in_specs = [
        pl.BlockSpec((tm, tk), lambda i, j, k: (i, k)),
        # TODO(synk): add pipeline_mode=pl.Buffered(3) on the weight spec if an
        # xprof trace on v6e still shows exposed weight DMA after bf16+tm=512.
        pl.BlockSpec((tk, tn), lambda i, j, k: (k, j)),
        pl.BlockSpec((1, tn), lambda i, j, k: (0, j)),
    ]
    args = [x, w, b.reshape(1, N).astype(jnp.float32)]
    if residual is None:
        kernel = functools.partial(_linear_kernel, activation=activation)
    else:
        if residual_rows is None:
            res_map = lambda i, j, k: (i, j)
        else:
            n_res_blocks = residual_rows // tm
            res_map = lambda i, j, k: (i % n_res_blocks, j)
        in_specs.append(pl.BlockSpec((tm, tn), res_map))
        args.append(residual)
        kernel = functools.partial(_linear_res_kernel, activation=activation)

    return pl.pallas_call(
        kernel,
        out_shape=jax.ShapeDtypeStruct((M, N), x.dtype),
        grid_spec=pltpu.PrefetchScalarGridSpec(
            num_scalar_prefetch=0,
            grid=grid,
            in_specs=in_specs,
            out_specs=pl.BlockSpec((tm, tn), lambda i, j, k: (i, j)),
            scratch_shapes=[pltpu.VMEM((tm, tn), jnp.float32)],
        ),
        compiler_params=pltpu.CompilerParams(
            dimension_semantics=("parallel", "parallel", "arbitrary")),
    )(*args)


# ------------------- LayerNorm fused into a following linear ----------------
# The normalized (bf16) row block is computed once per row block (j == 0) and
# cached in VMEM scratch; all N-tiles reuse it.

def _ln_linear_kernel(x_ref, g_ref, bt_ref, w_ref, b_ref, o_ref, xn_ref,
                      *, eps, activation):
    @pl.when(pl.program_id(1) == 0)
    def _():
        x = x_ref[...].astype(jnp.float32)
        mu = jnp.mean(x, axis=-1, keepdims=True)
        var = jnp.mean(jnp.square(x - mu), axis=-1, keepdims=True)
        xn = (x - mu) * jax.lax.rsqrt(var + eps)
        xn = xn * g_ref[...] + bt_ref[...]
        xn_ref[...] = xn.astype(xn_ref.dtype)

    y = jnp.dot(xn_ref[...], w_ref[...], preferred_element_type=jnp.float32)
    y = y + b_ref[...]
    o_ref[...] = _apply_act(y, activation).astype(o_ref.dtype)


def ln_linear(x, g, bt, w, b, activation="none", eps=1e-5):
    """y = act(LayerNorm(x) @ w + b).  LN needs full rows, so K is un-tiled
    (fine for GPT2 hidden sizes); the grid tiles M (parallel) and N (arbitrary,
    so the cached LN result is reused sequentially across N tiles)."""
    M, K = x.shape
    N = w.shape[1]
    tm = _pick_tile(M, _TM, 8)
    tn = _pick_tile(N, _TN, 128)
    grid = (M // tm, N // tn)
    return pl.pallas_call(
        functools.partial(_ln_linear_kernel, eps=eps, activation=activation),
        out_shape=jax.ShapeDtypeStruct((M, N), x.dtype),
        grid_spec=pltpu.PrefetchScalarGridSpec(
            num_scalar_prefetch=0,
            grid=grid,
            in_specs=[
                pl.BlockSpec((tm, K), lambda i, j: (i, 0)),
                pl.BlockSpec((1, K), lambda i, j: (0, 0)),
                pl.BlockSpec((1, K), lambda i, j: (0, 0)),
                pl.BlockSpec((K, tn), lambda i, j: (0, j)),
                pl.BlockSpec((1, tn), lambda i, j: (0, j)),
            ],
            out_specs=pl.BlockSpec((tm, tn), lambda i, j: (i, j)),
            scratch_shapes=[pltpu.VMEM((tm, K), jnp.bfloat16)],
        ),
        compiler_params=pltpu.CompilerParams(
            dimension_semantics=("parallel", "arbitrary")),
    )(x, g.reshape(1, K).astype(jnp.float32),
      bt.reshape(1, K).astype(jnp.float32), w,
      b.reshape(1, N).astype(jnp.float32))


# ------------------- flash-style causal attention (KV-tiled) -----------------

def _flash_attn_kernel(q_ref, k_ref, v_ref, o_ref, m_sc, l_sc, acc_sc,
                       *, scale, tq, tkv):
    qi = pl.program_id(2)
    ki = pl.program_id(3)

    @pl.when(ki == 0)
    def _():
        m_sc[...] = jnp.full_like(m_sc[...], -jnp.inf)
        l_sc[...] = jnp.zeros_like(l_sc[...])
        acc_sc[...] = jnp.zeros_like(acc_sc[...])

    # Skip KV blocks that lie entirely above the causal diagonal (~2x fewer
    # score FLOPs for long sequences).
    @pl.when(ki * tkv <= qi * tq + (tq - 1))
    def _():
        q = q_ref[...][0, 0] * scale          # bf16 (tq, dh); scale folded into q
        k = k_ref[...][0, 0]                  # bf16 (tkv, dh)
        v = v_ref[...][0, 0]                  # bf16 (tkv, dh)
        # q @ k^T without transposing k: contract the last axis of both.
        s = jax.lax.dot_general(q, k, (((1,), (1,)), ((), ())),
                                preferred_element_type=jnp.float32)   # (tq, tkv)
        row = qi * tq + jax.lax.broadcasted_iota(jnp.int32, (tq, tkv), 0)
        col = ki * tkv + jax.lax.broadcasted_iota(jnp.int32, (tq, tkv), 1)
        s = jnp.where(col <= row, s, -1e30)

        m_prev = m_sc[...]
        m_new = jnp.maximum(m_prev, jnp.max(s, axis=-1, keepdims=True))
        alpha = jnp.exp(m_prev - m_new)
        p = jnp.exp(s - m_new)
        l_sc[...] = alpha * l_sc[...] + jnp.sum(p, axis=-1, keepdims=True)
        acc_sc[...] = alpha * acc_sc[...] + jnp.dot(
            p.astype(v.dtype), v, preferred_element_type=jnp.float32)
        m_sc[...] = m_new

    @pl.when(ki == pl.num_programs(3) - 1)
    def _():
        o = acc_sc[...] * pl.reciprocal(l_sc[...], approx=True)
        o_ref[...] = o[None, None].astype(o_ref.dtype)


def causal_attention(qkv, n_heads):
    """qkv: (B, S, 3*d) packed [q | k | v] as produced by GPT2's c_attn.
    Returns (B, S, d) in merged-head layout.  Flash-style online softmax with
    grid (B, heads, q-blocks, kv-blocks): VMEM is bounded by the tile sizes
    (fits v7x's 64 MiB), and three parallel axes keep both v7x TCs busy."""
    B, S, three_d = qkv.shape
    d = three_d // 3
    dh = d // n_heads
    qkv5 = qkv.reshape(B, S, 3, n_heads, dh)
    q = jnp.transpose(qkv5[:, :, 0], (0, 2, 1, 3))   # (B, H, S, dh)
    k = jnp.transpose(qkv5[:, :, 1], (0, 2, 1, 3))
    v = jnp.transpose(qkv5[:, :, 2], (0, 2, 1, 3))
    scale = 1.0 / math.sqrt(dh)

    tq = _pick_tile(S, _ATTN_TQ, 8)
    tkv = _pick_tile(S, _ATTN_TK, 8)
    grid = (B, n_heads, S // tq, S // tkv)

    out = pl.pallas_call(
        functools.partial(_flash_attn_kernel, scale=scale, tq=tq, tkv=tkv),
        out_shape=jax.ShapeDtypeStruct((B, n_heads, S, dh), qkv.dtype),
        grid_spec=pltpu.PrefetchScalarGridSpec(
            num_scalar_prefetch=0,
            grid=grid,
            in_specs=[
                pl.BlockSpec((1, 1, tq, dh), lambda b, h, qi, ki: (b, h, qi, 0)),
                pl.BlockSpec((1, 1, tkv, dh), lambda b, h, qi, ki: (b, h, ki, 0)),
                pl.BlockSpec((1, 1, tkv, dh), lambda b, h, qi, ki: (b, h, ki, 0)),
            ],
            out_specs=pl.BlockSpec((1, 1, tq, dh),
                                   lambda b, h, qi, ki: (b, h, qi, 0)),
            scratch_shapes=[
                pltpu.VMEM((tq, 1), jnp.float32),    # running max
                pltpu.VMEM((tq, 1), jnp.float32),    # running denom
                pltpu.VMEM((tq, dh), jnp.float32),   # running weighted sum
            ],
        ),
        compiler_params=pltpu.CompilerParams(
            dimension_semantics=("parallel", "parallel", "parallel", "arbitrary")),
    )(q, k, v)
    # merge heads: (B, H, S, dh) -> (B, S, d)
    return jnp.transpose(out, (0, 2, 1, 3)).reshape(B, S, d)


# ----------------------- parameters & model forward -------------------------

def init_params(key, in_features, out_features, window_size, inter_dim, n_layers):
    d = inter_dim
    enc_h = (in_features + inter_dim) // 2
    dec_h = (inter_dim + out_features) // 2
    keys = iter(jax.random.split(key, 64))

    def w(shape):   # matmul weights stored bf16 in HBM (halves DMA bytes)
        return (0.02 * jax.random.normal(next(keys), shape, jnp.float32)
                ).astype(jnp.bfloat16)

    def zeros(n):
        return jnp.zeros((n,), jnp.float32)

    def ones(n):
        return jnp.ones((n,), jnp.float32)

    params = dict(
        enc_w1=w((in_features, enc_h)), enc_b1=zeros(enc_h),
        enc_w2=w((enc_h, d)), enc_b2=zeros(d),
        wpe=w((window_size, d)),
        ln_f_g=ones(d), ln_f_b=zeros(d),
        dec_w1=w((d, dec_h)), dec_b1=zeros(dec_h),
        dec_w2=w((dec_h, out_features)), dec_b2=zeros(out_features),
        blocks=[],
    )
    for _ in range(n_layers):
        params["blocks"].append(dict(
            ln1_g=ones(d), ln1_b=zeros(d),
            attn_w=w((d, 3 * d)), attn_b=zeros(3 * d),
            proj_w=w((d, d)), proj_b=zeros(d),
            ln2_g=ones(d), ln2_b=zeros(d),
            fc_w=w((d, 4 * d)), fc_b=zeros(4 * d),
            fc_proj_w=w((4 * d, d)), fc_proj_b=zeros(d),
        ))
    return params


def gpt_mlp_forward(params, feats, n_heads):
    """Pallas implementation of GPT_MLP_MODEL.forward (eval mode).
    All inter-layer activations stay bf16; f32 only inside the kernels."""
    B, S, Fin = feats.shape
    d = params["wpe"].shape[1]

    # encoder: Linear -> ReLU -> Linear, wpe add fused as the residual of the
    # 2nd matmul (wpe passed as (S, d); no (B*S, d) broadcast materialized).
    x = feats.astype(jnp.bfloat16).reshape(B * S, Fin)
    x = linear(x, params["enc_w1"], params["enc_b1"], "relu")
    h = linear(x, params["enc_w2"], params["enc_b2"], "none",
               residual=params["wpe"], residual_rows=S)

    for blk in params["blocks"]:
        # ---- causal self-attention sub-block (LN fused into QKV matmul) ----
        qkv = ln_linear(h, blk["ln1_g"], blk["ln1_b"], blk["attn_w"], blk["attn_b"])
        attn = causal_attention(qkv.reshape(B, S, 3 * d), n_heads)
        h = linear(attn.reshape(B * S, d), blk["proj_w"], blk["proj_b"],
                   "none", residual=h)

        # ---- MLP sub-block (LN fused into fc, residual fused into proj) ----
        m = ln_linear(h, blk["ln2_g"], blk["ln2_b"], blk["fc_w"], blk["fc_b"],
                      "gelu_new")
        h = linear(m, blk["fc_proj_w"], blk["fc_proj_b"], "none", residual=h)

    # final LN fused into the first decoder linear; then second decoder linear.
    y = ln_linear(h, params["ln_f_g"], params["ln_f_b"],
                  params["dec_w1"], params["dec_b1"], "relu")
    y = linear(y, params["dec_w2"], params["dec_b2"])
    return y.reshape(B, S, -1).astype(jnp.float32)


# --------------------------- pure-JAX reference -----------------------------
# f32 math throughout, using the same (bf16-stored) weight values.

def _ref_lin(x, w, b, act="none"):
    y = x @ w.astype(jnp.float32) + b
    if act == "relu":
        y = jnp.maximum(y, 0.0)
    elif act == "gelu_new":
        y = 0.5 * y * (1.0 + jnp.tanh(
            jnp.sqrt(2.0 / jnp.pi) * (y + 0.044715 * y ** 3)))
    return y


def _ref_ln(x, g, b, eps=1e-5):
    mu = jnp.mean(x, -1, keepdims=True)
    var = jnp.mean(jnp.square(x - mu), -1, keepdims=True)
    return (x - mu) * jax.lax.rsqrt(var + eps) * g + b


def reference_forward(params, feats, n_heads):
    B, S, _ = feats.shape
    d = params["wpe"].shape[1]
    Dh = d // n_heads
    x = _ref_lin(feats, params["enc_w1"], params["enc_b1"], "relu")
    x = _ref_lin(x, params["enc_w2"], params["enc_b2"])
    h = x + params["wpe"].astype(jnp.float32)[None, :, :]
    mask = jnp.tril(jnp.ones((S, S), bool))
    for blk in params["blocks"]:
        a = _ref_ln(h, blk["ln1_g"], blk["ln1_b"])
        qkv = _ref_lin(a, blk["attn_w"], blk["attn_b"]).reshape(B, S, 3, n_heads, Dh)
        q, k, v = (qkv[:, :, i].transpose(0, 2, 1, 3) for i in range(3))
        s = jnp.einsum("bhqd,bhkd->bhqk", q, k) / math.sqrt(Dh)
        s = jnp.where(mask, s, jnp.finfo(jnp.float32).min)
        p = jax.nn.softmax(s, axis=-1)
        o = jnp.einsum("bhqk,bhkd->bhqd", p, v).transpose(0, 2, 1, 3).reshape(B, S, d)
        h = h + _ref_lin(o, blk["proj_w"], blk["proj_b"])
        m = _ref_ln(h, blk["ln2_g"], blk["ln2_b"])
        m = _ref_lin(m, blk["fc_w"], blk["fc_b"], "gelu_new")
        h = h + _ref_lin(m, blk["fc_proj_w"], blk["fc_proj_b"])
    h = _ref_ln(h, params["ln_f_g"], params["ln_f_b"])
    y = _ref_lin(h, params["dec_w1"], params["dec_b1"], "relu")
    return _ref_lin(y, params["dec_w2"], params["dec_b2"])


# --------------------------------- main --------------------------------------

if __name__ == "__main__":
    # small, forward-consistent shapes
    B = 2
    in_features = 16
    out_features = 8
    window_size = 8          # seq length (position_ids = arange(window_size))
    inter_dim = 32           # GPT2 n_embd
    n_heads = 4
    n_layers = 2

    key = jax.random.PRNGKey(0)
    k_param, k_feat = jax.random.split(key)
    params = init_params(k_param, in_features, out_features, window_size,
                         inter_dim, n_layers)
    feats = jax.random.normal(k_feat, (B, window_size, in_features), jnp.float32)

    fwd = jax.jit(gpt_mlp_forward, static_argnums=2)
    out = fwd(params, feats, n_heads)
    out = jax.block_until_ready(out)

    ref = reference_forward(params, feats, n_heads)
    assert out.shape == (B, window_size, out_features)
    assert bool(jnp.all(jnp.isfinite(out)))
    # bf16 activations / MXU operands (f32 accumulate) vs pure-f32 reference
    # -> loose tolerance (scales with depth for real GPT2 configs).
    assert jnp.allclose(out, ref, atol=3e-2, rtol=3e-2), float(jnp.max(jnp.abs(out - ref)))

    print("KERNEL_OK")
</pallas_src>

<mosaic_0001>
module attributes {stable_mosaic.version = 11 : i64} {
  func.func @_linear_kernel(%arg0: i32, %arg1: i32, %arg2: i32, %arg3: memref<16x16xbf16, #tpu.memory_space<vmem>>, %arg4: memref<16x24xbf16, #tpu.memory_space<vmem>>, %arg5: memref<1x24xf32, #tpu.memory_space<vmem>>, %arg6: memref<16x24xbf16, #tpu.memory_space<vmem>>, %arg7: memref<16x24xf32, #tpu.memory_space<vmem>>) attributes {dimension_semantics = [#tpu.dimension_semantics<parallel>, #tpu.dimension_semantics<parallel>, #tpu.dimension_semantics<arbitrary>], iteration_bounds = array<i64: 1, 1, 1>, scalar_prefetch = 0 : i64, scratch_operands = 1 : i64, tpu.core_type = #tpu.core_type<tc>, window_params = [{transform_indices = @transform_0, window_bounds = array<i64: 16, 16>}, {transform_indices = @transform_1, window_bounds = array<i64: 16, 24>}, {transform_indices = @transform_2, window_bounds = array<i64: 1, 24>}, {transform_indices = @transform_3, window_bounds = array<i64: 16, 24>}]} {
    %c0_i32 = arith.constant 0 : i32
    %0 = arith.cmpi eq, %arg2, %c0_i32 : i32
    %1 = arith.extui %0 : i1 to i32
    %c0_i32_0 = arith.constant 0 : i32
    %2 = arith.cmpi ne, %1, %c0_i32_0 : i32
    scf.if %2 {
      %cst_10 = arith.constant 0.000000e+00 : f32
      %12 = vector.broadcast %cst_10 : f32 to vector<16x24xf32>
      %c0_11 = arith.constant 0 : index
      %c0_12 = arith.constant 0 : index
      %13 = vector.load %arg7[%c0_11, %c0_12] : memref<16x24xf32, #tpu.memory_space<vmem>>, vector<16x24xf32>
      tpu.vector_store %arg7[%c0_11, %c0_12], %12 {strides = array<i32>} : memref<16x24xf32, #tpu.memory_space<vmem>>, vector<16x24xf32>,
    } else {
    }
    %c0 = arith.constant 0 : index
    %c0_1 = arith.constant 0 : index
    %3 = vector.load %arg7[%c0, %c0_1] : memref<16x24xf32, #tpu.memory_space<vmem>>, vector<16x24xf32>
    %c0_2 = arith.constant 0 : index
    %c0_3 = arith.constant 0 : index
    %4 = vector.load %arg3[%c0_2, %c0_3] : memref<16x16xbf16, #tpu.memory_space<vmem>>, vector<16x16xbf16>
    %c0_4 = arith.constant 0 : index
    %c0_5 = arith.constant 0 : index
    %5 = vector.load %arg4[%c0_4, %c0_5] : memref<16x24xbf16, #tpu.memory_space<vmem>>, vector<16x24xbf16>
    %cst = arith.constant dense<0.000000e+00> : vector<16x24xf32>
    %6 = tpu.matmul %4, %5, %cst {dimension_numbers = #tpu.dot_dimension_numbers<[1], [0], [0], [1], [0, 0, 1, 1], [], []>} : vector<16x16xbf16>, vector<16x24xbf16>, vector<16x24xf32> -> vector<16x24xf32>
    %7 = arith.addf %3, %6 : vector<16x24xf32>
    %c0_6 = arith.constant 0 : index
    %c0_7 = arith.constant 0 : index
    %8 = vector.load %arg7[%c0_6, %c0_7] : memref<16x24xf32, #tpu.memory_space<vmem>>, vector<16x24xf32>
    tpu.vector_store %arg7[%c0_6, %c0_7], %7 {strides = array<i32>} : memref<16x24xf32, #tpu.memory_space<vmem>>, vector<16x24xf32>,
    %c0_i32_8 = arith.constant 0 : i32
    %9 = arith.cmpi eq, %arg2, %c0_i32_8 : i32
    %10 = arith.extui %9 : i1 to i32
    %c0_i32_9 = arith.constant 0 : i32
    %11 = arith.cmpi ne, %10, %c0_i32_9 : i32
    scf.if %11 {
      %c0_10 = arith.constant 0 : index
      %c0_11 = arith.constant 0 : index
      %12 = vector.load %arg7[%c0_10, %c0_11] : memref<16x24xf32, #tpu.memory_space<vmem>>, vector<16x24xf32>
      %c0_12 = arith.constant 0 : index
      %c0_13 = arith.constant 0 : index
      %13 = vector.load %arg5[%c0_12, %c0_13] : memref<1x24xf32, #tpu.memory_space<vmem>>, vector<1x24xf32>
      %14 = vector.broadcast %13 : vector<1x24xf32> to vector<16x24xf32>
      %15 = arith.addf %12, %14 : vector<16x24xf32>
      %cst_14 = arith.constant 0.000000e+00 : f32
      %16 = vector.broadcast %cst_14 : f32 to vector<16x24xf32>
      %17 = arith.maximumf %15, %16 : vector<16x24xf32>
      %18 = arith.truncf %17 : vector<16x24xf32> to vector<16x24xbf16>
      %c0_15 = arith.constant 0 : index
      %c0_16 = arith.constant 0 : index
      %19 = vector.load %arg6[%c0_15, %c0_16] : memref<16x24xbf16, #tpu.memory_space<vmem>>, vector<16x24xbf16>
      tpu.vector_store %arg6[%c0_15, %c0_16], %18 {strides = array<i32>} : memref<16x24xbf16, #tpu.memory_space<vmem>>, vector<16x24xbf16>,
    } else {
    }
    return
  }
  func.func @transform_0(%arg0: i32, %arg1: i32, %arg2: i32) -> (i32, i32) {
    %c0_i32 = arith.constant 0 : i32
    return %arg0, %arg2 : i32, i32
  }
  func.func @transform_1(%arg0: i32, %arg1: i32, %arg2: i32) -> (i32, i32) {
    %c0_i32 = arith.constant 0 : i32
    return %arg2, %arg1 : i32, i32
  }
  func.func @transform_2(%arg0: i32, %arg1: i32, %arg2: i32) -> (i32, i32) {
    %c0_i32 = arith.constant 0 : i32
    %c0_i32_0 = arith.constant 0 : i32
    return %c0_i32, %arg1 : i32, i32
  }
  func.func @transform_3(%arg0: i32, %arg1: i32, %arg2: i32) -> (i32, i32) {
    %c0_i32 = arith.constant 0 : i32
    return %arg0, %arg1 : i32, i32
  }
}

module attributes {stable_mosaic.version = 11 : i64} {
  func.func @_ln_linear_kernel(%arg0: i32, %arg1: i32, %arg2: memref<16x32xbf16, #tpu.memory_space<vmem>>, %arg3: memref<1x32xf32, #tpu.memory_space<vmem>>, %arg4: memref<1x32xf32, #tpu.memory_space<vmem>>, %arg5: memref<32x96xbf16, #tpu.memory_space<vmem>>, %arg6: memref<1x96xf32, #tpu.memory_space<vmem>>, %arg7: memref<16x96xbf16, #tpu.memory_space<vmem>>, %arg8: memref<16x32xbf16, #tpu.memory_space<vmem>>) attributes {dimension_semantics = [#tpu.dimension_semantics<parallel>, #tpu.dimension_semantics<arbitrary>], iteration_bounds = array<i64: 1, 1>, scalar_prefetch = 0 : i64, scratch_operands = 1 : i64, tpu.core_type = #tpu.core_type<tc>, window_params = [{transform_indices = @transform_0, window_bounds = array<i64: 16, 32>}, {pipeline_mode = #tpu.pipeline_mode<synchronous>, transform_indices = @transform_1, window_bounds = array<i64: 1, 32>}, {pipeline_mode = #tpu.pipeline_mode<synchronous>, transform_indices = @transform_2, window_bounds = array<i64: 1, 32>}, {transform_indices = @transform_3, window_bounds = array<i64: 32, 96>}, {transform_indices = @transform_4, window_bounds = array<i64: 1, 96>}, {transform_indices = @transform_5, window_bounds = array<i64: 16, 96>}]} {
    %c0_i32 = arith.constant 0 : i32
    %0 = arith.cmpi eq, %arg1, %c0_i32 : i32
    %1 = arith.extui %0 : i1 to i32
    %c0_i32_0 = arith.constant 0 : i32
    %2 = arith.cmpi ne, %1, %c0_i32_0 : i32
    scf.if %2 {
      %c0_8 = arith.constant 0 : index
      %c0_9 = arith.constant 0 : index
      %11 = vector.load %arg2[%c0_8, %c0_9] : memref<16x32xbf16, #tpu.memory_space<vmem>>, vector<16x32xbf16>
      %12 = arith.extf %11 : vector<16x32xbf16> to vector<16x32xf32>
      %cst_10 = arith.constant dense<0.000000e+00> : vector<16xf32>
      %13 = vector.multi_reduction <add>, %12, %cst_10 [1] : vector<16x32xf32> to vector<16xf32>
      %14 = vector.shape_cast %13 : vector<16xf32> to vector<16x1xf32>
      %cst_11 = arith.constant 3.200000e+01 : f32
      %15 = vector.broadcast %cst_11 : f32 to vector<16x1xf32>
      %16 = arith.divf %14, %15 : vector<16x1xf32>
      %17 = vector.broadcast %16 : vector<16x1xf32> to vector<16x32xf32>
      %18 = arith.subf %12, %17 : vector<16x32xf32>
      %19 = arith.mulf %18, %18 : vector<16x32xf32>
      %cst_12 = arith.constant dense<0.000000e+00> : vector<16xf32>
      %20 = vector.multi_reduction <add>, %19, %cst_12 [1] : vector<16x32xf32> to vector<16xf32>
      %21 = vector.shape_cast %20 : vector<16xf32> to vector<16x1xf32>
      %cst_13 = arith.constant 3.200000e+01 : f32
      %22 = vector.broadcast %cst_13 : f32 to vector<16x1xf32>
      %23 = arith.divf %21, %22 : vector<16x1xf32>
      %24 = vector.broadcast %16 : vector<16x1xf32> to vector<16x32xf32>
      %25 = arith.subf %12, %24 : vector<16x32xf32>
      %cst_14 = arith.constant 9.99999974E-6 : f32
      %26 = vector.broadcast %cst_14 : f32 to vector<16x1xf32>
      %27 = arith.addf %23, %26 : vector<16x1xf32>
      %28 = math.rsqrt %27 : vector<16x1xf32>
      %29 = vector.broadcast %28 : vector<16x1xf32> to vector<16x32xf32>
      %30 = arith.mulf %25, %29 : vector<16x32xf32>
      %c0_15 = arith.constant 0 : index
      %c0_16 = arith.constant 0 : index
      %31 = vector.load %arg3[%c0_15, %c0_16] : memref<1x32xf32, #tpu.memory_space<vmem>>, vector<1x32xf32>
      %32 = vector.broadcast %31 : vector<1x32xf32> to vector<16x32xf32>
      %33 = arith.mulf %30, %32 : vector<16x32xf32>
      %c0_17 = arith.constant 0 : index
      %c0_18 = arith.constant 0 : index
      %34 = vector.load %arg4[%c0_17, %c0_18] : memref<1x32xf32, #tpu.memory_space<vmem>>, vector<1x32xf32>
      %35 = vector.broadcast %34 : vector<1x32xf32> to vector<16x32xf32>
      %36 = arith.addf %33, %35 : vector<16x32xf32>
      %37 = arith.truncf %36 : vector<16x32xf32> to vector<16x32xbf16>
      %c0_19 = arith.constant 0 : index
      %c0_20 = arith.constant 0 : index
      %38 = vector.load %arg8[%c0_19, %c0_20] : memref<16x32xbf16, #tpu.memory_space<vmem>>, vector<16x32xbf16>
      tpu.vector_store %arg8[%c0_19, %c0_20], %37 {strides = array<i32>} : memref<16x32xbf16, #tpu.memory_space<vmem>>, vector<16x32xbf16>,
    } else {
    }
    %c0 = arith.constant 0 : index
    %c0_1 = arith.constant 0 : index
    %3 = vector.load %arg8[%c0, %c0_1] : memref<16x32xbf16, #tpu.memory_space<vmem>>, vector<16x32xbf16>
    %c0_2 = arith.constant 0 : index
    %c0_3 = arith.constant 0 : index
    %4 = vector.load %arg5[%c0_2, %c0_3] : memref<32x96xbf16, #tpu.memory_space<vmem>>, vector<32x96xbf16>
    %cst = arith.constant dense<0.000000e+00> : vector<16x96xf32>
    %5 = tpu.matmul %3, %4, %cst {dimension_numbers = #tpu.dot_dimension_numbers<[1], [0], [0], [1], [0, 0, 1, 1], [], []>} : vector<16x32xbf16>, vector<32x96xbf16>, vector<16x96xf32> -> vector<16x96xf32>
    %c0_4 = arith.constant 0 : index
    %c0_5 = arith.constant 0 : index
    %6 = vector.load %arg6[%c0_4, %c0_5] : memref<1x96xf32, #tpu.memory_space<vmem>>, vector<1x96xf32>
    %7 = vector.broadcast %6 : vector<1x96xf32> to vector<16x96xf32>
    %8 = arith.addf %5, %7 : vector<16x96xf32>
    %9 = arith.truncf %8 : vector<16x96xf32> to vector<16x96xbf16>
    %c0_6 = arith.constant 0 : index
    %c0_7 = arith.constant 0 : index
    %10 = vector.load %arg7[%c0_6, %c0_7] : memref<16x96xbf16, #tpu.memory_space<vmem>>, vector<16x96xbf16>
    tpu.vector_store %arg7[%c0_6, %c0_7], %9 {strides = array<i32>} : memref<16x96xbf16, #tpu.memory_space<vmem>>, vector<16x96xbf16>,
    return
  }
  func.func @transform_0(%arg0: i32, %arg1: i32) -> (i32, i32) {
    %c0_i32 = arith.constant 0 : i32
    %c0_i32_0 = arith.constant 0 : i32
    return %arg0, %c0_i32 : i32, i32
  }
  func.func @transform_1(%arg0: i32, %arg1: i32) -> (i32, i32) {
    %c0_i32 = arith.constant 0 : i32
    %c0_i32_0 = arith.constant 0 : i32
    %c0_i32_1 = arith.constant 0 : i32
    return %c0_i32, %c0_i32_0 : i32, i32
  }
  func.func @transform_2(%arg0: i32, %arg1: i32) -> (i32, i32) {
    %c0_i32 = arith.constant 0 : i32
    %c0_i32_0 = arith.constant 0 : i32
    %c0_i32_1 = arith.constant 0 : i32
    return %c0_i32, %c0_i32_0 : i32, i32
  }
  func.func @transform_3(%arg0: i32, %arg1: i32) -> (i32, i32) {
    %c0_i32 = arith.constant 0 : i32
    %c0_i32_0 = arith.constant 0 : i32
    return %c0_i32, %arg1 : i32, i32
  }
  func.func @transform_4(%arg0: i32, %arg1: i32) -> (i32, i32) {
    %c0_i32 = arith.constant 0 : i32
    %c0_i32_0 = arith.constant 0 : i32
    return %c0_i32, %arg1 : i32, i32
  }
  func.func @transform_5(%arg0: i32, %arg1: i32) -> (i32, i32) {
    %c0_i32 = arith.constant 0 : i32
    return %arg0, %arg1 : i32, i32
  }
}

module attributes {stable_mosaic.version = 11 : i64} {
  func.func @_linear_res_kernel(%arg0: i32, %arg1: i32, %arg2: i32, %arg3: memref<8x24xbf16, #tpu.memory_space<vmem>>, %arg4: memref<24x32xbf16, #tpu.memory_space<vmem>>, %arg5: memref<1x32xf32, #tpu.memory_space<vmem>>, %arg6: memref<8x32xbf16, #tpu.memory_space<vmem>>, %arg7: memref<8x32xbf16, #tpu.memory_space<vmem>>, %arg8: memref<8x32xf32, #tpu.memory_space<vmem>>) attributes {dimension_semantics = [#tpu.dimension_semantics<parallel>, #tpu.dimension_semantics<parallel>, #tpu.dimension_semantics<arbitrary>], iteration_bounds = array<i64: 2, 1, 1>, scalar_prefetch = 0 : i64, scratch_operands = 1 : i64, tpu.core_type = #tpu.core_type<tc>, window_params = [{transform_indices = @transform_0, window_bounds = array<i64: 8, 24>}, {transform_indices = @transform_1, window_bounds = array<i64: 24, 32>}, {transform_indices = @transform_2, window_bounds = array<i64: 1, 32>}, {transform_indices = @transform_3, window_bounds = array<i64: 8, 32>}, {transform_indices = @transform_4, window_bounds = array<i64: 8, 32>}]} {
    %c0_i32 = arith.constant 0 : i32
    %0 = arith.cmpi eq, %arg2, %c0_i32 : i32
    %1 = arith.extui %0 : i1 to i32
    %c0_i32_0 = arith.constant 0 : i32
    %2 = arith.cmpi ne, %1, %c0_i32_0 : i32
    scf.if %2 {
      %cst_10 = arith.constant 0.000000e+00 : f32
      %12 = vector.broadcast %cst_10 : f32 to vector<8x32xf32>
      %c0_11 = arith.constant 0 : index
      %c0_12 = arith.constant 0 : index
      %13 = vector.load %arg8[%c0_11, %c0_12] : memref<8x32xf32, #tpu.memory_space<vmem>>, vector<8x32xf32>
      tpu.vector_store %arg8[%c0_11, %c0_12], %12 {strides = array<i32>} : memref<8x32xf32, #tpu.memory_space<vmem>>, vector<8x32xf32>,
    } else {
    }
    %c0 = arith.constant 0 : index
    %c0_1 = arith.constant 0 : index
    %3 = vector.load %arg8[%c0, %c0_1] : memref<8x32xf32, #tpu.memory_space<vmem>>, vector<8x32xf32>
    %c0_2 = arith.constant 0 : index
    %c0_3 = arith.constant 0 : index
    %4 = vector.load %arg3[%c0_2, %c0_3] : memref<8x24xbf16, #tpu.memory_space<vmem>>, vector<8x24xbf16>
    %c0_4 = arith.constant 0 : index
    %c0_5 = arith.constant 0 : index
    %5 = vector.load %arg4[%c0_4, %c0_5] : memref<24x32xbf16, #tpu.memory_space<vmem>>, vector<24x32xbf16>
    %cst = arith.constant dense<0.000000e+00> : vector<8x32xf32>
    %6 = tpu.matmul %4, %5, %cst {dimension_numbers = #tpu.dot_dimension_numbers<[1], [0], [0], [1], [0, 0, 1, 1], [], []>} : vector<8x24xbf16>, vector<24x32xbf16>, vector<8x32xf32> -> vector<8x32xf32>
    %7 = arith.addf %3, %6 : vector<8x32xf32>
    %c0_6 = arith.constant 0 : index
    %c0_7 = arith.constant 0 : index
    %8 = vector.load %arg8[%c0_6, %c0_7] : memref<8x32xf32, #tpu.memory_space<vmem>>, vector<8x32xf32>
    tpu.vector_store %arg8[%c0_6, %c0_7], %7 {strides = array<i32>} : memref<8x32xf32, #tpu.memory_space<vmem>>, vector<8x32xf32>,
    %c0_i32_8 = arith.constant 0 : i32
    %9 = arith.cmpi eq, %arg2, %c0_i32_8 : i32
    %10 = arith.extui %9 : i1 to i32
    %c0_i32_9 = arith.constant 0 : i32
    %11 = arith.cmpi ne, %10, %c0_i32_9 : i32
    scf.if %11 {
      %c0_10 = arith.constant 0 : index
      %c0_11 = arith.constant 0 : index
      %12 = vector.load %arg8[%c0_10, %c0_11] : memref<8x32xf32, #tpu.memory_space<vmem>>, vector<8x32xf32>
      %c0_12 = arith.constant 0 : index
      %c0_13 = arith.constant 0 : index
      %13 = vector.load %arg5[%c0_12, %c0_13] : memref<1x32xf32, #tpu.memory_space<vmem>>, vector<1x32xf32>
      %14 = vector.broadcast %13 : vector<1x32xf32> to vector<8x32xf32>
      %15 = arith.addf %12, %14 : vector<8x32xf32>
      %c0_14 = arith.constant 0 : index
      %c0_15 = arith.constant 0 : index
      %16 = vector.load %arg6[%c0_14, %c0_15] : memref<8x32xbf16, #tpu.memory_space<vmem>>, vector<8x32xbf16>
      %17 = arith.extf %16 : vector<8x32xbf16> to vector<8x32xf32>
      %18 = arith.addf %15, %17 : vector<8x32xf32>
      %19 = arith.truncf %18 : vector<8x32xf32> to vector<8x32xbf16>
      %c0_16 = arith.constant 0 : index
      %c0_17 = arith.constant 0 : index
      %20 = vector.load %arg7[%c0_16, %c0_17] : memref<8x32xbf16, #tpu.memory_space<vmem>>, vector<8x32xbf16>
      tpu.vector_store %arg7[%c0_16, %c0_17], %19 {strides = array<i32>} : memref<8x32xbf16, #tpu.memory_space<vmem>>, vector<8x32xbf16>,
    } else {
    }
    return
  }
  func.func @transform_0(%arg0: i32, %arg1: i32, %arg2: i32) -> (i32, i32) {
    %c0_i32 = arith.constant 0 : i32
    return %arg0, %arg2 : i32, i32
  }
  func.func @transform_1(%arg0: i32, %arg1: i32, %arg2: i32) -> (i32, i32) {
    %c0_i32 = arith.constant 0 : i32
    return %arg2, %arg1 : i32, i32
  }
  func.func @transform_2(%arg0: i32, %arg1: i32, %arg2: i32) -> (i32, i32) {
    %c0_i32 = arith.constant 0 : i32
    %c0_i32_0 = arith.constant 0 : i32
    return %c0_i32, %arg1 : i32, i32
  }
  func.func @transform_3(%arg0: i32, %arg1: i32, %arg2: i32) -> (i32, i32) {
    %c1_i32 = arith.constant 1 : i32
    %c0_i32 = arith.constant 0 : i32
    %0 = arith.cmpi eq, %c1_i32, %c0_i32 : i32
    %c1_i32_0 = arith.constant 1 : i32
    %1 = arith.select %0, %c1_i32_0, %c1_i32 : i32
    %2 = arith.remsi %arg0, %1 : i32
    %c0_i32_1 = arith.constant 0 : i32
    %3 = arith.cmpi ne, %2, %c0_i32_1 : i32
    %c0_i32_2 = arith.constant 0 : i32
    %4 = arith.cmpi slt, %2, %c0_i32_2 : i32
    %c0_i32_3 = arith.constant 0 : i32
    %5 = arith.cmpi slt, %1, %c0_i32_3 : i32
    %6 = arith.xori %4, %5 : i1
    %7 = arith.andi %6, %3 : i1
    %8 = arith.addi %2, %1 : i32
    %9 = arith.select %7, %8, %2 : i32
    %c0_i32_4 = arith.constant 0 : i32
    return %9, %arg1 : i32, i32
  }
  func.func @transform_4(%arg0: i32, %arg1: i32, %arg2: i32) -> (i32, i32) {
    %c0_i32 = arith.constant 0 : i32
    return %arg0, %arg1 : i32, i32
  }
}

module attributes {stable_mosaic.version = 11 : i64} {
  func.func @_flash_attn_kernel(%arg0: i32, %arg1: i32, %arg2: i32, %arg3: i32, %arg4: memref<1x1x8x8xbf16, #tpu.memory_space<vmem>>, %arg5: memref<1x1x8x8xbf16, #tpu.memory_space<vmem>>, %arg6: memref<1x1x8x8xbf16, #tpu.memory_space<vmem>>, %arg7: memref<1x1x8x8xbf16, #tpu.memory_space<vmem>>, %arg8: memref<8x1xf32, #tpu.memory_space<vmem>>, %arg9: memref<8x1xf32, #tpu.memory_space<vmem>>, %arg10: memref<8x8xf32, #tpu.memory_space<vmem>>) attributes {dimension_semantics = [#tpu.dimension_semantics<parallel>, #tpu.dimension_semantics<parallel>, #tpu.dimension_semantics<parallel>, #tpu.dimension_semantics<arbitrary>], iteration_bounds = array<i64: 2, 4, 1, 1>, scalar_prefetch = 0 : i64, scratch_operands = 3 : i64, tpu.core_type = #tpu.core_type<tc>, window_params = [{transform_indices = @transform_0, window_bounds = array<i64: 1, 1, 8, 8>}, {transform_indices = @transform_1, window_bounds = array<i64: 1, 1, 8, 8>}, {transform_indices = @transform_2, window_bounds = array<i64: 1, 1, 8, 8>}, {transform_indices = @transform_3, window_bounds = array<i64: 1, 1, 8, 8>}]} {
    %c0_i32 = arith.constant 0 : i32
    %0 = arith.cmpi eq, %arg3, %c0_i32 : i32
    %1 = arith.extui %0 : i1 to i32
    %c0_i32_0 = arith.constant 0 : i32
    %2 = arith.cmpi ne, %1, %c0_i32_0 : i32
    scf.if %2 {
      %cst = arith.constant 0xFF800000 : f32
      %12 = vector.broadcast %cst : f32 to vector<8x1xf32>
      %c0 = arith.constant 0 : index
      %c0_5 = arith.constant 0 : index
      %13 = vector.load %arg8[%c0, %c0_5] : memref<8x1xf32, #tpu.memory_space<vmem>>, vector<8x1xf32>
      tpu.vector_store %arg8[%c0, %c0_5], %12 {strides = array<i32>} : memref<8x1xf32, #tpu.memory_space<vmem>>, vector<8x1xf32>,
      %cst_6 = arith.constant 0.000000e+00 : f32
      %14 = vector.broadcast %cst_6 : f32 to vector<8x1xf32>
      %c0_7 = arith.constant 0 : index
      %c0_8 = arith.constant 0 : index
      %15 = vector.load %arg9[%c0_7, %c0_8] : memref<8x1xf32, #tpu.memory_space<vmem>>, vector<8x1xf32>
      tpu.vector_store %arg9[%c0_7, %c0_8], %14 {strides = array<i32>} : memref<8x1xf32, #tpu.memory_space<vmem>>, vector<8x1xf32>,
      %cst_9 = arith.constant 0.000000e+00 : f32
      %16 = vector.broadcast %cst_9 : f32 to vector<8x8xf32>
      %c0_10 = arith.constant 0 : index
      %c0_11 = arith.constant 0 : index
      %17 = vector.load %arg10[%c0_10, %c0_11] : memref<8x8xf32, #tpu.memory_space<vmem>>, vector<8x8xf32>
      tpu.vector_store %arg10[%c0_10, %c0_11], %16 {strides = array<i32>} : memref<8x8xf32, #tpu.memory_space<vmem>>, vector<8x8xf32>,
    } else {
    }
    %c8_i32 = arith.constant 8 : i32
    %3 = arith.muli %arg3, %c8_i32 : i32
    %c8_i32_1 = arith.constant 8 : i32
    %4 = arith.muli %arg2, %c8_i32_1 : i32
    %c7_i32 = arith.constant 7 : i32
    %5 = arith.addi %4, %c7_i32 : i32
    %6 = arith.cmpi sle, %3, %5 : i32
    %7 = arith.extui %6 : i1 to i32
    %c0_i32_2 = arith.constant 0 : i32
    %8 = arith.cmpi ne, %7, %c0_i32_2 : i32
    scf.if %8 {
      %c0 = arith.constant 0 : index
      %c0_5 = arith.constant 0 : index
      %c0_6 = arith.constant 0 : index
      %c0_7 = arith.constant 0 : index
      %12 = vector.load %arg4[%c0, %c0_5, %c0_6, %c0_7] : memref<1x1x8x8xbf16, #tpu.memory_space<vmem>>, vector<1x1x8x8xbf16>
      %13 = vector.shape_cast %12 : vector<1x1x8x8xbf16> to vector<8x8xbf16>
      %cst = arith.constant 3.535160e-01 : bf16
      %14 = vector.broadcast %cst : bf16 to vector<8x8xbf16>
      %15 = arith.mulf %13, %14 : vector<8x8xbf16>
      %c0_8 = arith.constant 0 : index
      %c0_9 = arith.constant 0 : index
      %c0_10 = arith.constant 0 : index
      %c0_11 = arith.constant 0 : index
      %16 = vector.load %arg5[%c0_8, %c0_9, %c0_10, %c0_11] : memref<1x1x8x8xbf16, #tpu.memory_space<vmem>>, vector<1x1x8x8xbf16>
      %17 = vector.shape_cast %16 : vector<1x1x8x8xbf16> to vector<8x8xbf16>
      %c0_12 = arith.constant 0 : index
      %c0_13 = arith.constant 0 : index
      %c0_14 = arith.constant 0 : index
      %c0_15 = arith.constant 0 : index
      %18 = vector.load %arg6[%c0_12, %c0_13, %c0_14, %c0_15] : memref<1x1x8x8xbf16, #tpu.memory_space<vmem>>, vector<1x1x8x8xbf16>
      %19 = vector.shape_cast %18 : vector<1x1x8x8xbf16> to vector<8x8xbf16>
      %cst_16 = arith.constant dense<0.000000e+00> : vector<8x8xf32>
      %20 = tpu.matmul %15, %17, %cst_16 {dimension_numbers = #tpu.dot_dimension_numbers<[1], [1], [0], [0], [0, 0, 1, 0], [], []>} : vector<8x8xbf16>, vector<8x8xbf16>, vector<8x8xf32> -> vector<8x8xf32>
      %c8_i32_17 = arith.constant 8 : i32
      %21 = arith.muli %arg2, %c8_i32_17 : i32
      %22 = tpu.iota {dimensions = array<i32: 0>} : vector<8x8xi32>
      %23 = vector.broadcast %21 : i32 to vector<8x8xi32>
      %24 = arith.addi %23, %22 : vector<8x8xi32>
      %c8_i32_18 = arith.constant 8 : i32
      %25 = arith.muli %arg3, %c8_i32_18 : i32
      %26 = tpu.iota {dimensions = array<i32: 1>} : vector<8x8xi32>
      %27 = vector.broadcast %25 : i32 to vector<8x8xi32>
      %28 = arith.addi %27, %26 : vector<8x8xi32>
      %29 = arith.cmpi sle, %28, %24 : vector<8x8xi32>
      %cst_19 = arith.constant -1.000000e+30 : f32
      %30 = vector.broadcast %cst_19 : f32 to vector<8x8xf32>
      %31 = arith.select %29, %20, %30 : vector<8x8xi1>, vector<8x8xf32>
      %c0_20 = arith.constant 0 : index
      %c0_21 = arith.constant 0 : index
      %32 = vector.load %arg8[%c0_20, %c0_21] : memref<8x1xf32, #tpu.memory_space<vmem>>, vector<8x1xf32>
      %cst_22 = arith.constant dense<0xFF800000> : vector<8xf32>
      %33 = vector.multi_reduction <maximumf>, %31, %cst_22 [1] : vector<8x8xf32> to vector<8xf32>
      %34 = vector.shape_cast %33 : vector<8xf32> to vector<8x1xf32>
      %35 = arith.maximumf %32, %34 : vector<8x1xf32>
      %36 = arith.subf %32, %35 : vector<8x1xf32>
      %37 = math.exp %36 : vector<8x1xf32>
      %38 = vector.broadcast %35 : vector<8x1xf32> to vector<8x8xf32>
      %39 = arith.subf %31, %38 : vector<8x8xf32>
      %40 = math.exp %39 : vector<8x8xf32>
      %c0_23 = arith.constant 0 : index
      %c0_24 = arith.constant 0 : index
      %41 = vector.load %arg9[%c0_23, %c0_24] : memref<8x1xf32, #tpu.memory_space<vmem>>, vector<8x1xf32>
      %42 = arith.mulf %37, %41 : vector<8x1xf32>
      %cst_25 = arith.constant dense<0.000000e+00> : vector<8xf32>
      %43 = vector.multi_reduction <add>, %40, %cst_25 [1] : vector<8x8xf32> to vector<8xf32>
      %44 = vector.shape_cast %43 : vector<8xf32> to vector<8x1xf32>
      %45 = arith.addf %42, %44 : vector<8x1xf32>
      %c0_26 = arith.constant 0 : index
      %c0_27 = arith.constant 0 : index
      %46 = vector.load %arg9[%c0_26, %c0_27] : memref<8x1xf32, #tpu.memory_space<vmem>>, vector<8x1xf32>
      tpu.vector_store %arg9[%c0_26, %c0_27], %45 {strides = array<i32>} : memref<8x1xf32, #tpu.memory_space<vmem>>, vector<8x1xf32>,
      %c0_28 = arith.constant 0 : index
      %c0_29 = arith.constant 0 : index
      %47 = vector.load %arg10[%c0_28, %c0_29] : memref<8x8xf32, #tpu.memory_space<vmem>>, vector<8x8xf32>
      %48 = vector.broadcast %37 : vector<8x1xf32> to vector<8x8xf32>
      %49 = arith.mulf %48, %47 : vector<8x8xf32>
      %50 = arith.truncf %40 : vector<8x8xf32> to vector<8x8xbf16>
      %cst_30 = arith.constant dense<0.000000e+00> : vector<8x8xf32>
      %51 = tpu.matmul %50, %19, %cst_30 {dimension_numbers = #tpu.dot_dimension_numbers<[1], [0], [0], [1], [0, 0, 1, 1], [], []>} : vector<8x8xbf16>, vector<8x8xbf16>, vector<8x8xf32> -> vector<8x8xf32>
      %52 = arith.addf %49, %51 : vector<8x8xf32>
      %c0_31 = arith.constant 0 : index
      %c0_32 = arith.constant 0 : index
      %53 = vector.load %arg10[%c0_31, %c0_32] : memref<8x8xf32, #tpu.memory_space<vmem>>, vector<8x8xf32>
      tpu.vector_store %arg10[%c0_31, %c0_32], %52 {strides = array<i32>} : memref<8x8xf32, #tpu.memory_space<vmem>>, vector<8x8xf32>,
      %c0_33 = arith.constant 0 : index
      %c0_34 = arith.constant 0 : index
      %54 = vector.load %arg8[%c0_33, %c0_34] : memref<8x1xf32, #tpu.memory_space<vmem>>, vector<8x1xf32>
      tpu.vector_store %arg8[%c0_33, %c0_34], %35 {strides = array<i32>} : memref<8x1xf32, #tpu.memory_space<vmem>>, vector<8x1xf32>,
    } else {
    }
    %c0_i32_3 = arith.constant 0 : i32
    %9 = arith.cmpi eq, %arg3, %c0_i32_3 : i32
    %10 = arith.extui %9 : i1 to i32
    %c0_i32_4 = arith.constant 0 : i32
    %11 = arith.cmpi ne, %10, %c0_i32_4 : i32
    scf.if %11 {
      %c0 = arith.constant 0 : index
      %c0_5 = arith.constant 0 : index
      %12 = vector.load %arg10[%c0, %c0_5] : memref<8x8xf32, #tpu.memory_space<vmem>>, vector<8x8xf32>
      %c0_6 = arith.constant 0 : index
      %c0_7 = arith.constant 0 : index
      %13 = vector.load %arg9[%c0_6, %c0_7] : memref<8x1xf32, #tpu.memory_space<vmem>>, vector<8x1xf32>
      %14 = tpu.reciprocal %13 {approx = true} : vector<8x1xf32> -> vector<8x1xf32>
      %15 = vector.broadcast %14 : vector<8x1xf32> to vector<8x8xf32>
      %16 = arith.mulf %12, %15 : vector<8x8xf32>
      %17 = vector.shape_cast %16 : vector<8x8xf32> to vector<1x1x8x8xf32>
      %18 = arith.truncf %17 : vector<1x1x8x8xf32> to vector<1x1x8x8xbf16>
      %c0_8 = arith.constant 0 : index
      %c0_9 = arith.constant 0 : index
      %c0_10 = arith.constant 0 : index
      %c0_11 = arith.constant 0 : index
      %19 = vector.load %arg7[%c0_8, %c0_9, %c0_10, %c0_11] : memref<1x1x8x8xbf16, #tpu.memory_space<vmem>>, vector<1x1x8x8xbf16>
      tpu.vector_store %arg7[%c0_8, %c0_9, %c0_10, %c0_11], %18 {strides = array<i32>} : memref<1x1x8x8xbf16, #tpu.memory_space<vmem>>, vector<1x1x8x8xbf16>,
    } else {
    }
    return
  }
  func.func @transform_0(%arg0: i32, %arg1: i32, %arg2: i32, %arg3: i32) -> (i32, i32, i32, i32) {
    %c0_i32 = arith.constant 0 : i32
    %c0_i32_0 = arith.constant 0 : i32
    return %arg0, %arg1, %arg2, %c0_i32 : i32, i32, i32, i32
  }
  func.func @transform_1(%arg0: i32, %arg1: i32, %arg2: i32, %arg3: i32) -> (i32, i32, i32, i32) {
    %c0_i32 = arith.constant 0 : i32
    %c0_i32_0 = arith.constant 0 : i32
    return %arg0, %arg1, %arg3, %c0_i32 : i32, i32, i32, i32
  }
  func.func @transform_2(%arg0: i32, %arg1: i32, %arg2: i32, %arg3: i32) -> (i32, i32, i32, i32) {
    %c0_i32 = arith.constant 0 : i32
    %c0_i32_0 = arith.constant 0 : i32
    return %arg0, %arg1, %arg3, %c0_i32 : i32, i32, i32, i32
  }
  func.func @transform_3(%arg0: i32, %arg1: i32, %arg2: i32, %arg3: i32) -> (i32, i32, i32, i32) {
    %c0_i32 = arith.constant 0 : i32
    %c0_i32_0 = arith.constant 0 : i32
    return %arg0, %arg1, %arg2, %c0_i32 : i32, i32, i32, i32
  }
}

module attributes {stable_mosaic.version = 11 : i64} {
  func.func @_linear_res_kernel(%arg0: i32, %arg1: i32, %arg2: i32, %arg3: memref<16x32xbf16, #tpu.memory_space<vmem>>, %arg4: memref<32x32xbf16, #tpu.memory_space<vmem>>, %arg5: memref<1x32xf32, #tpu.memory_space<vmem>>, %arg6: memref<16x32xbf16, #tpu.memory_space<vmem>>, %arg7: memref<16x32xbf16, #tpu.memory_space<vmem>>, %arg8: memref<16x32xf32, #tpu.memory_space<vmem>>) attributes {dimension_semantics = [#tpu.dimension_semantics<parallel>, #tpu.dimension_semantics<parallel>, #tpu.dimension_semantics<arbitrary>], iteration_bounds = array<i64: 1, 1, 1>, scalar_prefetch = 0 : i64, scratch_operands = 1 : i64, tpu.core_type = #tpu.core_type<tc>, window_params = [{transform_indices = @transform_0, window_bounds = array<i64: 16, 32>}, {transform_indices = @transform_1, window_bounds = array<i64: 32, 32>}, {transform_indices = @transform_2, window_bounds = array<i64: 1, 32>}, {transform_indices = @transform_3, window_bounds = array<i64: 16, 32>}, {transform_indices = @transform_4, window_bounds = array<i64: 16, 32>}]} {
    %c0_i32 = arith.constant 0 : i32
    %0 = arith.cmpi eq, %arg2, %c0_i32 : i32
    %1 = arith.extui %0 : i1 to i32
    %c0_i32_0 = arith.constant 0 : i32
    %2 = arith.cmpi ne, %1, %c0_i32_0 : i32
    scf.if %2 {
      %cst_10 = arith.constant 0.000000e+00 : f32
      %12 = vector.broadcast %cst_10 : f32 to vector<16x32xf32>
      %c0_11 = arith.constant 0 : index
      %c0_12 = arith.constant 0 : index
      %13 = vector.load %arg8[%c0_11, %c0_12] : memref<16x32xf32, #tpu.memory_space<vmem>>, vector<16x32xf32>
      tpu.vector_store %arg8[%c0_11, %c0_12], %12 {strides = array<i32>} : memref<16x32xf32, #tpu.memory_space<vmem>>, vector<16x32xf32>,
    } else {
    }
    %c0 = arith.constant 0 : index
    %c0_1 = arith.constant 0 : index
    %3 = vector.load %arg8[%c0, %c0_1] : memref<16x32xf32, #tpu.memory_space<vmem>>, vector<16x32xf32>
    %c0_2 = arith.constant 0 : index
    %c0_3 = arith.constant 0 : index
    %4 = vector.load %arg3[%c0_2, %c0_3] : memref<16x32xbf16, #tpu.memory_space<vmem>>, vector<16x32xbf16>
    %c0_4 = arith.constant 0 : index
    %c0_5 = arith.constant 0 : index
    %5 = vector.load %arg4[%c0_4, %c0_5] : memref<32x32xbf16, #tpu.memory_space<vmem>>, vector<32x32xbf16>
    %cst = arith.constant dense<0.000000e+00> : vector<16x32xf32>
    %6 = tpu.matmul %4, %5, %cst {dimension_numbers = #tpu.dot_dimension_numbers<[1], [0], [0], [1], [0, 0, 1, 1], [], []>} : vector<16x32xbf16>, vector<32x32xbf16>, vector<16x32xf32> -> vector<16x32xf32>
    %7 = arith.addf %3, %6 : vector<16x32xf32>
    %c0_6 = arith.constant 0 : index
    %c0_7 = arith.constant 0 : index
    %8 = vector.load %arg8[%c0_6, %c0_7] : memref<16x32xf32, #tpu.memory_space<vmem>>, vector<16x32xf32>
    tpu.vector_store %arg8[%c0_6, %c0_7], %7 {strides = array<i32>} : memref<16x32xf32, #tpu.memory_space<vmem>>, vector<16x32xf32>,
    %c0_i32_8 = arith.constant 0 : i32
    %9 = arith.cmpi eq, %arg2, %c0_i32_8 : i32
    %10 = arith.extui %9 : i1 to i32
    %c0_i32_9 = arith.constant 0 : i32
    %11 = arith.cmpi ne, %10, %c0_i32_9 : i32
    scf.if %11 {
      %c0_10 = arith.constant 0 : index
      %c0_11 = arith.constant 0 : index
      %12 = vector.load %arg8[%c0_10, %c0_11] : memref<16x32xf32, #tpu.memory_space<vmem>>, vector<16x32xf32>
      %c0_12 = arith.constant 0 : index
      %c0_13 = arith.constant 0 : index
      %13 = vector.load %arg5[%c0_12, %c0_13] : memref<1x32xf32, #tpu.memory_space<vmem>>, vector<1x32xf32>
      %14 = vector.broadcast %13 : vector<1x32xf32> to vector<16x32xf32>
      %15 = arith.addf %12, %14 : vector<16x32xf32>
      %c0_14 = arith.constant 0 : index
      %c0_15 = arith.constant 0 : index
      %16 = vector.load %arg6[%c0_14, %c0_15] : memref<16x32xbf16, #tpu.memory_space<vmem>>, vector<16x32xbf16>
      %17 = arith.extf %16 : vector<16x32xbf16> to vector<16x32xf32>
      %18 = arith.addf %15, %17 : vector<16x32xf32>
      %19 = arith.truncf %18 : vector<16x32xf32> to vector<16x32xbf16>
      %c0_16 = arith.constant 0 : index
      %c0_17 = arith.constant 0 : index
      %20 = vector.load %arg7[%c0_16, %c0_17] : memref<16x32xbf16, #tpu.memory_space<vmem>>, vector<16x32xbf16>
      tpu.vector_store %arg7[%c0_16, %c0_17], %19 {strides = array<i32>} : memref<16x32xbf16, #tpu.memory_space<vmem>>, vector<16x32xbf16>,
    } else {
    }
    return
  }
  func.func @transform_0(%arg0: i32, %arg1: i32, %arg2: i32) -> (i32, i32) {
    %c0_i32 = arith.constant 0 : i32
    return %arg0, %arg2 : i32, i32
  }
  func.func @transform_1(%arg0: i32, %arg1: i32, %arg2: i32) -> (i32, i32) {
    %c0_i32 = arith.constant 0 : i32
    return %arg2, %arg1 : i32, i32
  }
  func.func @transform_2(%arg0: i32, %arg1: i32, %arg2: i32) -> (i32, i32) {
    %c0_i32 = arith.constant 0 : i32
    %c0_i32_0 = arith.constant 0 : i32
    return %c0_i32, %arg1 : i32, i32
  }
  func.func @transform_3(%arg0: i32, %arg1: i32, %arg2: i32) -> (i32, i32) {
    %c0_i32 = arith.constant 0 : i32
    return %arg0, %arg1 : i32, i32
  }
  func.func @transform_4(%arg0: i32, %arg1: i32, %arg2: i32) -> (i32, i32) {
    %c0_i32 = arith.constant 0 : i32
    return %arg0, %arg1 : i32, i32
  }
}

module attributes {stable_mosaic.version = 11 : i64} {
  func.func @_ln_linear_kernel(%arg0: i32, %arg1: i32, %arg2: memref<16x32xbf16, #tpu.memory_space<vmem>>, %arg3: memref<1x32xf32, #tpu.memory_space<vmem>>, %arg4: memref<1x32xf32, #tpu.memory_space<vmem>>, %arg5: memref<32x128xbf16, #tpu.memory_space<vmem>>, %arg6: memref<1x128xf32, #tpu.memory_space<vmem>>, %arg7: memref<16x128xbf16, #tpu.memory_space<vmem>>, %arg8: memref<16x32xbf16, #tpu.memory_space<vmem>>) attributes {dimension_semantics = [#tpu.dimension_semantics<parallel>, #tpu.dimension_semantics<arbitrary>], iteration_bounds = array<i64: 1, 1>, scalar_prefetch = 0 : i64, scratch_operands = 1 : i64, tpu.core_type = #tpu.core_type<tc>, window_params = [{transform_indices = @transform_0, window_bounds = array<i64: 16, 32>}, {pipeline_mode = #tpu.pipeline_mode<synchronous>, transform_indices = @transform_1, window_bounds = array<i64: 1, 32>}, {pipeline_mode = #tpu.pipeline_mode<synchronous>, transform_indices = @transform_2, window_bounds = array<i64: 1, 32>}, {transform_indices = @transform_3, window_bounds = array<i64: 32, 128>}, {transform_indices = @transform_4, window_bounds = array<i64: 1, 128>}, {transform_indices = @transform_5, window_bounds = array<i64: 16, 128>}]} {
    %c0_i32 = arith.constant 0 : i32
    %0 = arith.cmpi eq, %arg1, %c0_i32 : i32
    %1 = arith.extui %0 : i1 to i32
    %c0_i32_0 = arith.constant 0 : i32
    %2 = arith.cmpi ne, %1, %c0_i32_0 : i32
    scf.if %2 {
      %c0_12 = arith.constant 0 : index
      %c0_13 = arith.constant 0 : index
      %24 = vector.load %arg2[%c0_12, %c0_13] : memref<16x32xbf16, #tpu.memory_space<vmem>>, vector<16x32xbf16>
      %25 = arith.extf %24 : vector<16x32xbf16> to vector<16x32xf32>
      %cst_14 = arith.constant dense<0.000000e+00> : vector<16xf32>
      %26 = vector.multi_reduction <add>, %25, %cst_14 [1] : vector<16x32xf32> to vector<16xf32>
      %27 = vector.shape_cast %26 : vector<16xf32> to vector<16x1xf32>
      %cst_15 = arith.constant 3.200000e+01 : f32
      %28 = vector.broadcast %cst_15 : f32 to vector<16x1xf32>
      %29 = arith.divf %27, %28 : vector<16x1xf32>
      %30 = vector.broadcast %29 : vector<16x1xf32> to vector<16x32xf32>
      %31 = arith.subf %25, %30 : vector<16x32xf32>
      %32 = arith.mulf %31, %31 : vector<16x32xf32>
      %cst_16 = arith.constant dense<0.000000e+00> : vector<16xf32>
      %33 = vector.multi_reduction <add>, %32, %cst_16 [1] : vector<16x32xf32> to vector<16xf32>
      %34 = vector.shape_cast %33 : vector<16xf32> to vector<16x1xf32>
      %cst_17 = arith.constant 3.200000e+01 : f32
      %35 = vector.broadcast %cst_17 : f32 to vector<16x1xf32>
      %36 = arith.divf %34, %35 : vector<16x1xf32>
      %37 = vector.broadcast %29 : vector<16x1xf32> to vector<16x32xf32>
      %38 = arith.subf %25, %37 : vector<16x32xf32>
      %cst_18 = arith.constant 9.99999974E-6 : f32
      %39 = vector.broadcast %cst_18 : f32 to vector<16x1xf32>
      %40 = arith.addf %36, %39 : vector<16x1xf32>
      %41 = math.rsqrt %40 : vector<16x1xf32>
      %42 = vector.broadcast %41 : vector<16x1xf32> to vector<16x32xf32>
      %43 = arith.mulf %38, %42 : vector<16x32xf32>
      %c0_19 = arith.constant 0 : index
      %c0_20 = arith.constant 0 : index
      %44 = vector.load %arg3[%c0_19, %c0_20] : memref<1x32xf32, #tpu.memory_space<vmem>>, vector<1x32xf32>
      %45 = vector.broadcast %44 : vector<1x32xf32> to vector<16x32xf32>
      %46 = arith.mulf %43, %45 : vector<16x32xf32>
      %c0_21 = arith.constant 0 : index
      %c0_22 = arith.constant 0 : index
      %47 = vector.load %arg4[%c0_21, %c0_22] : memref<1x32xf32, #tpu.memory_space<vmem>>, vector<1x32xf32>
      %48 = vector.broadcast %47 : vector<1x32xf32> to vector<16x32xf32>
      %49 = arith.addf %46, %48 : vector<16x32xf32>
      %50 = arith.truncf %49 : vector<16x32xf32> to vector<16x32xbf16>
      %c0_23 = arith.constant 0 : index
      %c0_24 = arith.constant 0 : index
      %51 = vector.load %arg8[%c0_23, %c0_24] : memref<16x32xbf16, #tpu.memory_space<vmem>>, vector<16x32xbf16>
      tpu.vector_store %arg8[%c0_23, %c0_24], %50 {strides = array<i32>} : memref<16x32xbf16, #tpu.memory_space<vmem>>, vector<16x32xbf16>,
    } else {
    }
    %c0 = arith.constant 0 : index
    %c0_1 = arith.constant 0 : index
    %3 = vector.load %arg8[%c0, %c0_1] : memref<16x32xbf16, #tpu.memory_space<vmem>>, vector<16x32xbf16>
    %c0_2 = arith.constant 0 : index
    %c0_3 = arith.constant 0 : index
    %4 = vector.load %arg5[%c0_2, %c0_3] : memref<32x128xbf16, #tpu.memory_space<vmem>>, vector<32x128xbf16>
    %cst = arith.constant dense<0.000000e+00> : vector<16x128xf32>
    %5 = tpu.matmul %3, %4, %cst {dimension_numbers = #tpu.dot_dimension_numbers<[1], [0], [0], [1], [0, 0, 1, 1], [], []>} : vector<16x32xbf16>, vector<32x128xbf16>, vector<16x128xf32> -> vector<16x128xf32>
    %c0_4 = arith.constant 0 : index
    %c0_5 = arith.constant 0 : index
    %6 = vector.load %arg6[%c0_4, %c0_5] : memref<1x128xf32, #tpu.memory_space<vmem>>, vector<1x128xf32>
    %7 = vector.broadcast %6 : vector<1x128xf32> to vector<16x128xf32>
    %8 = arith.addf %5, %7 : vector<16x128xf32>
    %cst_6 = arith.constant 5.000000e-01 : f32
    %9 = vector.broadcast %cst_6 : f32 to vector<16x128xf32>
    %10 = arith.mulf %9, %8 : vector<16x128xf32>
    %cst_7 = arith.constant 4.471500e-02 : f32
    %11 = vector.broadcast %cst_7 : f32 to vector<16x128xf32>
    %12 = arith.mulf %11, %8 : vector<16x128xf32>
    %13 = arith.mulf %12, %8 : vector<16x128xf32>
    %14 = arith.mulf %13, %8 : vector<16x128xf32>
    %15 = arith.addf %8, %14 : vector<16x128xf32>
    %cst_8 = arith.constant 0.797884583 : f32
    %16 = vector.broadcast %cst_8 : f32 to vector<16x128xf32>
    %17 = arith.mulf %16, %15 : vector<16x128xf32>
    %18 = math.tanh %17 : vector<16x128xf32>
    %cst_9 = arith.constant 1.000000e+00 : f32
    %19 = vector.broadcast %cst_9 : f32 to vector<16x128xf32>
    %20 = arith.addf %19, %18 : vector<16x128xf32>
    %21 = arith.mulf %10, %20 : vector<16x128xf32>
    %22 = arith.truncf %21 : vector<16x128xf32> to vector<16x128xbf16>
    %c0_10 = arith.constant 0 : index
    %c0_11 = arith.constant 0 : index
    %23 = vector.load %arg7[%c0_10, %c0_11] : memref<16x128xbf16, #tpu.memory_space<vmem>>, vector<16x128xbf16>
    tpu.vector_store %arg7[%c0_10, %c0_11], %22 {strides = array<i32>} : memref<16x128xbf16, #tpu.memory_space<vmem>>, vector<16x128xbf16>,
    return
  }
  func.func @transform_0(%arg0: i32, %arg1: i32) -> (i32, i32) {
    %c0_i32 = arith.constant 0 : i32
    %c0_i32_0 = arith.constant 0 : i32
    return %arg0, %c0_i32 : i32, i32
  }
  func.func @transform_1(%arg0: i32, %arg1: i32) -> (i32, i32) {
    %c0_i32 = arith.constant 0 : i32
    %c0_i32_0 = arith.constant 0 : i32
    %c0_i32_1 = arith.constant 0 : i32
    return %c0_i32, %c0_i32_0 : i32, i32
  }
  func.func @transform_2(%arg0: i32, %arg1: i32) -> (i32, i32) {
    %c0_i32 = arith.constant 0 : i32
    %c0_i32_0 = arith.constant 0 : i32
    %c0_i32_1 = arith.constant 0 : i32
    return %c0_i32, %c0_i32_0 : i32, i32
  }
  func.func @transform_3(%arg0: i32, %arg1: i32) -> (i32, i32) {
    %c0_i32 = arith.constant 0 : i32
    %c0_i32_0 = arith.constant 0 : i32
    return %c0_i32, %arg1 : i32, i32
  }
  func.func @transform_4(%arg0: i32, %arg1: i32) -> (i32, i32) {
    %c0_i32 = arith.constant 0 : i32
    %c0_i32_0 = arith.constant 0 : i32
    return %c0_i32, %arg1 : i32, i32
  }
  func.func @transform_5(%arg0: i32, %arg1: i32) -> (i32, i32) {
    %c0_i32 = arith.constant 0 : i32
    return %arg0, %arg1 : i32, i32
  }
}

module attributes {stable_mosaic.version = 11 : i64} {
  func.func @_linear_res_kernel(%arg0: i32, %arg1: i32, %arg2: i32, %arg3: memref<16x128xbf16, #tpu.memory_space<vmem>>, %arg4: memref<128x32xbf16, #tpu.memory_space<vmem>>, %arg5: memref<1x32xf32, #tpu.memory_space<vmem>>, %arg6: memref<16x32xbf16, #tpu.memory_space<vmem>>, %arg7: memref<16x32xbf16, #tpu.memory_space<vmem>>, %arg8: memref<16x32xf32, #tpu.memory_space<vmem>>) attributes {dimension_semantics = [#tpu.dimension_semantics<parallel>, #tpu.dimension_semantics<parallel>, #tpu.dimension_semantics<arbitrary>], iteration_bounds = array<i64: 1, 1, 1>, scalar_prefetch = 0 : i64, scratch_operands = 1 : i64, tpu.core_type = #tpu.core_type<tc>, window_params = [{transform_indices = @transform_0, window_bounds = array<i64: 16, 128>}, {transform_indices = @transform_1, window_bounds = array<i64: 128, 32>}, {transform_indices = @transform_2, window_bounds = array<i64: 1, 32>}, {transform_indices = @transform_3, window_bounds = array<i64: 16, 32>}, {transform_indices = @transform_4, window_bounds = array<i64: 16, 32>}]} {
    %c0_i32 = arith.constant 0 : i32
    %0 = arith.cmpi eq, %arg2, %c0_i32 : i32
    %1 = arith.extui %0 : i1 to i32
    %c0_i32_0 = arith.constant 0 : i32
    %2 = arith.cmpi ne, %1, %c0_i32_0 : i32
    scf.if %2 {
      %cst_10 = arith.constant 0.000000e+00 : f32
      %12 = vector.broadcast %cst_10 : f32 to vector<16x32xf32>
      %c0_11 = arith.constant 0 : index
      %c0_12 = arith.constant 0 : index
      %13 = vector.load %arg8[%c0_11, %c0_12] : memref<16x32xf32, #tpu.memory_space<vmem>>, vector<16x32xf32>
      tpu.vector_store %arg8[%c0_11, %c0_12], %12 {strides = array<i32>} : memref<16x32xf32, #tpu.memory_space<vmem>>, vector<16x32xf32>,
    } else {
    }
    %c0 = arith.constant 0 : index
    %c0_1 = arith.constant 0 : index
    %3 = vector.load %arg8[%c0, %c0_1] : memref<16x32xf32, #tpu.memory_space<vmem>>, vector<16x32xf32>
    %c0_2 = arith.constant 0 : index
    %c0_3 = arith.constant 0 : index
    %4 = vector.load %arg3[%c0_2, %c0_3] : memref<16x128xbf16, #tpu.memory_space<vmem>>, vector<16x128xbf16>
    %c0_4 = arith.constant 0 : index
    %c0_5 = arith.constant 0 : index
    %5 = vector.load %arg4[%c0_4, %c0_5] : memref<128x32xbf16, #tpu.memory_space<vmem>>, vector<128x32xbf16>
    %cst = arith.constant dense<0.000000e+00> : vector<16x32xf32>
    %6 = tpu.matmul %4, %5, %cst {dimension_numbers = #tpu.dot_dimension_numbers<[1], [0], [0], [1], [0, 0, 1, 1], [], []>} : vector<16x128xbf16>, vector<128x32xbf16>, vector<16x32xf32> -> vector<16x32xf32>
    %7 = arith.addf %3, %6 : vector<16x32xf32>
    %c0_6 = arith.constant 0 : index
    %c0_7 = arith.constant 0 : index
    %8 = vector.load %arg8[%c0_6, %c0_7] : memref<16x32xf32, #tpu.memory_space<vmem>>, vector<16x32xf32>
    tpu.vector_store %arg8[%c0_6, %c0_7], %7 {strides = array<i32>} : memref<16x32xf32, #tpu.memory_space<vmem>>, vector<16x32xf32>,
    %c0_i32_8 = arith.constant 0 : i32
    %9 = arith.cmpi eq, %arg2, %c0_i32_8 : i32
    %10 = arith.extui %9 : i1 to i32
    %c0_i32_9 = arith.constant 0 : i32
    %11 = arith.cmpi ne, %10, %c0_i32_9 : i32
    scf.if %11 {
      %c0_10 = arith.constant 0 : index
      %c0_11 = arith.constant 0 : index
      %12 = vector.load %arg8[%c0_10, %c0_11] : memref<16x32xf32, #tpu.memory_space<vmem>>, vector<16x32xf32>
      %c0_12 = arith.constant 0 : index
      %c0_13 = arith.constant 0 : index
      %13 = vector.load %arg5[%c0_12, %c0_13] : memref<1x32xf32, #tpu.memory_space<vmem>>, vector<1x32xf32>
      %14 = vector.broadcast %13 : vector<1x32xf32> to vector<16x32xf32>
      %15 = arith.addf %12, %14 : vector<16x32xf32>
      %c0_14 = arith.constant 0 : index
      %c0_15 = arith.constant 0 : index
      %16 = vector.load %arg6[%c0_14, %c0_15] : memref<16x32xbf16, #tpu.memory_space<vmem>>, vector<16x32xbf16>
      %17 = arith.extf %16 : vector<16x32xbf16> to vector<16x32xf32>
      %18 = arith.addf %15, %17 : vector<16x32xf32>
      %19 = arith.truncf %18 : vector<16x32xf32> to vector<16x32xbf16>
      %c0_16 = arith.constant 0 : index
      %c0_17 = arith.constant 0 : index
      %20 = vector.load %arg7[%c0_16, %c0_17] : memref<16x32xbf16, #tpu.memory_space<vmem>>, vector<16x32xbf16>
      tpu.vector_store %arg7[%c0_16, %c0_17], %19 {strides = array<i32>} : memref<16x32xbf16, #tpu.memory_space<vmem>>, vector<16x32xbf16>,
    } else {
    }
    return
  }
  func.func @transform_0(%arg0: i32, %arg1: i32, %arg2: i32) -> (i32, i32) {
    %c0_i32 = arith.constant 0 : i32
    return %arg0, %arg2 : i32, i32
  }
  func.func @transform_1(%arg0: i32, %arg1: i32, %arg2: i32) -> (i32, i32) {
    %c0_i32 = arith.constant 0 : i32
    return %arg2, %arg1 : i32, i32
  }
  func.func @transform_2(%arg0: i32, %arg1: i32, %arg2: i32) -> (i32, i32) {
    %c0_i32 = arith.constant 0 : i32
    %c0_i32_0 = arith.constant 0 : i32
    return %c0_i32, %arg1 : i32, i32
  }
  func.func @transform_3(%arg0: i32, %arg1: i32, %arg2: i32) -> (i32, i32) {
    %c0_i32 = arith.constant 0 : i32
    return %arg0, %arg1 : i32, i32
  }
  func.func @transform_4(%arg0: i32, %arg1: i32, %arg2: i32) -> (i32, i32) {
    %c0_i32 = arith.constant 0 : i32
    return %arg0, %arg1 : i32, i32
  }
}

module attributes {stable_mosaic.version = 11 : i64} {
  func.func @_ln_linear_kernel(%arg0: i32, %arg1: i32, %arg2: memref<16x32xbf16, #tpu.memory_space<vmem>>, %arg3: memref<1x32xf32, #tpu.memory_space<vmem>>, %arg4: memref<1x32xf32, #tpu.memory_space<vmem>>, %arg5: memref<32x20xbf16, #tpu.memory_space<vmem>>, %arg6: memref<1x20xf32, #tpu.memory_space<vmem>>, %arg7: memref<16x20xbf16, #tpu.memory_space<vmem>>, %arg8: memref<16x32xbf16, #tpu.memory_space<vmem>>) attributes {dimension_semantics = [#tpu.dimension_semantics<parallel>, #tpu.dimension_semantics<arbitrary>], iteration_bounds = array<i64: 1, 1>, scalar_prefetch = 0 : i64, scratch_operands = 1 : i64, tpu.core_type = #tpu.core_type<tc>, window_params = [{transform_indices = @transform_0, window_bounds = array<i64: 16, 32>}, {pipeline_mode = #tpu.pipeline_mode<synchronous>, transform_indices = @transform_1, window_bounds = array<i64: 1, 32>}, {pipeline_mode = #tpu.pipeline_mode<synchronous>, transform_indices = @transform_2, window_bounds = array<i64: 1, 32>}, {transform_indices = @transform_3, window_bounds = array<i64: 32, 20>}, {transform_indices = @transform_4, window_bounds = array<i64: 1, 20>}, {transform_indices = @transform_5, window_bounds = array<i64: 16, 20>}]} {
    %c0_i32 = arith.constant 0 : i32
    %0 = arith.cmpi eq, %arg1, %c0_i32 : i32
    %1 = arith.extui %0 : i1 to i32
    %c0_i32_0 = arith.constant 0 : i32
    %2 = arith.cmpi ne, %1, %c0_i32_0 : i32
    scf.if %2 {
      %c0_9 = arith.constant 0 : index
      %c0_10 = arith.constant 0 : index
      %13 = vector.load %arg2[%c0_9, %c0_10] : memref<16x32xbf16, #tpu.memory_space<vmem>>, vector<16x32xbf16>
      %14 = arith.extf %13 : vector<16x32xbf16> to vector<16x32xf32>
      %cst_11 = arith.constant dense<0.000000e+00> : vector<16xf32>
      %15 = vector.multi_reduction <add>, %14, %cst_11 [1] : vector<16x32xf32> to vector<16xf32>
      %16 = vector.shape_cast %15 : vector<16xf32> to vector<16x1xf32>
      %cst_12 = arith.constant 3.200000e+01 : f32
      %17 = vector.broadcast %cst_12 : f32 to vector<16x1xf32>
      %18 = arith.divf %16, %17 : vector<16x1xf32>
      %19 = vector.broadcast %18 : vector<16x1xf32> to vector<16x32xf32>
      %20 = arith.subf %14, %19 : vector<16x32xf32>
      %21 = arith.mulf %20, %20 : vector<16x32xf32>
      %cst_13 = arith.constant dense<0.000000e+00> : vector<16xf32>
      %22 = vector.multi_reduction <add>, %21, %cst_13 [1] : vector<16x32xf32> to vector<16xf32>
      %23 = vector.shape_cast %22 : vector<16xf32> to vector<16x1xf32>
      %cst_14 = arith.constant 3.200000e+01 : f32
      %24 = vector.broadcast %cst_14 : f32 to vector<16x1xf32>
      %25 = arith.divf %23, %24 : vector<16x1xf32>
      %26 = vector.broadcast %18 : vector<16x1xf32> to vector<16x32xf32>
      %27 = arith.subf %14, %26 : vector<16x32xf32>
      %cst_15 = arith.constant 9.99999974E-6 : f32
      %28 = vector.broadcast %cst_15 : f32 to vector<16x1xf32>
      %29 = arith.addf %25, %28 : vector<16x1xf32>
      %30 = math.rsqrt %29 : vector<16x1xf32>
      %31 = vector.broadcast %30 : vector<16x1xf32> to vector<16x32xf32>
      %32 = arith.mulf %27, %31 : vector<16x32xf32>
      %c0_16 = arith.constant 0 : index
      %c0_17 = arith.constant 0 : index
      %33 = vector.load %arg3[%c0_16, %c0_17] : memref<1x32xf32, #tpu.memory_space<vmem>>, vector<1x32xf32>
      %34 = vector.broadcast %33 : vector<1x32xf32> to vector<16x32xf32>
      %35 = arith.mulf %32, %34 : vector<16x32xf32>
      %c0_18 = arith.constant 0 : index
      %c0_19 = arith.constant 0 : index
      %36 = vector.load %arg4[%c0_18, %c0_19] : memref<1x32xf32, #tpu.memory_space<vmem>>, vector<1x32xf32>
      %37 = vector.broadcast %36 : vector<1x32xf32> to vector<16x32xf32>
      %38 = arith.addf %35, %37 : vector<16x32xf32>
      %39 = arith.truncf %38 : vector<16x32xf32> to vector<16x32xbf16>
      %c0_20 = arith.constant 0 : index
      %c0_21 = arith.constant 0 : index
      %40 = vector.load %arg8[%c0_20, %c0_21] : memref<16x32xbf16, #tpu.memory_space<vmem>>, vector<16x32xbf16>
      tpu.vector_store %arg8[%c0_20, %c0_21], %39 {strides = array<i32>} : memref<16x32xbf16, #tpu.memory_space<vmem>>, vector<16x32xbf16>,
    } else {
    }
    %c0 = arith.constant 0 : index
    %c0_1 = arith.constant 0 : index
    %3 = vector.load %arg8[%c0, %c0_1] : memref<16x32xbf16, #tpu.memory_space<vmem>>, vector<16x32xbf16>
    %c0_2 = arith.constant 0 : index
    %c0_3 = arith.constant 0 : index
    %4 = vector.load %arg5[%c0_2, %c0_3] : memref<32x20xbf16, #tpu.memory_space<vmem>>, vector<32x20xbf16>
    %cst = arith.constant dense<0.000000e+00> : vector<16x20xf32>
    %5 = tpu.matmul %3, %4, %cst {dimension_numbers = #tpu.dot_dimension_numbers<[1], [0], [0], [1], [0, 0, 1, 1], [], []>} : vector<16x32xbf16>, vector<32x20xbf16>, vector<16x20xf32> -> vector<16x20xf32>
    %c0_4 = arith.constant 0 : index
    %c0_5 = arith.constant 0 : index
    %6 = vector.load %arg6[%c0_4, %c0_5] : memref<1x20xf32, #tpu.memory_space<vmem>>, vector<1x20xf32>
    %7 = vector.broadcast %6 : vector<1x20xf32> to vector<16x20xf32>
    %8 = arith.addf %5, %7 : vector<16x20xf32>
    %cst_6 = arith.constant 0.000000e+00 : f32
    %9 = vector.broadcast %cst_6 : f32 to vector<16x20xf32>
    %10 = arith.maximumf %8, %9 : vector<16x20xf32>
    %11 = arith.truncf %10 : vector<16x20xf32> to vector<16x20xbf16>
    %c0_7 = arith.constant 0 : index
    %c0_8 = arith.constant 0 : index
    %12 = vector.load %arg7[%c0_7, %c0_8] : memref<16x20xbf16, #tpu.memory_space<vmem>>, vector<16x20xbf16>
    tpu.vector_store %arg7[%c0_7, %c0_8], %11 {strides = array<i32>} : memref<16x20xbf16, #tpu.memory_space<vmem>>, vector<16x20xbf16>,
    return
  }
  func.func @transform_0(%arg0: i32, %arg1: i32) -> (i32, i32) {
    %c0_i32 = arith.constant 0 : i32
    %c0_i32_0 = arith.constant 0 : i32
    return %arg0, %c0_i32 : i32, i32
  }
  func.func @transform_1(%arg0: i32, %arg1: i32) -> (i32, i32) {
    %c0_i32 = arith.constant 0 : i32
    %c0_i32_0 = arith.constant 0 : i32
    %c0_i32_1 = arith.constant 0 : i32
    return %c0_i32, %c0_i32_0 : i32, i32
  }
  func.func @transform_2(%arg0: i32, %arg1: i32) -> (i32, i32) {
    %c0_i32 = arith.constant 0 : i32
    %c0_i32_0 = arith.constant 0 : i32
    %c0_i32_1 = arith.constant 0 : i32
    return %c0_i32, %c0_i32_0 : i32, i32
  }
  func.func @transform_3(%arg0: i32, %arg1: i32) -> (i32, i32) {
    %c0_i32 = arith.constant 0 : i32
    %c0_i32_0 = arith.constant 0 : i32
    return %c0_i32, %arg1 : i32, i32
  }
  func.func @transform_4(%arg0: i32, %arg1: i32) -> (i32, i32) {
    %c0_i32 = arith.constant 0 : i32
    %c0_i32_0 = arith.constant 0 : i32
    return %c0_i32, %arg1 : i32, i32
  }
  func.func @transform_5(%arg0: i32, %arg1: i32) -> (i32, i32) {
    %c0_i32 = arith.constant 0 : i32
    return %arg0, %arg1 : i32, i32
  }
}

module attributes {stable_mosaic.version = 11 : i64} {
  func.func @_linear_kernel(%arg0: i32, %arg1: i32, %arg2: i32, %arg3: memref<16x20xbf16, #tpu.memory_space<vmem>>, %arg4: memref<20x8xbf16, #tpu.memory_space<vmem>>, %arg5: memref<1x8xf32, #tpu.memory_space<vmem>>, %arg6: memref<16x8xbf16, #tpu.memory_space<vmem>>, %arg7: memref<16x8xf32, #tpu.memory_space<vmem>>) attributes {dimension_semantics = [#tpu.dimension_semantics<parallel>, #tpu.dimension_semantics<parallel>, #tpu.dimension_semantics<arbitrary>], iteration_bounds = array<i64: 1, 1, 1>, scalar_prefetch = 0 : i64, scratch_operands = 1 : i64, tpu.core_type = #tpu.core_type<tc>, window_params = [{transform_indices = @transform_0, window_bounds = array<i64: 16, 20>}, {transform_indices = @transform_1, window_bounds = array<i64: 20, 8>}, {transform_indices = @transform_2, window_bounds = array<i64: 1, 8>}, {transform_indices = @transform_3, window_bounds = array<i64: 16, 8>}]} {
    %c0_i32 = arith.constant 0 : i32
    %0 = arith.cmpi eq, %arg2, %c0_i32 : i32
    %1 = arith.extui %0 : i1 to i32
    %c0_i32_0 = arith.constant 0 : i32
    %2 = arith.cmpi ne, %1, %c0_i32_0 : i32
    scf.if %2 {
      %cst_10 = arith.constant 0.000000e+00 : f32
      %12 = vector.broadcast %cst_10 : f32 to vector<16x8xf32>
      %c0_11 = arith.constant 0 : index
      %c0_12 = arith.constant 0 : index
      %13 = vector.load %arg7[%c0_11, %c0_12] : memref<16x8xf32, #tpu.memory_space<vmem>>, vector<16x8xf32>
      tpu.vector_store %arg7[%c0_11, %c0_12], %12 {strides = array<i32>} : memref<16x8xf32, #tpu.memory_space<vmem>>, vector<16x8xf32>,
    } else {
    }
    %c0 = arith.constant 0 : index
    %c0_1 = arith.constant 0 : index
    %3 = vector.load %arg7[%c0, %c0_1] : memref<16x8xf32, #tpu.memory_space<vmem>>, vector<16x8xf32>
    %c0_2 = arith.constant 0 : index
    %c0_3 = arith.constant 0 : index
    %4 = vector.load %arg3[%c0_2, %c0_3] : memref<16x20xbf16, #tpu.memory_space<vmem>>, vector<16x20xbf16>
    %c0_4 = arith.constant 0 : index
    %c0_5 = arith.constant 0 : index
    %5 = vector.load %arg4[%c0_4, %c0_5] : memref<20x8xbf16, #tpu.memory_space<vmem>>, vector<20x8xbf16>
    %cst = arith.constant dense<0.000000e+00> : vector<16x8xf32>
    %6 = tpu.matmul %4, %5, %cst {dimension_numbers = #tpu.dot_dimension_numbers<[1], [0], [0], [1], [0, 0, 1, 1], [], []>} : vector<16x20xbf16>, vector<20x8xbf16>, vector<16x8xf32> -> vector<16x8xf32>
    %7 = arith.addf %3, %6 : vector<16x8xf32>
    %c0_6 = arith.constant 0 : index
    %c0_7 = arith.constant 0 : index
    %8 = vector.load %arg7[%c0_6, %c0_7] : memref<16x8xf32, #tpu.memory_space<vmem>>, vector<16x8xf32>
    tpu.vector_store %arg7[%c0_6, %c0_7], %7 {strides = array<i32>} : memref<16x8xf32, #tpu.memory_space<vmem>>, vector<16x8xf32>,
    %c0_i32_8 = arith.constant 0 : i32
    %9 = arith.cmpi eq, %arg2, %c0_i32_8 : i32
    %10 = arith.extui %9 : i1 to i32
    %c0_i32_9 = arith.constant 0 : i32
    %11 = arith.cmpi ne, %10, %c0_i32_9 : i32
    scf.if %11 {
      %c0_10 = arith.constant 0 : index
      %c0_11 = arith.constant 0 : index
      %12 = vector.load %arg7[%c0_10, %c0_11] : memref<16x8xf32, #tpu.memory_space<vmem>>, vector<16x8xf32>
      %c0_12 = arith.constant 0 : index
      %c0_13 = arith.constant 0 : index
      %13 = vector.load %arg5[%c0_12, %c0_13] : memref<1x8xf32, #tpu.memory_space<vmem>>, vector<1x8xf32>
      %14 = vector.broadcast %13 : vector<1x8xf32> to vector<16x8xf32>
      %15 = arith.addf %12, %14 : vector<16x8xf32>
      %16 = arith.truncf %15 : vector<16x8xf32> to vector<16x8xbf16>
      %c0_14 = arith.constant 0 : index
      %c0_15 = arith.constant 0 : index
      %17 = vector.load %arg6[%c0_14, %c0_15] : memref<16x8xbf16, #tpu.memory_space<vmem>>, vector<16x8xbf16>
      tpu.vector_store %arg6[%c0_14, %c0_15], %16 {strides = array<i32>} : memref<16x8xbf16, #tpu.memory_space<vmem>>, vector<16x8xbf16>,
    } else {
    }
    return
  }
  func.func @transform_0(%arg0: i32, %arg1: i32, %arg2: i32) -> (i32, i32) {
    %c0_i32 = arith.constant 0 : i32
    return %arg0, %arg2 : i32, i32
  }
  func.func @transform_1(%arg0: i32, %arg1: i32, %arg2: i32) -> (i32, i32) {
    %c0_i32 = arith.constant 0 : i32
    return %arg2, %arg1 : i32, i32
  }
  func.func @transform_2(%arg0: i32, %arg1: i32, %arg2: i32) -> (i32, i32) {
    %c0_i32 = arith.constant 0 : i32
    %c0_i32_0 = arith.constant 0 : i32
    return %c0_i32, %arg1 : i32, i32
  }
  func.func @transform_3(%arg0: i32, %arg1: i32, %arg2: i32) -> (i32, i32) {
    %c0_i32 = arith.constant 0 : i32
    return %arg0, %arg1 : i32, i32
  }
}

</mosaic_0001>

<llo_original>
// kernel: gpt_mlp_forward.14
$region0: #{gpt_mlp_forward.14}
  #allocation0 [shape = 'u32[]', space=smem, size = 0x4, offset = 0x4, fixed_abs, tag = 'smem constant byte address 0x4 - core index']
  #allocation1 [shape = 'u32[72,128]{1,0:T(1,128)}', space=vmem, size = 0x9000, scoped, tag = 'internal scratch']
  #allocation2 [shape = 'f32[16,24]{1,0:T(8,128)}', space=vmem, size = 0x2000, scoped, tag = 'scratch operand']
  %s0 = inlined_call_operand.vmem [shape: bf16[16,16], index: 0, kind: input, shape index: {}]
  %s1 = inlined_call_operand.vmem [shape: bf16[16,24], index: 1, kind: input, shape index: {}]
  %s2 = inlined_call_operand.vmem [shape: f32[1,24], index: 2, kind: input, shape index: {}]
  %s3 = inlined_call_operand.vmem [shape: bf16[16,24], index: 3, kind: output, shape index: {}]
  %s4 = sld [smem:[#allocation0]]
  $region30: #{gpt_mlp_forward.14} parent=0
    _
  %s6 = ssub.s32 1, %s4
  %s7 = scalar_select 0, %s6, %s4
  // Predicated region
  $region2: #{gpt_mlp_forward.14} parent=0 // pred_check
    _
  $region3: #{gpt_mlp_forward.14} parent=0 // pred_check_branch
    %9 = sbr.rel (0) target = $region5
  $region4: #{gpt_mlp_forward.14} parent=0 // pred_region
    _
  $region5: #{gpt_mlp_forward.14} parent=0 // pred_fallthru
    _
  // Predicated region
  $region6: #{gpt_mlp_forward.14} parent=0 // pred_check
    _
  $region7: #{gpt_mlp_forward.14} parent=0 // pred_check_branch
    %11 = sbr.rel (0) target = $region9
  $region8: #{gpt_mlp_forward.14} parent=0 // pred_region
    _
  $region9: #{gpt_mlp_forward.14} parent=0 // pred_fallthru
    _
  // Predicated region
  $region10: #{gpt_mlp_forward.14} parent=0 // pred_check
    _
  $region11: #{gpt_mlp_forward.14} parent=0 // pred_check_branch
    %13 = sbr.rel (0) target = $region13
  $region12: #{gpt_mlp_forward.14} parent=0 // pred_region
    _
  $region13: #{gpt_mlp_forward.14} parent=0 // pred_fallthru
    _
  %p15 = scmp.eq.s32.totalorder 0, 0
  // Predicated region
  $region14: #{gpt_mlp_forward.14} parent=0 // pred_check
    %p16 = pneg %p15
  $region15: #{gpt_mlp_forward.14} parent=0 // pred_check_branch
    %18 = sbr.rel (%p16) target = $region17
  $region16: #{gpt_mlp_forward.14} parent=0 // pred_region
    %vm19 = vcmask 195584
    %20 = vst.msk [vmem:[#allocation2] sm:$0xff] %vm19, 0.0
    %21 = vst.msk [vmem:[#allocation2 + $0x8] sm:$0xff] %vm19, 0.0
  $region17: #{gpt_mlp_forward.14} parent=0 // pred_fallthru
    _
  %v22 = vld [vmem:[#allocation2] sm:$0xff]
  %v23 = vld [vmem:[#allocation2 + $0x8] sm:$0xff]
  %v24 = vld [vmem:[%s0] sm:$0xf]
  %v25 = vld [vmem:[%s0 + $0x4] sm:$0xf]
  %v26 = vld [vmem:[%s1] sm:$0xf]
  %v27 = vld [vmem:[%s1 + $0x4] sm:$0xf]
  %v30 = vunpack.c.l.b16 %v24
  %v31 = vunpack.c.l.b16 %v25
  %v32 = vpack.c.b16 %v31, %v30
  %v35 = vunpack.c.l.b16 %v26
  %v36 = vunpack.c.l.b16 %v27
  %v37 = vpack.c.b16 %v36, %v35
  %vm39 = vcmask 130048
  %v41 = vsel %vm39, %v32, 0
  %43 = vmatpush.bf16.msra.mxu0 0
  %44 = vmatpush.bf16.msra.mxu0 0
  %45 = vmatpush.bf16.msra.mxu0 0
  %46 = vmatpush.bf16.msra.mxu0 0
  %47 = vmatpush.bf16.msra.mxu0 0
  %48 = vmatpush.bf16.msra.mxu0 0
  %49 = vmatpush.bf16.msra.mxu0 0
  %50 = vmatpush.bf16.msra.mxu0 %v37
  %51 = vmatmul.bf16.gmra.mxu0 %v41
  %v52 = vpop.f32.mrf.mxu0
  %v53 = vadd.f32 0.0, %v52
  %v54 = vpop.f32.mrf.mxu0
  %v55 = vadd.f32 0.0, %v54
  %56 = vdwg.mxu0
  %v57 = vadd.f32 %v22, %v53
  %v58 = vadd.f32 %v23, %v55
  %vm59 = vcmask 195584
  %60 = vst.msk [vmem:[#allocation2] sm:$0xff] %vm59, %v57
  %61 = vst.msk [vmem:[#allocation2 + $0x8] sm:$0xff] %vm59, %v58
  // Predicated region
  $region18: #{gpt_mlp_forward.14} parent=0 // pred_check
    %p62 = pneg %p15
  $region19: #{gpt_mlp_forward.14} parent=0 // pred_check_branch
    %64 = sbr.rel (%p62) target = $region21
  $region20: #{gpt_mlp_forward.14} parent=0 // pred_region
    %v65 = vld [vmem:[#allocation2] sm:$0xff]
    %v66 = vld [vmem:[#allocation2 + $0x8] sm:$0xff]
    %v67 = vld [vmem:[%s2] sm:$0x1]
    %v69 = vperm.slane %v67, 0
    %v71 = vadd.f32 %v65, %v69
    %v72 = vadd.f32 %v66, %v69
    %v73 = vmax.f32 %v71, 0.0
    %v74 = vmax.f32 %v72, 0.0
    %v75 = vpack.c.bf16 %v73, %v73
    %v76 = vpack.c.bf16 %v74, %v74
    %vm77 = vcmask 191488
    %78 = vst.msk [vmem:[%s3] sm:$0xf] %vm77, %v75
    %79 = vst.msk [vmem:[%s3 + $0x4] sm:$0xf] %vm77, %v76
  $region21: #{gpt_mlp_forward.14} parent=0 // pred_fallthru
    _
  // Predicated region
  $region22: #{gpt_mlp_forward.14} parent=0 // pred_check
    _
  $region23: #{gpt_mlp_forward.14} parent=0 // pred_check_branch
    %81 = sbr.rel (0) target = $region25
  $region24: #{gpt_mlp_forward.14} parent=0 // pred_region
    _
  $region25: #{gpt_mlp_forward.14} parent=0 // pred_fallthru
    _
  // Predicated region
  $region26: #{gpt_mlp_forward.14} parent=0 // pred_check
    _
  $region27: #{gpt_mlp_forward.14} parent=0 // pred_check_branch
    %83 = sbr.rel (0) target = $region29
  $region28: #{gpt_mlp_forward.14} parent=0 // pred_region
    _
  $region29: #{gpt_mlp_forward.14} parent=0 // pred_fallthru
    _

// kernel: gpt_mlp_forward.16
$region0: #{gpt_mlp_forward.16}
  #allocation0 [shape = 'u32[]', space=smem, size = 0x4, offset = 0x4, fixed_abs, tag = 'smem constant byte address 0x4 - core index']
  #allocation1 [shape = 'u32[72,128]{1,0:T(1,128)}', space=vmem, size = 0x9000, scoped, tag = 'internal scratch']
  #allocation2 [shape = 'bf16[16,32]{1,0:T(8,128)(2,1)}', space=vmem, size = 0x1000, scoped, tag = 'scratch operand']
  %s0 = inlined_call_operand.vmem [shape: bf16[16,32], index: 0, kind: input, shape index: {}]
  %s1 = inlined_call_operand.vmem [shape: f32[1,32], index: 1, kind: input, shape index: {}]
  %s2 = inlined_call_operand.vmem [shape: f32[1,32], index: 2, kind: input, shape index: {}]
  %s3 = inlined_call_operand.vmem [shape: bf16[32,96], index: 3, kind: input, shape index: {}]
  %s4 = inlined_call_operand.vmem [shape: f32[1,96], index: 4, kind: input, shape index: {}]
  %s5 = inlined_call_operand.vmem [shape: bf16[16,96], index: 5, kind: output, shape index: {}]
  %s6 = sld [smem:[#allocation0]]
  $region34: #{gpt_mlp_forward.16} parent=0
    _
  %s8 = ssub.s32 1, %s6
  %s9 = scalar_select 0, %s8, %s6
  // Predicated region
  $region2: #{gpt_mlp_forward.16} parent=0 // pred_check
    _
  $region3: #{gpt_mlp_forward.16} parent=0 // pred_check_branch
    %11 = sbr.rel (0) target = $region5
  $region4: #{gpt_mlp_forward.16} parent=0 // pred_region
    _
  $region5: #{gpt_mlp_forward.16} parent=0 // pred_fallthru
    _
  // Predicated region
  $region6: #{gpt_mlp_forward.16} parent=0 // pred_check
    _
  $region7: #{gpt_mlp_forward.16} parent=0 // pred_check_branch
    %13 = sbr.rel (0) target = $region9
  $region8: #{gpt_mlp_forward.16} parent=0 // pred_region
    _
  $region9: #{gpt_mlp_forward.16} parent=0 // pred_fallthru
    _
  // Predicated region
  $region10: #{gpt_mlp_forward.16} parent=0 // pred_check
    _
  $region11: #{gpt_mlp_forward.16} parent=0 // pred_check_branch
    %15 = sbr.rel (0) target = $region13
  $region12: #{gpt_mlp_forward.16} parent=0 // pred_region
    _
  $region13: #{gpt_mlp_forward.16} parent=0 // pred_fallthru
    _
  // Predicated region
  $region14: #{gpt_mlp_forward.16} parent=0 // pred_check
    _
  $region15: #{gpt_mlp_forward.16} parent=0 // pred_check_branch
    %17 = sbr.rel (0) target = $region17
  $region16: #{gpt_mlp_forward.16} parent=0 // pred_region
    _
  $region17: #{gpt_mlp_forward.16} parent=0 // pred_fallthru
    _
  // Predicated region
  $region18: #{gpt_mlp_forward.16} parent=0 // pred_check
    _
  $region19: #{gpt_mlp_forward.16} parent=0 // pred_check_branch
    %19 = sbr.rel (0) target = $region21
  $region20: #{gpt_mlp_forward.16} parent=0 // pred_region
    _
  $region21: #{gpt_mlp_forward.16} parent=0 // pred_fallthru
    _
  %p21 = scmp.eq.s32.totalorder 0, 0
  // Predicated region
  $region22: #{gpt_mlp_forward.16} parent=0 // pred_check
    %p22 = pneg %p21
  $region23: #{gpt_mlp_forward.16} parent=0 // pred_check_branch
    %24 = sbr.rel (%p22) target = $region25
  $region24: #{gpt_mlp_forward.16} parent=0 // pred_region
    %v25 = vld [vmem:[%s0] sm:$0xf]
    %v26 = vld [vmem:[%s0 + $0x4] sm:$0xf]
    %v27 = vunpack.c.l.bf16 %v25
    %v28 = vunpack.c.l.bf16 %v26
    %vm29 = vcmask 261120
    %v30 = vsel %vm29, %v27, 0.0
    %31 = vadd.xlane.f32.xlu0 %v30
    %v32 = vpop.xlane.xlu0 %31
    %v33 = vsel %vm29, %v28, 0.0
    %34 = vadd.xlane.f32.xlu0 %v33
    %v35 = vpop.xlane.xlu0 %34
    %v36 = vrcp.pop 32.0
    %v37 = vmul.f32 32.0, %v36
    %v38 = vsub.f32 1.0, %v37
    %v39 = vmul.f32 %v36, %v38
    %v40 = vadd.f32 %v36, %v39
    %vm41 = vweird.f32 %v36
    %v42 = vsel %vm41, %v36, %v40
    %v43 = vmul.f32 %v32, %v42
    %v44 = vmul.f32 %v35, %v42
    %v45 = vsub.f32 %v27, %v43
    %v46 = vsub.f32 %v28, %v44
    %v47 = vmul.f32 %v45, %v45
    %v48 = vmul.f32 %v46, %v46
    %v49 = vsel %vm29, %v47, 0.0
    %50 = vadd.xlane.f32.xlu0 %v49
    %v51 = vpop.xlane.xlu0 %50
    %v52 = vsel %vm29, %v48, 0.0
    %53 = vadd.xlane.f32.xlu0 %v52
    %v54 = vpop.xlane.xlu0 %53
    %v55 = vmul.f32 %v51, %v42
    %v56 = vmul.f32 %v54, %v42
    %v57 = vadd.f32 %v55, 1e-05
    %v58 = vadd.f32 %v56, 1e-05
    %v59 = vrsqrt.pop %v57
    %v60 = vmul.f32 %v59, %v57
    %v61 = vmul.f32 %v60, %v59
    %v62 = vmul.f32 0.5, %v61
    %v63 = vsub.f32 1.5, %v62
    %v64 = vmul.f32 %v59, %v63
    %vm65 = vweird.f32 %v57
    %vm66 = vweird.f32 %v59
    %vm67 = vmor %vm65, %vm66
    %v68 = vsel %vm67, %v59, %v64
    %v69 = vrsqrt.pop %v58
    %v70 = vmul.f32 %v69, %v58
    %v71 = vmul.f32 %v70, %v69
    %v72 = vmul.f32 0.5, %v71
    %v73 = vsub.f32 1.5, %v72
    %v74 = vmul.f32 %v69, %v73
    %vm75 = vweird.f32 %v58
    %vm76 = vweird.f32 %v69
    %vm77 = vmor %vm75, %vm76
    %v78 = vsel %vm77, %v69, %v74
    %v79 = vmul.f32 %v45, %v68
    %v80 = vmul.f32 %v46, %v78
    %v81 = vld [vmem:[%s1] sm:$0x1]
    %v83 = vperm.slane %v81, 0
    %v85 = vmul.f32 %v79, %v83
    %v86 = vmul.f32 %v80, %v83
    %v87 = vld [vmem:[%s2] sm:$0x1]
    %v89 = vperm.slane %v87, 0
    %v91 = vadd.f32 %v85, %v89
    %v92 = vadd.f32 %v86, %v89
    %v93 = vpack.c.bf16 %v91, %v91
    %v94 = vpack.c.bf16 %v92, %v92
    %vm95 = vcmask 257024
    %96 = vst.msk [vmem:[#allocation2] sm:$0xf] %vm95, %v93
    %97 = vst.msk [vmem:[#allocation2 + $0x4] sm:$0xf] %vm95, %v94
  $region25: #{gpt_mlp_forward.16} parent=0 // pred_fallthru
    _
  %v98 = vld [vmem:[#allocation2] sm:$0xf]
  %v99 = vld [vmem:[#allocation2 + $0x4] sm:$0xf]
  %v100 = vld [vmem:[%s3] sm:$0xf]
  %v101 = vld [vmem:[%s3 + $0x4] sm:$0xf]
  %v102 = vld [vmem:[%s3 + $0x8] sm:$0xf]
  %v103 = vld [vmem:[%s3 + $0xc] sm:$0xf]
  %v104 = vld [vmem:[%s4] sm:$0x1]
  %v106 = vperm.slane %v104, 0
  %v110 = vunpack.c.l.b16 %v98
  %v111 = vunpack.c.l.b16 %v99
  %v112 = vpack.c.b16 %v111, %v110
  %v117 = vunpack.c.l.b16 %v100
  %v118 = vunpack.c.l.b16 %v101
  %v119 = vunpack.c.l.b16 %v102
  %v120 = vunpack.c.l.b16 %v103
  %v121 = vpack.c.b16 %v118, %v117
  %v122 = vpack.c.b16 %v120, %v119
  %vm125 = vcmask 261120
  %v127 = vsel %vm125, %v112, 0
  %129 = vmatpush.bf16.msra.mxu0 0
  %130 = vmatpush.bf16.msra.mxu0 0
  %131 = vmatpush.bf16.msra.mxu0 0
  %132 = vmatpush.bf16.msra.mxu0 0
  %133 = vmatpush.bf16.msra.mxu0 0
  %134 = vmatpush.bf16.msra.mxu0 0
  %135 = vmatpush.bf16.msra.mxu0 %v122
  %136 = vmatpush.bf16.msra.mxu0 %v121
  %137 = vmatmul.bf16.gmra.mxu0 %v127
  %v138 = vpop.f32.mrf.mxu0
  %v139 = vadd.f32 %v106, %v138
  %v140 = vpop.f32.mrf.mxu0
  %v141 = vadd.f32 %v106, %v140
  %142 = vdwg.mxu0
  %v143 = vpack.c.bf16 %v139, %v139
  %v144 = vpack.c.bf16 %v141, %v141
  %vm145 = vcmask 781312
  %146 = vst.msk [vmem:[%s5] sm:$0xf] %vm145, %v143
  %147 = vst.msk [vmem:[%s5 + $0x4] sm:$0xf] %vm145, %v144
  // Predicated region
  $region26: #{gpt_mlp_forward.16} parent=0 // pred_check
    _
  $region27: #{gpt_mlp_forward.16} parent=0 // pred_check_branch
    %149 = sbr.rel (0) target = $region29
  $region28: #{gpt_mlp_forward.16} parent=0 // pred_region
    _
  $region29: #{gpt_mlp_forward.16} parent=0 // pred_fallthru
    _
  // Predicated region
  $region30: #{gpt_mlp_forward.16} parent=0 // pred_check
    _
  $region31: #{gpt_mlp_forward.16} parent=0 // pred_check_branch
    %151 = sbr.rel (0) target = $region33
  $region32: #{gpt_mlp_forward.16} parent=0 // pred_region
    _
  $region33: #{gpt_mlp_forward.16} parent=0 // pred_fallthru
    _

// kernel: gpt_mlp_forward.15
$region0: #{gpt_mlp_forward.15}
  #allocation0 [shape = 'u32[]', space=smem, size = 0x4, offset = 0x4, fixed_abs, tag = 'smem constant byte address 0x4 - core index']
  #allocation1 [shape = 'u32[72,128]{1,0:T(1,128)}', space=vmem, size = 0x9000, scoped, tag = 'internal scratch']
  #allocation2 [shape = 'f32[8,32]{1,0:T(8,128)}', space=vmem, size = 0x1000, scoped, tag = 'scratch operand']
  %s0 = inlined_call_operand.vmem [shape: bf16[16,24], index: 0, kind: input, shape index: {}]
  %s1 = inlined_call_operand.vmem [shape: bf16[24,32], index: 1, kind: input, shape index: {}]
  %s2 = inlined_call_operand.vmem [shape: f32[1,32], index: 2, kind: input, shape index: {}]
  %s3 = inlined_call_operand.vmem [shape: bf16[8,32], index: 3, kind: input, shape index: {}]
  %s4 = inlined_call_operand.vmem [shape: bf16[16,32], index: 4, kind: output, shape index: {}]
  %s5 = sld [smem:[#allocation0]]
  $region57: #{gpt_mlp_forward.15} parent=0
    _
  %s7 = ssub.s32 1, %s5
  %s8 = scalar_select 0, %s7, %s5
  loop: start=0, step=1, limit=4
  $region2: #{gpt_mlp_forward.15} parent=0 // loop_pre_header
    _
  $region3: #{gpt_mlp_forward.15} parent=0 // loop_header
    %s10 = sphi 0, %s14
    %p11 = scmp.ge.s32.totalorder %s10, 4
    %s17 = sphi 0, %s36
    %s18 = sphi 0, %s32
    %s19 = sphi 0, %s28
    %s20 = sphi 0, %s17
    %s21 = sphi 0, %s18
    %s22 = sphi 0, %s19
    %s23 = sphi 0, %s20
    %s24 = sphi 0, %s21
    %s25 = sphi 0, %s22
    %s41 = sphi 0, %s43
    %s44 = sphi 0, %s41
    %s45 = sphi 0, %s44
    %s61 = sphi 0, %s45
    %s69 = sphi 0, %s71
    %s72 = sphi 0, %s69
    %s73 = sphi 0, %s72
    %s89 = sphi 0, %s73
    %s95 = sphi 0, %s97
    %s98 = sphi 0, %s95
    %s99 = sphi 0, %s98
    %s115 = sphi 0, %s99
    %s121 = sphi 0, %s123
    %s124 = sphi 0, %s121
    %s125 = sphi 0, %s124
    %s141 = sphi 0, %s125
    %s149 = sphi 0, %s151
    %s152 = sphi 0, %s149
    %s153 = sphi 0, %s152
    %s169 = sphi 0, %s153
  $region4: #{gpt_mlp_forward.15} parent=0 // loop_header_branch
    %13 = sbr.rel (%p11) target = $region8
  $region5: #{gpt_mlp_forward.15} parent=0 // loop_body
    %s15 = ssub.s32 %s10, 1
    %s16 = ssub.s32 %s10, 2
    %s26 = sadd.s32 1, %s19
    %p27 = scmp.ge.s32.totalorder %s26, 1
    %s28 = scalar_select %p27, 0, %s26
    %s29 = sadd.s32 1, %s18
    %s30 = scalar_select %p27, %s29, %s18
    %p31 = scmp.ge.s32.totalorder %s30, 1
    %s32 = scalar_select %p31, 0, %s30
    %s33 = sadd.s32 1, %s17
    %s34 = scalar_select %p31, %s33, %s17
    %p35 = scmp.ge.s32.totalorder %s34, 2
    %s36 = scalar_select %p35, 0, %s34
    %s37 = ssub.s32 %s17, %s36
    %s38 = ssub.s32 %s19, %s28
    %s39 = sor.u32 %s37, %s38
    %p40 = scmp.eq.s32.totalorder %s39, 0
    %s42 = sadd.s32 %s41, 1
    %s43 = scalar_select %p40, %s41, %s42
    %p46 = pneg %p40
    %p47 = scmp.eq.s32.totalorder %s10, 1
    %p48 = por %p46, %p47
    %p49 = scmp.ne.s32.totalorder %s41, %s44
    %p50 = scmp.eq.s32.totalorder %s10, 0
    %p51 = por %p49, %p50
    %p52 = scmp.ne.s32.totalorder %s41, %s44
    %p53 = scmp.eq.s32.totalorder %s15, 1
    %p54 = por %p52, %p53
    %p55 = scmp.ne.s32.totalorder %s44, %s45
    %p56 = scmp.eq.s32.totalorder %s15, 0
    %p57 = por %p55, %p56
    %p58 = scmp.ne.s32.totalorder %s44, %s45
    %p59 = scmp.eq.s32.totalorder %s16, 1
    %p60 = por %p58, %p59
    %p62 = scmp.ne.s32.totalorder %s45, %s61
    %p63 = scmp.eq.s32.totalorder %s16, 0
    %p64 = por %p62, %p63
    %s65 = ssub.s32 %s19, %s28
    %s66 = ssub.s32 %s18, %s32
    %s67 = sor.u32 %s65, %s66
    %p68 = scmp.eq.s32.totalorder %s67, 0
    %s70 = sadd.s32 %s69, 1
    %s71 = scalar_select %p68, %s69, %s70
    %p74 = pneg %p68
    %p75 = scmp.eq.s32.totalorder %s10, 1
    %p76 = por %p74, %p75
    %p77 = scmp.ne.s32.totalorder %s69, %s72
    %p78 = scmp.eq.s32.totalorder %s10, 0
    %p79 = por %p77, %p78
    %p80 = scmp.ne.s32.totalorder %s69, %s72
    %p81 = scmp.eq.s32.totalorder %s15, 1
    %p82 = por %p80, %p81
    %p83 = scmp.ne.s32.totalorder %s72, %s73
    %p84 = scmp.eq.s32.totalorder %s15, 0
    %p85 = por %p83, %p84
    %p86 = scmp.ne.s32.totalorder %s72, %s73
    %p87 = scmp.eq.s32.totalorder %s16, 1
    %p88 = por %p86, %p87
    %p90 = scmp.ne.s32.totalorder %s73, %s89
    %p91 = scmp.eq.s32.totalorder %s16, 0
    %p92 = por %p90, %p91
    %s93 = ssub.s32 %s18, %s32
    %p94 = scmp.eq.s32.totalorder %s93, 0
    %s96 = sadd.s32 %s95, 1
    %s97 = scalar_select %p94, %s95, %s96
    %p100 = pneg %p94
    %p101 = scmp.eq.s32.totalorder %s10, 1
    %p102 = por %p100, %p101
    %p103 = scmp.ne.s32.totalorder %s95, %s98
    %p104 = scmp.eq.s32.totalorder %s10, 0
    %p105 = por %p103, %p104
    %p106 = scmp.ne.s32.totalorder %s95, %s98
    %p107 = scmp.eq.s32.totalorder %s15, 1
    %p108 = por %p106, %p107
    %p109 = scmp.ne.s32.totalorder %s98, %s99
    %p110 = scmp.eq.s32.totalorder %s15, 0
    %p111 = por %p109, %p110
    %p112 = scmp.ne.s32.totalorder %s98, %s99
    %p113 = scmp.eq.s32.totalorder %s16, 1
    %p114 = por %p112, %p113
    %p116 = scmp.ne.s32.totalorder %s99, %s115
    %p117 = scmp.eq.s32.totalorder %s16, 0
    %p118 = por %p116, %p117
    %s119 = ssub.s32 %s18, %s32
    %p120 = scmp.eq.s32.totalorder %s119, 0
    %s122 = sadd.s32 %s121, 1
    %s123 = scalar_select %p120, %s121, %s122
    %p126 = pneg %p120
    %p127 = scmp.eq.s32.totalorder %s10, 1
    %p128 = por %p126, %p127
    %p129 = scmp.ne.s32.totalorder %s121, %s124
    %p130 = scmp.eq.s32.totalorder %s10, 0
    %p131 = por %p129, %p130
    %p132 = scmp.ne.s32.totalorder %s121, %s124
    %p133 = scmp.eq.s32.totalorder %s15, 1
    %p134 = por %p132, %p133
    %p135 = scmp.ne.s32.totalorder %s124, %s125
    %p136 = scmp.eq.s32.totalorder %s15, 0
    %p137 = por %p135, %p136
    %p138 = scmp.ne.s32.totalorder %s124, %s125
    %p139 = scmp.eq.s32.totalorder %s16, 1
    %p140 = por %p138, %p139
    %p142 = scmp.ne.s32.totalorder %s125, %s141
    %p143 = scmp.eq.s32.totalorder %s16, 0
    %p144 = por %p142, %p143
    %s145 = ssub.s32 %s17, %s36
    %s146 = ssub.s32 %s18, %s32
    %s147 = sor.u32 %s145, %s146
    %p148 = scmp.eq.s32.totalorder %s147, 0
    %s150 = sadd.s32 %s149, 1
    %s151 = scalar_select %p148, %s149, %s150
    %p154 = pneg %p148
    %p155 = scmp.eq.s32.totalorder %s10, 1
    %p156 = por %p154, %p155
    %p157 = scmp.ne.s32.totalorder %s149, %s152
    %p158 = scmp.eq.s32.totalorder %s10, 0
    %p159 = por %p157, %p158
    %p160 = scmp.ne.s32.totalorder %s149, %s152
    %p161 = scmp.eq.s32.totalorder %s15, 1
    %p162 = por %p160, %p161
    %p163 = scmp.ne.s32.totalorder %s152, %s153
    %p164 = scmp.eq.s32.totalorder %s15, 0
    %p165 = por %p163, %p164
    %p166 = scmp.ne.s32.totalorder %s152, %s153
    %p167 = scmp.eq.s32.totalorder %s16, 1
    %p168 = por %p166, %p167
    %p170 = scmp.ne.s32.totalorder %s153, %s169
    %p171 = scmp.eq.s32.totalorder %s16, 0
    %p172 = por %p170, %p171
    %p173 = scmp.le.s32.totalorder 1, %s10
    %p174 = scmp.lt.s32.totalorder %s10, 3
    %p175 = pnand %p173, %p174
    %p176 = pneg %p175
    // Predicated region
    $region9: #{gpt_mlp_forward.15} parent=5 // pred_check
      _
    $region10: #{gpt_mlp_forward.15} parent=5 // pred_check_branch
      %178 = sbr.rel (%p175) target = $region12
    $region11: #{gpt_mlp_forward.15} parent=5 // pred_region
      %s179 = ssub.s32 %s10, 1
      // Predicated region
      $region13: #{gpt_mlp_forward.15} parent=11 // pred_check
        %p180 = pneg %p85
      $region14: #{gpt_mlp_forward.15} parent=11 // pred_check_branch
        %182 = sbr.rel (%p180) target = $region16
      $region15: #{gpt_mlp_forward.15} parent=11 // pred_region
        %s183 = smul.u32 3, %s22
        %p184 = scmp.lt.s32.totalorder %s183, 2
        %s185 = scalar_select %p184, %s183, 2
        %p186 = scmp.lt.s32.totalorder %s21, 0
        %s187 = scalar_select %p186, %s21, 0
        %s188 = sadd.s32 %s187, %s185
        %s189 = smul.addr %s188, 4
        %s190 = scalar_lea.vmem %s1, %s189
        %s191 = smul.u32 3, %s22
      $region16: #{gpt_mlp_forward.15} parent=11 // pred_fallthru
        _
      // Predicated region
      $region17: #{gpt_mlp_forward.15} parent=11 // pred_check
        %p192 = pneg %p111
      $region18: #{gpt_mlp_forward.15} parent=11 // pred_check_branch
        %194 = sbr.rel (%p192) target = $region20
      $region19: #{gpt_mlp_forward.15} parent=11 // pred_region
        %p195 = scmp.lt.s32.totalorder %s21, 0
        %s196 = scalar_select %p195, %s21, 0
        %s197 = scalar_lea.vmem %s2, %s196
      $region20: #{gpt_mlp_forward.15} parent=11 // pred_fallthru
        _
      // Predicated region
      $region21: #{gpt_mlp_forward.15} parent=11 // pred_check
        %p198 = pneg %p137
      $region22: #{gpt_mlp_forward.15} parent=11 // pred_check_branch
        %200 = sbr.rel (%p198) target = $region24
      $region23: #{gpt_mlp_forward.15} parent=11 // pred_region
        %p201 = scmp.lt.s32.totalorder %s21, 0
        %s202 = scalar_select %p201, %s21, 0
        %s203 = smul.addr %s202, 4
        %s204 = scalar_lea.vmem %s3, %s203
      $region24: #{gpt_mlp_forward.15} parent=11 // pred_fallthru
        _
    $region12: #{gpt_mlp_forward.15} parent=5 // pred_fallthru
      _
    %p205 = scmp.lt.s32.totalorder %s10, 2
    // Predicated region
    $region25: #{gpt_mlp_forward.15} parent=5 // pred_check
      %p206 = pneg %p205
    $region26: #{gpt_mlp_forward.15} parent=5 // pred_check_branch
      %208 = sbr.rel (%p206) target = $region28
    $region27: #{gpt_mlp_forward.15} parent=5 // pred_region
      // Predicated region
      $region29: #{gpt_mlp_forward.15} parent=27 // pred_check
        %p209 = pneg %p51
      $region30: #{gpt_mlp_forward.15} parent=27 // pred_check_branch
        %211 = sbr.rel (%p209) target = $region32
      $region31: #{gpt_mlp_forward.15} parent=27 // pred_region
        %p212 = scmp.lt.s32.totalorder %s17, 1
        %s213 = scalar_select %p212, %s17, 1
        %p214 = scmp.lt.s32.totalorder %s19, 0
        %s215 = scalar_select %p214, %s19, 0
        %s216 = sadd.s32 %s215, %s213
        %s217 = smul.addr %s216, 4
        %s218 = scalar_lea.vmem %s0, %s217
      $region32: #{gpt_mlp_forward.15} parent=27 // pred_fallthru
        _
    $region28: #{gpt_mlp_forward.15} parent=5 // pred_fallthru
      _
    %p219 = scmp.le.s32.totalorder 1, %s10
    %p220 = scmp.lt.s32.totalorder %s10, 3
    %p221 = pnand %p219, %p220
    %p222 = pneg %p221
    // Predicated region
    $region33: #{gpt_mlp_forward.15} parent=5 // pred_check
      _
    $region34: #{gpt_mlp_forward.15} parent=5 // pred_check_branch
      %224 = sbr.rel (%p221) target = $region36
    $region35: #{gpt_mlp_forward.15} parent=5 // pred_region
      %s225 = ssub.s32 %s10, 1
      %p226 = scmp.lt.s32.totalorder %s20, 1
      %s227 = scalar_select %p226, %s20, 1
      %p228 = scmp.lt.s32.totalorder %s22, 0
      %s229 = scalar_select %p228, %s22, 0
      %s230 = sadd.s32 %s229, %s227
      %s231 = smul.addr %s230, 4
      %s232 = scalar_lea.vmem %s0, %s231
      %p233 = pneg %p57
      %p234 = pneg %p54
      %s235 = smul.u32 3, %s22
      %p236 = scmp.lt.s32.totalorder %s235, 2
      %s237 = scalar_select %p236, %s235, 2
      %p238 = scmp.lt.s32.totalorder %s21, 0
      %s239 = scalar_select %p238, %s21, 0
      %s240 = sadd.s32 %s239, %s237
      %s241 = smul.addr %s240, 4
      %s242 = scalar_lea.vmem %s1, %s241
      %p243 = pneg %p85
      %p244 = pneg %p82
      %p245 = scmp.lt.s32.totalorder %s21, 0
      %s246 = scalar_select %p245, %s21, 0
      %s247 = scalar_lea.vmem %s2, %s246
      %p248 = pneg %p111
      %p249 = pneg %p108
      %p250 = scmp.lt.s32.totalorder %s21, 0
      %s251 = scalar_select %p250, %s21, 0
      %s252 = smul.addr %s251, 4
      %s253 = scalar_lea.vmem %s3, %s252
      %p254 = pneg %p137
      %p255 = pneg %p134
      %p256 = pneg %p165
      %p257 = pneg %p162
      %p258 = scmp.lt.s32.totalorder %s20, 1
      %s259 = scalar_select %p258, %s20, 1
      %p260 = scmp.lt.s32.totalorder %s21, 0
      %s261 = scalar_select %p260, %s21, 0
      %s262 = sadd.s32 %s261, %s259
      %s263 = smul.addr %s262, 4
      %s264 = scalar_lea.vmem %s4, %s263
      %p265 = scmp.lt.s32.totalorder %s20, 1
      %s266 = scalar_select %p265, %s20, 1
      %p267 = scmp.lt.s32.totalorder %s22, 0
      %s268 = scalar_select %p267, %s22, 0
      %s269 = sadd.s32 %s268, %s266
      %s270 = smul.addr %s269, 4
      %s271 = scalar_lea.vmem %s0, %s270
      %s272 = smul.u32 3, %s22
      %p273 = scmp.lt.s32.totalorder %s272, 2
      %s274 = scalar_select %p273, %s272, 2
      %p275 = scmp.lt.s32.totalorder %s21, 0
      %s276 = scalar_select %p275, %s21, 0
      %s277 = sadd.s32 %s276, %s274
      %s278 = smul.addr %s277, 4
      %s279 = scalar_lea.vmem %s1, %s278
      %s280 = smul.u32 3, %s22
      %p281 = scmp.lt.s32.totalorder %s21, 0
      %s282 = scalar_select %p281, %s21, 0
      %s283 = scalar_lea.vmem %s2, %s282
      %p284 = scmp.lt.s32.totalorder %s21, 0
      %s285 = scalar_select %p284, %s21, 0
      %s286 = smul.addr %s285, 4
      %s287 = scalar_lea.vmem %s3, %s286
      %p288 = scmp.lt.s32.totalorder %s20, 1
      %s289 = scalar_select %p288, %s20, 1
      %p290 = scmp.lt.s32.totalorder %s21, 0
      %s291 = scalar_select %p290, %s21, 0
      %s292 = sadd.s32 %s291, %s289
      %s293 = smul.addr %s292, 4
      %s294 = scalar_lea.vmem %s4, %s293
      %p296 = scmp.eq.s32.totalorder %s22, 0
      // Predicated region
      $region37: #{gpt_mlp_forward.15} parent=35 // pred_check
        %p297 = pneg %p296
      $region38: #{gpt_mlp_forward.15} parent=35 // pred_check_branch
        %299 = sbr.rel (%p297) target = $region40
      $region39: #{gpt_mlp_forward.15} parent=35 // pred_region
        %vm300 = vcmask 261120
        %301 = vst.msk [vmem:[#allocation2] sm:$0xff] %vm300, 0.0
      $region40: #{gpt_mlp_forward.15} parent=35 // pred_fallthru
        _
      %v302 = vld [vmem:[#allocation2] sm:$0xff]
      %v303 = vld [vmem:[%s271] sm:$0xf]
      %v304 = vld [vmem:[%s279] sm:$0xf]
      %v305 = vld [vmem:[%s279 + $0x4] sm:$0xf]
      %v306 = vld [vmem:[%s279 + $0x8] sm:$0xf]
      %v310 = vunpack.c.l.b16 %v304
      %v311 = vunpack.c.l.b16 %v305
      %v312 = vunpack.c.l.b16 %v306
      %v313 = vpack.c.b16 %v311, %v310
      %v314 = vpack.c.b16 %v312, %v312
      %vm316 = vcmask 195584
      %v318 = vsel %vm316, %v303, 0
      %vm320 = vcmask 1043456
      %v322 = vsel %vm320, %v314, 0
      %324 = vmatpush.bf16.msra.mxu0 0
      %325 = vmatpush.bf16.msra.mxu0 0
      %326 = vmatpush.bf16.msra.mxu0 0
      %327 = vmatpush.bf16.msra.mxu0 0
      %328 = vmatpush.bf16.msra.mxu0 0
      %329 = vmatpush.bf16.msra.mxu0 0
      %330 = vmatpush.bf16.msra.mxu0 %v322
      %331 = vmatpush.bf16.msra.mxu0 %v313
      %332 = vmatmul.bf16.gmra.mxu0 %v318
      %v333 = vpop.f32.mrf.mxu0
      %v334 = vadd.f32 0.0, %v333
      %v335 = vpop.f32.mrf.mxu0
      %336 = vdwg.mxu0
      %v337 = vadd.f32 %v302, %v334
      %vm338 = vcmask 261120
      %339 = vst.msk [vmem:[#allocation2] sm:$0xff] %vm338, %v337
      // Predicated region
      $region41: #{gpt_mlp_forward.15} parent=35 // pred_check
        %p340 = pneg %p296
      $region42: #{gpt_mlp_forward.15} parent=35 // pred_check_branch
        %342 = sbr.rel (%p340) target = $region44
      $region43: #{gpt_mlp_forward.15} parent=35 // pred_region
        %v343 = vld [vmem:[#allocation2] sm:$0xff]
        %v344 = vld [vmem:[%s283] sm:$0x1]
        %v346 = vperm.slane %v344, 0
        %v348 = vadd.f32 %v343, %v346
        %v349 = vld [vmem:[%s287] sm:$0xf]
        %v350 = vunpack.c.l.bf16 %v349
        %v351 = vadd.f32 %v348, %v350
        %v352 = vpack.c.bf16 %v351, %v351
        %vm353 = vcmask 257024
        %354 = vst.msk [vmem:[%s294] sm:$0xf] %vm353, %v352
      $region44: #{gpt_mlp_forward.15} parent=35 // pred_fallthru
        _
      %p355 = scmp.lt.s32.totalorder %s20, 1
      %s356 = scalar_select %p355, %s20, 1
      %p357 = scmp.lt.s32.totalorder %s21, 0
      %s358 = scalar_select %p357, %s21, 0
      %s359 = sadd.s32 %s358, %s356
      %s360 = smul.addr %s359, 4
      %s361 = scalar_lea.vmem %s4, %s360
      // Predicated region
      $region45: #{gpt_mlp_forward.15} parent=35 // pred_check
        %p362 = pneg %p162
      $region46: #{gpt_mlp_forward.15} parent=35 // pred_check_branch
        %364 = sbr.rel (%p362) target = $region48
      $region47: #{gpt_mlp_forward.15} parent=35 // pred_region
        _
      $region48: #{gpt_mlp_forward.15} parent=35 // pred_fallthru
        _
    $region36: #{gpt_mlp_forward.15} parent=5 // pred_fallthru
      _
    %p365 = scmp.le.s32.totalorder 2, %s10
    // Predicated region
    $region49: #{gpt_mlp_forward.15} parent=5 // pred_check
      %p366 = pneg %p365
    $region50: #{gpt_mlp_forward.15} parent=5 // pred_check_branch
      %368 = sbr.rel (%p366) target = $region52
    $region51: #{gpt_mlp_forward.15} parent=5 // pred_region
      %s369 = ssub.s32 %s10, 2
      // Predicated region
      $region53: #{gpt_mlp_forward.15} parent=51 // pred_check
        %p370 = pneg %p168
      $region54: #{gpt_mlp_forward.15} parent=51 // pred_check_branch
        %372 = sbr.rel (%p370) target = $region56
      $region55: #{gpt_mlp_forward.15} parent=51 // pred_region
        %p373 = scmp.lt.s32.totalorder %s23, 1
        %s374 = scalar_select %p373, %s23, 1
        %p375 = scmp.lt.s32.totalorder %s24, 0
        %s376 = scalar_select %p375, %s24, 0
        %s377 = sadd.s32 %s376, %s374
        %s378 = smul.addr %s377, 4
        %s379 = scalar_lea.vmem %s4, %s378
      $region56: #{gpt_mlp_forward.15} parent=51 // pred_fallthru
        _
    $region52: #{gpt_mlp_forward.15} parent=5 // pred_fallthru
      _
  $region6: #{gpt_mlp_forward.15} parent=0 // loop_footer
    %s14 = sadd.s32 1, %s10
  $region7: #{gpt_mlp_forward.15} parent=0 // loop_footer_branch
    %9 = sbr.rel target = $region3
  $region8: #{gpt_mlp_forward.15} parent=0 // loop_exit
    _

// kernel: gpt_mlp_forward.17
$region0: #{gpt_mlp_forward.17}
  #allocation0 [shape = 'u32[]', space=smem, size = 0x4, offset = 0x4, fixed_abs, tag = 'smem constant byte address 0x4 - core index']
  #allocation1 [shape = 'u32[72,128]{1,0:T(1,128)}', space=vmem, size = 0x9000, scoped, tag = 'internal scratch']
  #allocation2 [shape = 'f32[8,1]{1,0:T(8,128)}', space=vmem, size = 0x1000, scoped, tag = 'scratch operand']
  #allocation3 [shape = 'f32[8,1]{1,0:T(8,128)}', space=vmem, size = 0x1000, scoped, tag = 'scratch operand']
  #allocation4 [shape = 'f32[8,8]{1,0:T(8,128)}', space=vmem, size = 0x1000, scoped, tag = 'scratch operand']
  %s0 = inlined_call_operand.vmem [shape: bf16[2,4,8,8], index: 0, kind: input, shape index: {}]
  %s1 = inlined_call_operand.vmem [shape: bf16[2,4,8,8], index: 1, kind: input, shape index: {}]
  %s2 = inlined_call_operand.vmem [shape: bf16[2,4,8,8], index: 2, kind: input, shape index: {}]
  %s3 = inlined_call_operand.vmem [shape: bf16[2,4,8,8], index: 3, kind: output, shape index: {}]
  %s4 = sld [smem:[#allocation0]]
  $region57: #{gpt_mlp_forward.17} parent=0
    _
  %s6 = ssub.s32 1, %s4
  %s7 = scalar_select 0, %s6, %s4
  loop: start=0, step=1, limit=10
  $region2: #{gpt_mlp_forward.17} parent=0 // loop_pre_header
    _
  $region3: #{gpt_mlp_forward.17} parent=0 // loop_header
    %s9 = sphi 0, %s13
    %p10 = scmp.ge.s32.totalorder %s9, 10
    %s16 = sphi 0, %s42
    %s17 = sphi 0, %s38
    %s18 = sphi 0, %s34
    %s19 = sphi 0, %s30
    %s20 = sphi 0, %s16
    %s21 = sphi 0, %s17
    %s22 = sphi 0, %s18
    %s23 = sphi 0, %s19
    %s24 = sphi 0, %s20
    %s25 = sphi 0, %s21
    %s26 = sphi 0, %s22
    %s27 = sphi 0, %s23
    %s49 = sphi 0, %s51
    %s52 = sphi 0, %s49
    %s53 = sphi 0, %s52
    %s69 = sphi 0, %s53
    %s79 = sphi 0, %s81
    %s82 = sphi 0, %s79
    %s83 = sphi 0, %s82
    %s99 = sphi 0, %s83
    %s109 = sphi 0, %s111
    %s112 = sphi 0, %s109
    %s113 = sphi 0, %s112
    %s129 = sphi 0, %s113
    %s139 = sphi 0, %s141
    %s142 = sphi 0, %s139
    %s143 = sphi 0, %s142
    %s159 = sphi 0, %s143
  $region4: #{gpt_mlp_forward.17} parent=0 // loop_header_branch
    %12 = sbr.rel (%p10) target = $region8
  $region5: #{gpt_mlp_forward.17} parent=0 // loop_body
    %s14 = ssub.s32 %s9, 1
    %s15 = ssub.s32 %s9, 2
    %s28 = sadd.s32 1, %s19
    %p29 = scmp.ge.s32.totalorder %s28, 1
    %s30 = scalar_select %p29, 0, %s28
    %s31 = sadd.s32 1, %s18
    %s32 = scalar_select %p29, %s31, %s18
    %p33 = scmp.ge.s32.totalorder %s32, 1
    %s34 = scalar_select %p33, 0, %s32
    %s35 = sadd.s32 1, %s17
    %s36 = scalar_select %p33, %s35, %s17
    %p37 = scmp.ge.s32.totalorder %s36, 4
    %s38 = scalar_select %p37, 0, %s36
    %s39 = sadd.s32 1, %s16
    %s40 = scalar_select %p37, %s39, %s16
    %p41 = scmp.ge.s32.totalorder %s40, 2
    %s42 = scalar_select %p41, 0, %s40
    %s43 = ssub.s32 %s16, %s42
    %s44 = ssub.s32 %s17, %s38
    %s45 = sor.u32 %s43, %s44
    %s46 = ssub.s32 %s18, %s34
    %s47 = sor.u32 %s45, %s46
    %p48 = scmp.eq.s32.totalorder %s47, 0
    %s50 = sadd.s32 %s49, 1
    %s51 = scalar_select %p48, %s49, %s50
    %p54 = pneg %p48
    %p55 = scmp.eq.s32.totalorder %s9, 7
    %p56 = por %p54, %p55
    %p57 = scmp.ne.s32.totalorder %s49, %s52
    %p58 = scmp.eq.s32.totalorder %s9, 0
    %p59 = por %p57, %p58
    %p60 = scmp.ne.s32.totalorder %s49, %s52
    %p61 = scmp.eq.s32.totalorder %s14, 7
    %p62 = por %p60, %p61
    %p63 = scmp.ne.s32.totalorder %s52, %s53
    %p64 = scmp.eq.s32.totalorder %s14, 0
    %p65 = por %p63, %p64
    %p66 = scmp.ne.s32.totalorder %s52, %s53
    %p67 = scmp.eq.s32.totalorder %s15, 7
    %p68 = por %p66, %p67
    %p70 = scmp.ne.s32.totalorder %s53, %s69
    %p71 = scmp.eq.s32.totalorder %s15, 0
    %p72 = por %p70, %p71
    %s73 = ssub.s32 %s16, %s42
    %s74 = ssub.s32 %s17, %s38
    %s75 = sor.u32 %s73, %s74
    %s76 = ssub.s32 %s19, %s30
    %s77 = sor.u32 %s75, %s76
    %p78 = scmp.eq.s32.totalorder %s77, 0
    %s80 = sadd.s32 %s79, 1
    %s81 = scalar_select %p78, %s79, %s80
    %p84 = pneg %p78
    %p85 = scmp.eq.s32.totalorder %s9, 7
    %p86 = por %p84, %p85
    %p87 = scmp.ne.s32.totalorder %s79, %s82
    %p88 = scmp.eq.s32.totalorder %s9, 0
    %p89 = por %p87, %p88
    %p90 = scmp.ne.s32.totalorder %s79, %s82
    %p91 = scmp.eq.s32.totalorder %s14, 7
    %p92 = por %p90, %p91
    %p93 = scmp.ne.s32.totalorder %s82, %s83
    %p94 = scmp.eq.s32.totalorder %s14, 0
    %p95 = por %p93, %p94
    %p96 = scmp.ne.s32.totalorder %s82, %s83
    %p97 = scmp.eq.s32.totalorder %s15, 7
    %p98 = por %p96, %p97
    %p100 = scmp.ne.s32.totalorder %s83, %s99
    %p101 = scmp.eq.s32.totalorder %s15, 0
    %p102 = por %p100, %p101
    %s103 = ssub.s32 %s16, %s42
    %s104 = ssub.s32 %s17, %s38
    %s105 = sor.u32 %s103, %s104
    %s106 = ssub.s32 %s19, %s30
    %s107 = sor.u32 %s105, %s106
    %p108 = scmp.eq.s32.totalorder %s107, 0
    %s110 = sadd.s32 %s109, 1
    %s111 = scalar_select %p108, %s109, %s110
    %p114 = pneg %p108
    %p115 = scmp.eq.s32.totalorder %s9, 7
    %p116 = por %p114, %p115
    %p117 = scmp.ne.s32.totalorder %s109, %s112
    %p118 = scmp.eq.s32.totalorder %s9, 0
    %p119 = por %p117, %p118
    %p120 = scmp.ne.s32.totalorder %s109, %s112
    %p121 = scmp.eq.s32.totalorder %s14, 7
    %p122 = por %p120, %p121
    %p123 = scmp.ne.s32.totalorder %s112, %s113
    %p124 = scmp.eq.s32.totalorder %s14, 0
    %p125 = por %p123, %p124
    %p126 = scmp.ne.s32.totalorder %s112, %s113
    %p127 = scmp.eq.s32.totalorder %s15, 7
    %p128 = por %p126, %p127
    %p130 = scmp.ne.s32.totalorder %s113, %s129
    %p131 = scmp.eq.s32.totalorder %s15, 0
    %p132 = por %p130, %p131
    %s133 = ssub.s32 %s16, %s42
    %s134 = ssub.s32 %s17, %s38
    %s135 = sor.u32 %s133, %s134
    %s136 = ssub.s32 %s18, %s34
    %s137 = sor.u32 %s135, %s136
    %p138 = scmp.eq.s32.totalorder %s137, 0
    %s140 = sadd.s32 %s139, 1
    %s141 = scalar_select %p138, %s139, %s140
    %p144 = pneg %p138
    %p145 = scmp.eq.s32.totalorder %s9, 7
    %p146 = por %p144, %p145
    %p147 = scmp.ne.s32.totalorder %s139, %s142
    %p148 = scmp.eq.s32.totalorder %s9, 0
    %p149 = por %p147, %p148
    %p150 = scmp.ne.s32.totalorder %s139, %s142
    %p151 = scmp.eq.s32.totalorder %s14, 7
    %p152 = por %p150, %p151
    %p153 = scmp.ne.s32.totalorder %s142, %s143
    %p154 = scmp.eq.s32.totalorder %s14, 0
    %p155 = por %p153, %p154
    %p156 = scmp.ne.s32.totalorder %s142, %s143
    %p157 = scmp.eq.s32.totalorder %s15, 7
    %p158 = por %p156, %p157
    %p160 = scmp.ne.s32.totalorder %s143, %s159
    %p161 = scmp.eq.s32.totalorder %s15, 0
    %p162 = por %p160, %p161
    %p163 = scmp.le.s32.totalorder 1, %s9
    %p164 = scmp.lt.s32.totalorder %s9, 9
    %p165 = pnand %p163, %p164
    %p166 = pneg %p165
    // Predicated region
    $region9: #{gpt_mlp_forward.17} parent=5 // pred_check
      _
    $region10: #{gpt_mlp_forward.17} parent=5 // pred_check_branch
      %168 = sbr.rel (%p165) target = $region12
    $region11: #{gpt_mlp_forward.17} parent=5 // pred_region
      %s169 = ssub.s32 %s9, 1
    $region12: #{gpt_mlp_forward.17} parent=5 // pred_fallthru
      _
    %p170 = scmp.lt.s32.totalorder %s9, 8
    // Predicated region
    $region13: #{gpt_mlp_forward.17} parent=5 // pred_check
      %p171 = pneg %p170
    $region14: #{gpt_mlp_forward.17} parent=5 // pred_check_branch
      %173 = sbr.rel (%p171) target = $region16
    $region15: #{gpt_mlp_forward.17} parent=5 // pred_region
      // Predicated region
      $region17: #{gpt_mlp_forward.17} parent=15 // pred_check
        %p174 = pneg %p59
      $region18: #{gpt_mlp_forward.17} parent=15 // pred_check_branch
        %176 = sbr.rel (%p174) target = $region20
      $region19: #{gpt_mlp_forward.17} parent=15 // pred_region
        %p177 = scmp.lt.s32.totalorder %s16, 1
        %s178 = scalar_select %p177, %s16, 1
        %p179 = scmp.lt.s32.totalorder %s17, 3
        %s180 = scalar_select %p179, %s17, 3
        %p181 = scmp.lt.s32.totalorder %s18, 0
        %s182 = scalar_select %p181, %s18, 0
        %s183 = sadd.s32 %s182, %s180
        %s184 = smul.addr %s178, 4
        %s185 = sadd.s32 %s183, %s184
        %s186 = smul.addr %s185, 4
        %s187 = scalar_lea.vmem %s0, %s186
      $region20: #{gpt_mlp_forward.17} parent=15 // pred_fallthru
        _
      // Predicated region
      $region21: #{gpt_mlp_forward.17} parent=15 // pred_check
        %p188 = pneg %p89
      $region22: #{gpt_mlp_forward.17} parent=15 // pred_check_branch
        %190 = sbr.rel (%p188) target = $region24
      $region23: #{gpt_mlp_forward.17} parent=15 // pred_region
        %p191 = scmp.lt.s32.totalorder %s16, 1
        %s192 = scalar_select %p191, %s16, 1
        %p193 = scmp.lt.s32.totalorder %s17, 3
        %s194 = scalar_select %p193, %s17, 3
        %p195 = scmp.lt.s32.totalorder %s19, 0
        %s196 = scalar_select %p195, %s19, 0
        %s197 = sadd.s32 %s196, %s194
        %s198 = smul.addr %s192, 4
        %s199 = sadd.s32 %s197, %s198
        %s200 = smul.addr %s199, 4
        %s201 = scalar_lea.vmem %s1, %s200
      $region24: #{gpt_mlp_forward.17} parent=15 // pred_fallthru
        _
      // Predicated region
      $region25: #{gpt_mlp_forward.17} parent=15 // pred_check
        %p202 = pneg %p119
      $region26: #{gpt_mlp_forward.17} parent=15 // pred_check_branch
        %204 = sbr.rel (%p202) target = $region28
      $region27: #{gpt_mlp_forward.17} parent=15 // pred_region
        %p205 = scmp.lt.s32.totalorder %s16, 1
        %s206 = scalar_select %p205, %s16, 1
        %p207 = scmp.lt.s32.totalorder %s17, 3
        %s208 = scalar_select %p207, %s17, 3
        %p209 = scmp.lt.s32.totalorder %s19, 0
        %s210 = scalar_select %p209, %s19, 0
        %s211 = sadd.s32 %s210, %s208
        %s212 = smul.addr %s206, 4
        %s213 = sadd.s32 %s211, %s212
        %s214 = smul.addr %s213, 4
        %s215 = scalar_lea.vmem %s2, %s214
      $region28: #{gpt_mlp_forward.17} parent=15 // pred_fallthru
        _
    $region16: #{gpt_mlp_forward.17} parent=5 // pred_fallthru
      _
    %p216 = scmp.le.s32.totalorder 1, %s9
    %p217 = scmp.lt.s32.totalorder %s9, 9
    %p218 = pnand %p216, %p217
    %p219 = pneg %p218
    // Predicated region
    $region29: #{gpt_mlp_forward.17} parent=5 // pred_check
      _
    $region30: #{gpt_mlp_forward.17} parent=5 // pred_check_branch
      %221 = sbr.rel (%p218) target = $region32
    $region31: #{gpt_mlp_forward.17} parent=5 // pred_region
      %s222 = ssub.s32 %s9, 1
      %p223 = scmp.lt.s32.totalorder %s20, 1
      %s224 = scalar_select %p223, %s20, 1
      %p225 = scmp.lt.s32.totalorder %s21, 3
      %s226 = scalar_select %p225, %s21, 3
      %p227 = scmp.lt.s32.totalorder %s22, 0
      %s228 = scalar_select %p227, %s22, 0
      %s229 = sadd.s32 %s228, %s226
      %s230 = smul.addr %s224, 4
      %s231 = sadd.s32 %s229, %s230
      %s232 = smul.addr %s231, 4
      %s233 = scalar_lea.vmem %s0, %s232
      %p234 = pneg %p65
      %p235 = pneg %p62
      %p236 = scmp.lt.s32.totalorder %s20, 1
      %s237 = scalar_select %p236, %s20, 1
      %p238 = scmp.lt.s32.totalorder %s21, 3
      %s239 = scalar_select %p238, %s21, 3
      %p240 = scmp.lt.s32.totalorder %s23, 0
      %s241 = scalar_select %p240, %s23, 0
      %s242 = sadd.s32 %s241, %s239
      %s243 = smul.addr %s237, 4
      %s244 = sadd.s32 %s242, %s243
      %s245 = smul.addr %s244, 4
      %s246 = scalar_lea.vmem %s1, %s245
      %p247 = pneg %p95
      %p248 = pneg %p92
      %p249 = scmp.lt.s32.totalorder %s20, 1
      %s250 = scalar_select %p249, %s20, 1
      %p251 = scmp.lt.s32.totalorder %s21, 3
      %s252 = scalar_select %p251, %s21, 3
      %p253 = scmp.lt.s32.totalorder %s23, 0
      %s254 = scalar_select %p253, %s23, 0
      %s255 = sadd.s32 %s254, %s252
      %s256 = smul.addr %s250, 4
      %s257 = sadd.s32 %s255, %s256
      %s258 = smul.addr %s257, 4
      %s259 = scalar_lea.vmem %s2, %s258
      %p260 = pneg %p125
      %p261 = pneg %p122
      %p262 = pneg %p155
      %p263 = pneg %p152
      %p264 = scmp.lt.s32.totalorder %s20, 1
      %s265 = scalar_select %p264, %s20, 1
      %p266 = scmp.lt.s32.totalorder %s21, 3
      %s267 = scalar_select %p266, %s21, 3
      %p268 = scmp.lt.s32.totalorder %s22, 0
      %s269 = scalar_select %p268, %s22, 0
      %s270 = sadd.s32 %s269, %s267
      %s271 = smul.addr %s265, 4
      %s272 = sadd.s32 %s270, %s271
      %s273 = smul.addr %s272, 4
      %s274 = scalar_lea.vmem %s3, %s273
      %p275 = scmp.lt.s32.totalorder %s20, 1
      %s276 = scalar_select %p275, %s20, 1
      %p277 = scmp.lt.s32.totalorder %s21, 3
      %s278 = scalar_select %p277, %s21, 3
      %p279 = scmp.lt.s32.totalorder %s22, 0
      %s280 = scalar_select %p279, %s22, 0
      %s281 = sadd.s32 %s280, %s278
      %s282 = smul.addr %s276, 4
      %s283 = sadd.s32 %s281, %s282
      %s284 = smul.addr %s283, 4
      %s285 = scalar_lea.vmem %s0, %s284
      %p286 = scmp.lt.s32.totalorder %s20, 1
      %s287 = scalar_select %p286, %s20, 1
      %p288 = scmp.lt.s32.totalorder %s21, 3
      %s289 = scalar_select %p288, %s21, 3
      %p290 = scmp.lt.s32.totalorder %s23, 0
      %s291 = scalar_select %p290, %s23, 0
      %s292 = sadd.s32 %s291, %s289
      %s293 = smul.addr %s287, 4
      %s294 = sadd.s32 %s292, %s293
      %s295 = smul.addr %s294, 4
      %s296 = scalar_lea.vmem %s1, %s295
      %p297 = scmp.lt.s32.totalorder %s20, 1
      %s298 = scalar_select %p297, %s20, 1
      %p299 = scmp.lt.s32.totalorder %s21, 3
      %s300 = scalar_select %p299, %s21, 3
      %p301 = scmp.lt.s32.totalorder %s23, 0
      %s302 = scalar_select %p301, %s23, 0
      %s303 = sadd.s32 %s302, %s300
      %s304 = smul.addr %s298, 4
      %s305 = sadd.s32 %s303, %s304
      %s306 = smul.addr %s305, 4
      %s307 = scalar_lea.vmem %s2, %s306
      %p308 = scmp.lt.s32.totalorder %s20, 1
      %s309 = scalar_select %p308, %s20, 1
      %p310 = scmp.lt.s32.totalorder %s21, 3
      %s311 = scalar_select %p310, %s21, 3
      %p312 = scmp.lt.s32.totalorder %s22, 0
      %s313 = scalar_select %p312, %s22, 0
      %s314 = sadd.s32 %s313, %s311
      %s315 = smul.addr %s309, 4
      %s316 = sadd.s32 %s314, %s315
      %s317 = smul.addr %s316, 4
      %s318 = scalar_lea.vmem %s3, %s317
      %p320 = scmp.eq.s32.totalorder %s23, 0
      // Predicated region
      $region33: #{gpt_mlp_forward.17} parent=31 // pred_check
        %p321 = pneg %p320
      $region34: #{gpt_mlp_forward.17} parent=31 // pred_check_branch
        %323 = sbr.rel (%p321) target = $region36
      $region35: #{gpt_mlp_forward.17} parent=31 // pred_region
        %vm324 = vcmask 7168
        %325 = vst.msk [vmem:[#allocation2] sm:$0xff] %vm324, -inf
        %326 = vst.msk [vmem:[#allocation3] sm:$0xff] %vm324, 0.0
        %vm327 = vcmask 64512
        %328 = vst.msk [vmem:[#allocation4] sm:$0xff] %vm327, 0.0
      $region36: #{gpt_mlp_forward.17} parent=31 // pred_fallthru
        _
      %s329 = smul.u32 %s23, 8
      %s330 = smul.u32 %s22, 8
      %s331 = sadd.s32 %s330, 7
      %p332 = scmp.le.s32.totalorder %s329, %s331
      // Predicated region
      $region37: #{gpt_mlp_forward.17} parent=31 // pred_check
        %p333 = pneg %p332
      $region38: #{gpt_mlp_forward.17} parent=31 // pred_check_branch
        %335 = sbr.rel (%p333) target = $region40
      $region39: #{gpt_mlp_forward.17} parent=31 // pred_region
        %v336 = vld [vmem:[%s285] sm:$0xf]
        %v337 = vunpack.c.l.bf16 %v336
        %v338 = vmul.f32 %v337, 0.35351563
        %v339 = vpack.c.bf16 %v338, %v338
        %v340 = vld [vmem:[%s296] sm:$0xf]
        %v341 = vld [vmem:[%s307] sm:$0xf]
        %vm342 = vcmask 64512
        %v344 = vsel %vm342, %v339, 0
        %v347 = vsel %vm342, %v340, 0
        %349 = vmatpush.bf16.xpose.msra.mxu0 0
        %350 = vmatpush.bf16.xpose.msra.mxu0 0
        %351 = vmatpush.bf16.xpose.msra.mxu0 0
        %352 = vmatpush.bf16.xpose.msra.mxu0 0
        %353 = vmatpush.bf16.xpose.msra.mxu0 0
        %354 = vmatpush.bf16.xpose.msra.mxu0 0
        %355 = vmatpush.bf16.xpose.msra.mxu0 0
        %356 = vmatpush.bf16.xpose.msra.mxu0 %v347
        %357 = vmatmul.bf16.gmra.mxu0 %v344
        %v358 = vpop.f32.mrf.mxu0
        %v359 = vadd.f32 0.0, %v358
        %v360 = vpop.f32.mrf.mxu0
        %361 = vdwg.mxu0
        %v362 = vlaneseq
        %v363 = vshrl.u32 %v362, 7
        %v364 = vstv %s330
        %v365 = vadd.s32 %v364, %v363
        %v366 = vlaneseq
        %v367 = vand.u32 %v366, 127
        %v368 = vstv %s329
        %v369 = vadd.s32 %v368, %v367
        %vm370 = vcmp.le.s32.totalorder %v369, %v365
        %v371 = vsel %vm370, %v359, -1e+30
        %v372 = vld [vmem:[#allocation2] sm:$0xff]
        %v373 = vsel %vm342, %v371, -inf
        %374 = vmax.xlane.f32.xlu0 %v373
        %v375 = vpop.xlane.xlu0 %374
        %v376 = vmax.f32 %v372, %v375
        %v377 = vsub.f32 %v372, %v376
        %v378 = vmul.f32 %v377, 1.442695
        %v379 = vpow.pop %v378
        %381 = vset.pattern.permute.xlu0 0
        %382 = vperm.xlu0 %381, %v376
        %v383 = vpop.permute.xlu0 %382
        %v385 = vsub.f32 %v371, %v383
        %v386 = vmul.f32 %v385, 1.442695
        %v387 = vpow.pop %v386
        %v388 = vld [vmem:[#allocation3] sm:$0xff]
        %v389 = vmul.f32 %v379, %v388
        %v390 = vsel %vm342, %v387, 0.0
        %391 = vadd.xlane.f32.xlu0 %v390
        %v392 = vpop.xlane.xlu0 %391
        %v393 = vadd.f32 %v389, %v392
        %vm394 = vcmask 7168
        %395 = vst.msk [vmem:[#allocation3] sm:$0xff] %vm394, %v393
        %v396 = vld [vmem:[#allocation4] sm:$0xff]
        %398 = vset.pattern.permute.xlu0 0
        %399 = vperm.xlu0 %398, %v379
        %v400 = vpop.permute.xlu0 %399
        %v402 = vmul.f32 %v400, %v396
        %v403 = vpack.c.bf16 %v387, %v387
        %v405 = vsel %vm342, %v403, 0
        %vm407 = vcmask 1043456
        %v409 = vsel %vm407, %v341, 0
        %411 = vmatpush.bf16.msra.mxu0 0
        %412 = vmatpush.bf16.msra.mxu0 0
        %413 = vmatpush.bf16.msra.mxu0 0
        %414 = vmatpush.bf16.msra.mxu0 0
        %415 = vmatpush.bf16.msra.mxu0 0
        %416 = vmatpush.bf16.msra.mxu0 0
        %417 = vmatpush.bf16.msra.mxu0 0
        %418 = vmatpush.bf16.msra.mxu0 %v409
        %419 = vmatmul.bf16.gmra.mxu0 %v405
        %v420 = vpop.f32.mrf.mxu0
        %v421 = vadd.f32 0.0, %v420
        %v422 = vpop.f32.mrf.mxu0
        %423 = vdwg.mxu0
        %v424 = vadd.f32 %v402, %v421
        %425 = vst.msk [vmem:[#allocation4] sm:$0xff] %vm342, %v424
        %426 = vst.msk [vmem:[#allocation2] sm:$0xff] %vm394, %v376
      $region40: #{gpt_mlp_forward.17} parent=31 // pred_fallthru
        _
      // Predicated region
      $region41: #{gpt_mlp_forward.17} parent=31 // pred_check
        %p427 = pneg %p320
      $region42: #{gpt_mlp_forward.17} parent=31 // pred_check_branch
        %429 = sbr.rel (%p427) target = $region44
      $region43: #{gpt_mlp_forward.17} parent=31 // pred_region
        %v430 = vld [vmem:[#allocation4] sm:$0xff]
        %v431 = vld [vmem:[#allocation3] sm:$0xff]
        %v432 = vrcp.pop %v431
        %434 = vset.pattern.permute.xlu0 0
        %435 = vperm.xlu0 %434, %v432
        %v436 = vpop.permute.xlu0 %435
        %v438 = vmul.f32 %v430, %v436
        %v439 = vpack.c.bf16 %v438, %v438
        %vm440 = vcmask 60416
        %441 = vst.msk [vmem:[%s318] sm:$0xf] %vm440, %v439
      $region44: #{gpt_mlp_forward.17} parent=31 // pred_fallthru
        _
      %p442 = scmp.lt.s32.totalorder %s20, 1
      %s443 = scalar_select %p442, %s20, 1
      %p444 = scmp.lt.s32.totalorder %s21, 3
      %s445 = scalar_select %p444, %s21, 3
      %p446 = scmp.lt.s32.totalorder %s22, 0
      %s447 = scalar_select %p446, %s22, 0
      %s448 = sadd.s32 %s447, %s445
      %s449 = smul.addr %s443, 4
      %s450 = sadd.s32 %s448, %s449
      %s451 = smul.addr %s450, 4
      %s452 = scalar_lea.vmem %s3, %s451
      // Predicated region
      $region45: #{gpt_mlp_forward.17} parent=31 // pred_check
        %p453 = pneg %p152
      $region46: #{gpt_mlp_forward.17} parent=31 // pred_check_branch
        %455 = sbr.rel (%p453) target = $region48
      $region47: #{gpt_mlp_forward.17} parent=31 // pred_region
        _
      $region48: #{gpt_mlp_forward.17} parent=31 // pred_fallthru
        _
    $region32: #{gpt_mlp_forward.17} parent=5 // pred_fallthru
      _
    %p456 = scmp.le.s32.totalorder 2, %s9
    // Predicated region
    $region49: #{gpt_mlp_forward.17} parent=5 // pred_check
      %p457 = pneg %p456
    $region50: #{gpt_mlp_forward.17} parent=5 // pred_check_branch
      %459 = sbr.rel (%p457) target = $region52
    $region51: #{gpt_mlp_forward.17} parent=5 // pred_region
      %s460 = ssub.s32 %s9, 2
      // Predicated region
      $region53: #{gpt_mlp_forward.17} parent=51 // pred_check
        %p461 = pneg %p158
      $region54: #{gpt_mlp_forward.17} parent=51 // pred_check_branch
        %463 = sbr.rel (%p461) target = $region56
      $region55: #{gpt_mlp_forward.17} parent=51 // pred_region
        %p464 = scmp.lt.s32.totalorder %s24, 1
        %s465 = scalar_select %p464, %s24, 1
        %p466 = scmp.lt.s32.totalorder %s25, 3
        %s467 = scalar_select %p466, %s25, 3
        %p468 = scmp.lt.s32.totalorder %s26, 0
        %s469 = scalar_select %p468, %s26, 0
        %s470 = sadd.s32 %s469, %s467
        %s471 = smul.addr %s465, 4
        %s472 = sadd.s32 %s470, %s471
        %s473 = smul.addr %s472, 4
        %s474 = scalar_lea.vmem %s3, %s473
      $region56: #{gpt_mlp_forward.17} parent=51 // pred_fallthru
        _
    $region52: #{gpt_mlp_forward.17} parent=5 // pred_fallthru
      _
  $region6: #{gpt_mlp_forward.17} parent=0 // loop_footer
    %s13 = sadd.s32 1, %s9
  $region7: #{gpt_mlp_forward.17} parent=0 // loop_footer_branch
    %8 = sbr.rel target = $region3
  $region8: #{gpt_mlp_forward.17} parent=0 // loop_exit
    _

// kernel: gpt_mlp_forward.18
$region0: #{gpt_mlp_forward.18}
  #allocation0 [shape = 'u32[]', space=smem, size = 0x4, offset = 0x4, fixed_abs, tag = 'smem constant byte address 0x4 - core index']
  #allocation1 [shape = 'u32[72,128]{1,0:T(1,128)}', space=vmem, size = 0x9000, scoped, tag = 'internal scratch']
  #allocation2 [shape = 'f32[16,32]{1,0:T(8,128)}', space=vmem, size = 0x2000, scoped, tag = 'scratch operand']
  %s0 = inlined_call_operand.vmem [shape: bf16[16,32], index: 0, kind: input, shape index: {}]
  %s1 = inlined_call_operand.vmem [shape: bf16[32,32], index: 1, kind: input, shape index: {}]
  %s2 = inlined_call_operand.vmem [shape: f32[1,32], index: 2, kind: input, shape index: {}]
  %s3 = inlined_call_operand.vmem [shape: bf16[16,32], index: 3, kind: input, shape index: {}]
  %s4 = inlined_call_operand.vmem [shape: bf16[16,32], index: 4, kind: output, shape index: {}]
  %s5 = sld [smem:[#allocation0]]
  $region34: #{gpt_mlp_forward.18} parent=0
    _
  %s7 = ssub.s32 1, %s5
  %s8 = scalar_select 0, %s7, %s5
  // Predicated region
  $region2: #{gpt_mlp_forward.18} parent=0 // pred_check
    _
  $region3: #{gpt_mlp_forward.18} parent=0 // pred_check_branch
    %10 = sbr.rel (0) target = $region5
  $region4: #{gpt_mlp_forward.18} parent=0 // pred_region
    _
  $region5: #{gpt_mlp_forward.18} parent=0 // pred_fallthru
    _
  // Predicated region
  $region6: #{gpt_mlp_forward.18} parent=0 // pred_check
    _
  $region7: #{gpt_mlp_forward.18} parent=0 // pred_check_branch
    %12 = sbr.rel (0) target = $region9
  $region8: #{gpt_mlp_forward.18} parent=0 // pred_region
    _
  $region9: #{gpt_mlp_forward.18} parent=0 // pred_fallthru
    _
  // Predicated region
  $region10: #{gpt_mlp_forward.18} parent=0 // pred_check
    _
  $region11: #{gpt_mlp_forward.18} parent=0 // pred_check_branch
    %14 = sbr.rel (0) target = $region13
  $region12: #{gpt_mlp_forward.18} parent=0 // pred_region
    _
  $region13: #{gpt_mlp_forward.18} parent=0 // pred_fallthru
    _
  // Predicated region
  $region14: #{gpt_mlp_forward.18} parent=0 // pred_check
    _
  $region15: #{gpt_mlp_forward.18} parent=0 // pred_check_branch
    %16 = sbr.rel (0) target = $region17
  $region16: #{gpt_mlp_forward.18} parent=0 // pred_region
    _
  $region17: #{gpt_mlp_forward.18} parent=0 // pred_fallthru
    _
  %p18 = scmp.eq.s32.totalorder 0, 0
  // Predicated region
  $region18: #{gpt_mlp_forward.18} parent=0 // pred_check
    %p19 = pneg %p18
  $region19: #{gpt_mlp_forward.18} parent=0 // pred_check_branch
    %21 = sbr.rel (%p19) target = $region21
  $region20: #{gpt_mlp_forward.18} parent=0 // pred_region
    %vm22 = vcmask 261120
    %23 = vst.msk [vmem:[#allocation2] sm:$0xff] %vm22, 0.0
    %24 = vst.msk [vmem:[#allocation2 + $0x8] sm:$0xff] %vm22, 0.0
  $region21: #{gpt_mlp_forward.18} parent=0 // pred_fallthru
    _
  %v25 = vld [vmem:[#allocation2] sm:$0xff]
  %v26 = vld [vmem:[#allocation2 + $0x8] sm:$0xff]
  %v27 = vld [vmem:[%s0] sm:$0xf]
  %v28 = vld [vmem:[%s0 + $0x4] sm:$0xf]
  %v29 = vld [vmem:[%s1] sm:$0xf]
  %v30 = vld [vmem:[%s1 + $0x4] sm:$0xf]
  %v31 = vld [vmem:[%s1 + $0x8] sm:$0xf]
  %v32 = vld [vmem:[%s1 + $0xc] sm:$0xf]
  %v35 = vunpack.c.l.b16 %v27
  %v36 = vunpack.c.l.b16 %v28
  %v37 = vpack.c.b16 %v36, %v35
  %v42 = vunpack.c.l.b16 %v29
  %v43 = vunpack.c.l.b16 %v30
  %v44 = vunpack.c.l.b16 %v31
  %v45 = vunpack.c.l.b16 %v32
  %v46 = vpack.c.b16 %v43, %v42
  %v47 = vpack.c.b16 %v45, %v44
  %vm50 = vcmask 261120
  %v52 = vsel %vm50, %v37, 0
  %54 = vmatpush.bf16.msra.mxu0 0
  %55 = vmatpush.bf16.msra.mxu0 0
  %56 = vmatpush.bf16.msra.mxu0 0
  %57 = vmatpush.bf16.msra.mxu0 0
  %58 = vmatpush.bf16.msra.mxu0 0
  %59 = vmatpush.bf16.msra.mxu0 0
  %60 = vmatpush.bf16.msra.mxu0 %v47
  %61 = vmatpush.bf16.msra.mxu0 %v46
  %62 = vmatmul.bf16.gmra.mxu0 %v52
  %v63 = vpop.f32.mrf.mxu0
  %v64 = vadd.f32 0.0, %v63
  %v65 = vpop.f32.mrf.mxu0
  %v66 = vadd.f32 0.0, %v65
  %67 = vdwg.mxu0
  %v68 = vadd.f32 %v25, %v64
  %v69 = vadd.f32 %v26, %v66
  %70 = vst.msk [vmem:[#allocation2] sm:$0xff] %vm50, %v68
  %71 = vst.msk [vmem:[#allocation2 + $0x8] sm:$0xff] %vm50, %v69
  // Predicated region
  $region22: #{gpt_mlp_forward.18} parent=0 // pred_check
    %p72 = pneg %p18
  $region23: #{gpt_mlp_forward.18} parent=0 // pred_check_branch
    %74 = sbr.rel (%p72) target = $region25
  $region24: #{gpt_mlp_forward.18} parent=0 // pred_region
    %v75 = vld [vmem:[#allocation2] sm:$0xff]
    %v76 = vld [vmem:[#allocation2 + $0x8] sm:$0xff]
    %v77 = vld [vmem:[%s2] sm:$0x1]
    %v79 = vperm.slane %v77, 0
    %v81 = vadd.f32 %v75, %v79
    %v82 = vadd.f32 %v76, %v79
    %v83 = vld [vmem:[%s3] sm:$0xf]
    %v84 = vld [vmem:[%s3 + $0x4] sm:$0xf]
    %v85 = vunpack.c.l.bf16 %v83
    %v86 = vunpack.c.l.bf16 %v84
    %v87 = vadd.f32 %v81, %v85
    %v88 = vadd.f32 %v82, %v86
    %v89 = vpack.c.bf16 %v87, %v87
    %v90 = vpack.c.bf16 %v88, %v88
    %vm91 = vcmask 257024
    %92 = vst.msk [vmem:[%s4] sm:$0xf] %vm91, %v89
    %93 = vst.msk [vmem:[%s4 + $0x4] sm:$0xf] %vm91, %v90
  $region25: #{gpt_mlp_forward.18} parent=0 // pred_fallthru
    _
  // Predicated region
  $region26: #{gpt_mlp_forward.18} parent=0 // pred_check
    _
  $region27: #{gpt_mlp_forward.18} parent=0 // pred_check_branch
    %95 = sbr.rel (0) target = $region29
  $region28: #{gpt_mlp_forward.18} parent=0 // pred_region
    _
  $region29: #{gpt_mlp_forward.18} parent=0 // pred_fallthru
    _
  // Predicated region
  $region30: #{gpt_mlp_forward.18} parent=0 // pred_check
    _
  $region31: #{gpt_mlp_forward.18} parent=0 // pred_check_branch
    %97 = sbr.rel (0) target = $region33
  $region32: #{gpt_mlp_forward.18} parent=0 // pred_region
    _
  $region33: #{gpt_mlp_forward.18} parent=0 // pred_fallthru
    _

// kernel: gpt_mlp_forward.19
$region0: #{gpt_mlp_forward.19}
  #allocation0 [shape = 'u32[]', space=smem, size = 0x4, offset = 0x4, fixed_abs, tag = 'smem constant byte address 0x4 - core index']
  #allocation1 [shape = 'u32[72,128]{1,0:T(1,128)}', space=vmem, size = 0x9000, scoped, tag = 'internal scratch']
  #allocation2 [shape = 'bf16[16,32]{1,0:T(8,128)(2,1)}', space=vmem, size = 0x1000, scoped, tag = 'scratch operand']
  %s0 = inlined_call_operand.vmem [shape: bf16[16,32], index: 0, kind: input, shape index: {}]
  %s1 = inlined_call_operand.vmem [shape: f32[1,32], index: 1, kind: input, shape index: {}]
  %s2 = inlined_call_operand.vmem [shape: f32[1,32], index: 2, kind: input, shape index: {}]
  %s3 = inlined_call_operand.vmem [shape: bf16[32,128], index: 3, kind: input, shape index: {}]
  %s4 = inlined_call_operand.vmem [shape: f32[1,128], index: 4, kind: input, shape index: {}]
  %s5 = inlined_call_operand.vmem [shape: bf16[16,128], index: 5, kind: output, shape index: {}]
  %s6 = sld [smem:[#allocation0]]
  $region34: #{gpt_mlp_forward.19} parent=0
    _
  %s8 = ssub.s32 1, %s6
  %s9 = scalar_select 0, %s8, %s6
  // Predicated region
  $region2: #{gpt_mlp_forward.19} parent=0 // pred_check
    _
  $region3: #{gpt_mlp_forward.19} parent=0 // pred_check_branch
    %11 = sbr.rel (0) target = $region5
  $region4: #{gpt_mlp_forward.19} parent=0 // pred_region
    _
  $region5: #{gpt_mlp_forward.19} parent=0 // pred_fallthru
    _
  // Predicated region
  $region6: #{gpt_mlp_forward.19} parent=0 // pred_check
    _
  $region7: #{gpt_mlp_forward.19} parent=0 // pred_check_branch
    %13 = sbr.rel (0) target = $region9
  $region8: #{gpt_mlp_forward.19} parent=0 // pred_region
    _
  $region9: #{gpt_mlp_forward.19} parent=0 // pred_fallthru
    _
  // Predicated region
  $region10: #{gpt_mlp_forward.19} parent=0 // pred_check
    _
  $region11: #{gpt_mlp_forward.19} parent=0 // pred_check_branch
    %15 = sbr.rel (0) target = $region13
  $region12: #{gpt_mlp_forward.19} parent=0 // pred_region
    _
  $region13: #{gpt_mlp_forward.19} parent=0 // pred_fallthru
    _
  // Predicated region
  $region14: #{gpt_mlp_forward.19} parent=0 // pred_check
    _
  $region15: #{gpt_mlp_forward.19} parent=0 // pred_check_branch
    %17 = sbr.rel (0) target = $region17
  $region16: #{gpt_mlp_forward.19} parent=0 // pred_region
    _
  $region17: #{gpt_mlp_forward.19} parent=0 // pred_fallthru
    _
  // Predicated region
  $region18: #{gpt_mlp_forward.19} parent=0 // pred_check
    _
  $region19: #{gpt_mlp_forward.19} parent=0 // pred_check_branch
    %19 = sbr.rel (0) target = $region21
  $region20: #{gpt_mlp_forward.19} parent=0 // pred_region
    _
  $region21: #{gpt_mlp_forward.19} parent=0 // pred_fallthru
    _
  %p21 = scmp.eq.s32.totalorder 0, 0
  // Predicated region
  $region22: #{gpt_mlp_forward.19} parent=0 // pred_check
    %p22 = pneg %p21
  $region23: #{gpt_mlp_forward.19} parent=0 // pred_check_branch
    %24 = sbr.rel (%p22) target = $region25
  $region24: #{gpt_mlp_forward.19} parent=0 // pred_region
    %v25 = vld [vmem:[%s0] sm:$0xf]
    %v26 = vld [vmem:[%s0 + $0x4] sm:$0xf]
    %v27 = vunpack.c.l.bf16 %v25
    %v28 = vunpack.c.l.bf16 %v26
    %vm29 = vcmask 261120
    %v30 = vsel %vm29, %v27, 0.0
    %31 = vadd.xlane.f32.xlu0 %v30
    %v32 = vpop.xlane.xlu0 %31
    %v33 = vsel %vm29, %v28, 0.0
    %34 = vadd.xlane.f32.xlu0 %v33
    %v35 = vpop.xlane.xlu0 %34
    %v36 = vrcp.pop 32.0
    %v37 = vmul.f32 32.0, %v36
    %v38 = vsub.f32 1.0, %v37
    %v39 = vmul.f32 %v36, %v38
    %v40 = vadd.f32 %v36, %v39
    %vm41 = vweird.f32 %v36
    %v42 = vsel %vm41, %v36, %v40
    %v43 = vmul.f32 %v32, %v42
    %v44 = vmul.f32 %v35, %v42
    %v45 = vsub.f32 %v27, %v43
    %v46 = vsub.f32 %v28, %v44
    %v47 = vmul.f32 %v45, %v45
    %v48 = vmul.f32 %v46, %v46
    %v49 = vsel %vm29, %v47, 0.0
    %50 = vadd.xlane.f32.xlu0 %v49
    %v51 = vpop.xlane.xlu0 %50
    %v52 = vsel %vm29, %v48, 0.0
    %53 = vadd.xlane.f32.xlu0 %v52
    %v54 = vpop.xlane.xlu0 %53
    %v55 = vmul.f32 %v51, %v42
    %v56 = vmul.f32 %v54, %v42
    %v57 = vadd.f32 %v55, 1e-05
    %v58 = vadd.f32 %v56, 1e-05
    %v59 = vrsqrt.pop %v57
    %v60 = vmul.f32 %v59, %v57
    %v61 = vmul.f32 %v60, %v59
    %v62 = vmul.f32 0.5, %v61
    %v63 = vsub.f32 1.5, %v62
    %v64 = vmul.f32 %v59, %v63
    %vm65 = vweird.f32 %v57
    %vm66 = vweird.f32 %v59
    %vm67 = vmor %vm65, %vm66
    %v68 = vsel %vm67, %v59, %v64
    %v69 = vrsqrt.pop %v58
    %v70 = vmul.f32 %v69, %v58
    %v71 = vmul.f32 %v70, %v69
    %v72 = vmul.f32 0.5, %v71
    %v73 = vsub.f32 1.5, %v72
    %v74 = vmul.f32 %v69, %v73
    %vm75 = vweird.f32 %v58
    %vm76 = vweird.f32 %v69
    %vm77 = vmor %vm75, %vm76
    %v78 = vsel %vm77, %v69, %v74
    %v79 = vmul.f32 %v45, %v68
    %v80 = vmul.f32 %v46, %v78
    %v81 = vld [vmem:[%s1] sm:$0x1]
    %v83 = vperm.slane %v81, 0
    %v85 = vmul.f32 %v79, %v83
    %v86 = vmul.f32 %v80, %v83
    %v87 = vld [vmem:[%s2] sm:$0x1]
    %v89 = vperm.slane %v87, 0
    %v91 = vadd.f32 %v85, %v89
    %v92 = vadd.f32 %v86, %v89
    %v93 = vpack.c.bf16 %v91, %v91
    %v94 = vpack.c.bf16 %v92, %v92
    %vm95 = vcmask 257024
    %96 = vst.msk [vmem:[#allocation2] sm:$0xf] %vm95, %v93
    %97 = vst.msk [vmem:[#allocation2 + $0x4] sm:$0xf] %vm95, %v94
  $region25: #{gpt_mlp_forward.19} parent=0 // pred_fallthru
    _
  %v98 = vld [vmem:[#allocation2] sm:$0xf]
  %v99 = vld [vmem:[#allocation2 + $0x4] sm:$0xf]
  %v100 = vld [vmem:[%s3] sm:$0xf]
  %v101 = vld [vmem:[%s3 + $0x4] sm:$0xf]
  %v102 = vld [vmem:[%s3 + $0x8] sm:$0xf]
  %v103 = vld [vmem:[%s3 + $0xc] sm:$0xf]
  %v104 = vld [vmem:[%s4] sm:$0x1]
  %v106 = vperm.slane %v104, 0
  %v110 = vunpack.c.l.b16 %v98
  %v111 = vunpack.c.l.b16 %v99
  %v112 = vpack.c.b16 %v111, %v110
  %v117 = vunpack.c.l.b16 %v100
  %v118 = vunpack.c.l.b16 %v101
  %v119 = vunpack.c.l.b16 %v102
  %v120 = vunpack.c.l.b16 %v103
  %v121 = vpack.c.b16 %v118, %v117
  %v122 = vpack.c.b16 %v120, %v119
  %vm125 = vcmask 261120
  %v127 = vsel %vm125, %v112, 0
  %129 = vmatpush.bf16.msra.mxu0 0
  %130 = vmatpush.bf16.msra.mxu0 0
  %131 = vmatpush.bf16.msra.mxu0 0
  %132 = vmatpush.bf16.msra.mxu0 0
  %133 = vmatpush.bf16.msra.mxu0 0
  %134 = vmatpush.bf16.msra.mxu0 0
  %135 = vmatpush.bf16.msra.mxu0 %v122
  %136 = vmatpush.bf16.msra.mxu0 %v121
  %137 = vmatmul.bf16.gmra.mxu0 %v127
  %v138 = vpop.f32.mrf.mxu0
  %v139 = vadd.f32 %v106, %v138
  %v140 = vpop.f32.mrf.mxu0
  %v141 = vadd.f32 %v106, %v140
  %142 = vdwg.mxu0
  %v143 = vmul.f32 %v139, 0.5
  %v144 = vmul.f32 %v141, 0.5
  %v145 = vmul.f32 %v139, 0.044715
  %v146 = vmul.f32 %v141, 0.044715
  %v147 = vmul.f32 %v145, %v139
  %v148 = vmul.f32 %v146, %v141
  %v149 = vmul.f32 %v147, %v139
  %v150 = vmul.f32 %v148, %v141
  %v151 = vadd.f32 %v139, %v149
  %v152 = vadd.f32 %v141, %v150
  %v153 = vmul.f32 %v151, 0.7978846
  %v154 = vmul.f32 %v152, 0.7978846
  %v155 = vtanh.pop %v153
  %v156 = vtanh.pop %v154
  %v157 = vadd.f32 %v155, 1.0
  %v158 = vadd.f32 %v156, 1.0
  %v159 = vmul.f32 %v143, %v157
  %v160 = vmul.f32 %v144, %v158
  %v161 = vpack.c.bf16 %v159, %v159
  %v162 = vpack.c.bf16 %v160, %v160
  %163 = vst [vmem:[%s5] sm:$0xf] %v161
  %164 = vst [vmem:[%s5 + $0x4] sm:$0xf] %v162
  // Predicated region
  $region26: #{gpt_mlp_forward.19} parent=0 // pred_check
    _
  $region27: #{gpt_mlp_forward.19} parent=0 // pred_check_branch
    %166 = sbr.rel (0) target = $region29
  $region28: #{gpt_mlp_forward.19} parent=0 // pred_region
    _
  $region29: #{gpt_mlp_forward.19} parent=0 // pred_fallthru
    _
  // Predicated region
  $region30: #{gpt_mlp_forward.19} parent=0 // pred_check
    _
  $region31: #{gpt_mlp_forward.19} parent=0 // pred_check_branch
    %168 = sbr.rel (0) target = $region33
  $region32: #{gpt_mlp_forward.19} parent=0 // pred_region
    _
  $region33: #{gpt_mlp_forward.19} parent=0 // pred_fallthru
    _

// kernel: gpt_mlp_forward.20
$region0: #{gpt_mlp_forward.20}
  #allocation0 [shape = 'u32[]', space=smem, size = 0x4, offset = 0x4, fixed_abs, tag = 'smem constant byte address 0x4 - core index']
  #allocation1 [shape = 'u32[72,128]{1,0:T(1,128)}', space=vmem, size = 0x9000, scoped, tag = 'internal scratch']
  #allocation2 [shape = 'f32[16,32]{1,0:T(8,128)}', space=vmem, size = 0x2000, scoped, tag = 'scratch operand']
  %s0 = inlined_call_operand.vmem [shape: bf16[16,128], index: 0, kind: input, shape index: {}]
  %s1 = inlined_call_operand.vmem [shape: bf16[128,32], index: 1, kind: input, shape index: {}]
  %s2 = inlined_call_operand.vmem [shape: f32[1,32], index: 2, kind: input, shape index: {}]
  %s3 = inlined_call_operand.vmem [shape: bf16[16,32], index: 3, kind: input, shape index: {}]
  %s4 = inlined_call_operand.vmem [shape: bf16[16,32], index: 4, kind: output, shape index: {}]
  %s5 = sld [smem:[#allocation0]]
  $region34: #{gpt_mlp_forward.20} parent=0
    _
  %s7 = ssub.s32 1, %s5
  %s8 = scalar_select 0, %s7, %s5
  // Predicated region
  $region2: #{gpt_mlp_forward.20} parent=0 // pred_check
    _
  $region3: #{gpt_mlp_forward.20} parent=0 // pred_check_branch
    %10 = sbr.rel (0) target = $region5
  $region4: #{gpt_mlp_forward.20} parent=0 // pred_region
    _
  $region5: #{gpt_mlp_forward.20} parent=0 // pred_fallthru
    _
  // Predicated region
  $region6: #{gpt_mlp_forward.20} parent=0 // pred_check
    _
  $region7: #{gpt_mlp_forward.20} parent=0 // pred_check_branch
    %12 = sbr.rel (0) target = $region9
  $region8: #{gpt_mlp_forward.20} parent=0 // pred_region
    _
  $region9: #{gpt_mlp_forward.20} parent=0 // pred_fallthru
    _
  // Predicated region
  $region10: #{gpt_mlp_forward.20} parent=0 // pred_check
    _
  $region11: #{gpt_mlp_forward.20} parent=0 // pred_check_branch
    %14 = sbr.rel (0) target = $region13
  $region12: #{gpt_mlp_forward.20} parent=0 // pred_region
    _
  $region13: #{gpt_mlp_forward.20} parent=0 // pred_fallthru
    _
  // Predicated region
  $region14: #{gpt_mlp_forward.20} parent=0 // pred_check
    _
  $region15: #{gpt_mlp_forward.20} parent=0 // pred_check_branch
    %16 = sbr.rel (0) target = $region17
  $region16: #{gpt_mlp_forward.20} parent=0 // pred_region
    _
  $region17: #{gpt_mlp_forward.20} parent=0 // pred_fallthru
    _
  %p17 = scmp.eq.s32.totalorder 0, 0
  // Predicated region
  $region18: #{gpt_mlp_forward.20} parent=0 // pred_check
    %p18 = pneg %p17
  $region19: #{gpt_mlp_forward.20} parent=0 // pred_check_branch
    %20 = sbr.rel (%p18) target = $region21
  $region20: #{gpt_mlp_forward.20} parent=0 // pred_region
    %vm21 = vcmask 261120
    %22 = vst.msk [vmem:[#allocation2] sm:$0xff] %vm21, 0.0
    %23 = vst.msk [vmem:[#allocation2 + $0x8] sm:$0xff] %vm21, 0.0
  $region21: #{gpt_mlp_forward.20} parent=0 // pred_fallthru
    _
  %v24 = vld [vmem:[#allocation2] sm:$0xff]
  %v25 = vld [vmem:[#allocation2 + $0x8] sm:$0xff]
  %v26 = vld [vmem:[%s0] sm:$0xf]
  %v27 = vld [vmem:[%s0 + $0x4] sm:$0xf]
  %v28 = vld [vmem:[%s1] sm:$0xf]
  %v29 = vld [vmem:[%s1 + $0x4] sm:$0xf]
  %v30 = vld [vmem:[%s1 + $0x8] sm:$0xf]
  %v31 = vld [vmem:[%s1 + $0xc] sm:$0xf]
  %v32 = vld [vmem:[%s1 + $0x10] sm:$0xf]
  %v33 = vld [vmem:[%s1 + $0x14] sm:$0xf]
  %v34 = vld [vmem:[%s1 + $0x18] sm:$0xf]
  %v35 = vld [vmem:[%s1 + $0x1c] sm:$0xf]
  %v36 = vld [vmem:[%s1 + $0x20] sm:$0xf]
  %v37 = vld [vmem:[%s1 + $0x24] sm:$0xf]
  %v38 = vld [vmem:[%s1 + $0x28] sm:$0xf]
  %v39 = vld [vmem:[%s1 + $0x2c] sm:$0xf]
  %v40 = vld [vmem:[%s1 + $0x30] sm:$0xf]
  %v41 = vld [vmem:[%s1 + $0x34] sm:$0xf]
  %v42 = vld [vmem:[%s1 + $0x38] sm:$0xf]
  %v43 = vld [vmem:[%s1 + $0x3c] sm:$0xf]
  %v46 = vunpack.c.l.b16 %v26
  %v47 = vunpack.c.l.b16 %v27
  %v48 = vpack.c.b16 %v47, %v46
  %v66 = vunpack.c.l.b16 %v28
  %v67 = vunpack.c.l.b16 %v29
  %v68 = vunpack.c.l.b16 %v30
  %v69 = vunpack.c.l.b16 %v31
  %v70 = vunpack.c.l.b16 %v32
  %v71 = vunpack.c.l.b16 %v33
  %v72 = vunpack.c.l.b16 %v34
  %v73 = vunpack.c.l.b16 %v35
  %v74 = vunpack.c.l.b16 %v36
  %v75 = vunpack.c.l.b16 %v37
  %v76 = vunpack.c.l.b16 %v38
  %v77 = vunpack.c.l.b16 %v39
  %v78 = vunpack.c.l.b16 %v40
  %v79 = vunpack.c.l.b16 %v41
  %v80 = vunpack.c.l.b16 %v42
  %v81 = vunpack.c.l.b16 %v43
  %v82 = vpack.c.b16 %v67, %v66
  %v83 = vpack.c.b16 %v69, %v68
  %v84 = vpack.c.b16 %v71, %v70
  %v85 = vpack.c.b16 %v73, %v72
  %v86 = vpack.c.b16 %v75, %v74
  %v87 = vpack.c.b16 %v77, %v76
  %v88 = vpack.c.b16 %v79, %v78
  %v89 = vpack.c.b16 %v81, %v80
  %98 = vmatpush.bf16.msra.mxu0 %v89
  %99 = vmatpush.bf16.msra.mxu0 %v88
  %100 = vmatpush.bf16.msra.mxu0 %v87
  %101 = vmatpush.bf16.msra.mxu0 %v86
  %102 = vmatpush.bf16.msra.mxu0 %v85
  %103 = vmatpush.bf16.msra.mxu0 %v84
  %104 = vmatpush.bf16.msra.mxu0 %v83
  %105 = vmatpush.bf16.msra.mxu0 %v82
  %106 = vmatmul.bf16.gmra.mxu0 %v48
  %v107 = vpop.f32.mrf.mxu0
  %v108 = vadd.f32 0.0, %v107
  %v109 = vpop.f32.mrf.mxu0
  %v110 = vadd.f32 0.0, %v109
  %111 = vdwg.mxu0
  %v112 = vadd.f32 %v24, %v108
  %v113 = vadd.f32 %v25, %v110
  %vm114 = vcmask 261120
  %115 = vst.msk [vmem:[#allocation2] sm:$0xff] %vm114, %v112
  %116 = vst.msk [vmem:[#allocation2 + $0x8] sm:$0xff] %vm114, %v113
  // Predicated region
  $region22: #{gpt_mlp_forward.20} parent=0 // pred_check
    %p117 = pneg %p17
  $region23: #{gpt_mlp_forward.20} parent=0 // pred_check_branch
    %119 = sbr.rel (%p117) target = $region25
  $region24: #{gpt_mlp_forward.20} parent=0 // pred_region
    %v120 = vld [vmem:[#allocation2] sm:$0xff]
    %v121 = vld [vmem:[#allocation2 + $0x8] sm:$0xff]
    %v122 = vld [vmem:[%s2] sm:$0x1]
    %v124 = vperm.slane %v122, 0
    %v126 = vadd.f32 %v120, %v124
    %v127 = vadd.f32 %v121, %v124
    %v128 = vld [vmem:[%s3] sm:$0xf]
    %v129 = vld [vmem:[%s3 + $0x4] sm:$0xf]
    %v130 = vunpack.c.l.bf16 %v128
    %v131 = vunpack.c.l.bf16 %v129
    %v132 = vadd.f32 %v126, %v130
    %v133 = vadd.f32 %v127, %v131
    %v134 = vpack.c.bf16 %v132, %v132
    %v135 = vpack.c.bf16 %v133, %v133
    %vm136 = vcmask 257024
    %137 = vst.msk [vmem:[%s4] sm:$0xf] %vm136, %v134
    %138 = vst.msk [vmem:[%s4 + $0x4] sm:$0xf] %vm136, %v135
  $region25: #{gpt_mlp_forward.20} parent=0 // pred_fallthru
    _
  // Predicated region
  $region26: #{gpt_mlp_forward.20} parent=0 // pred_check
    _
  $region27: #{gpt_mlp_forward.20} parent=0 // pred_check_branch
    %140 = sbr.rel (0) target = $region29
  $region28: #{gpt_mlp_forward.20} parent=0 // pred_region
    _
  $region29: #{gpt_mlp_forward.20} parent=0 // pred_fallthru
    _
  // Predicated region
  $region30: #{gpt_mlp_forward.20} parent=0 // pred_check
    _
  $region31: #{gpt_mlp_forward.20} parent=0 // pred_check_branch
    %142 = sbr.rel (0) target = $region33
  $region32: #{gpt_mlp_forward.20} parent=0 // pred_region
    _
  $region33: #{gpt_mlp_forward.20} parent=0 // pred_fallthru
    _

// kernel: gpt_mlp_forward.26
$region0: #{gpt_mlp_forward.26}
  #allocation0 [shape = 'u32[]', space=smem, size = 0x4, offset = 0x4, fixed_abs, tag = 'smem constant byte address 0x4 - core index']
  #allocation1 [shape = 'u32[72,128]{1,0:T(1,128)}', space=vmem, size = 0x9000, scoped, tag = 'internal scratch']
  #allocation2 [shape = 'bf16[16,32]{1,0:T(8,128)(2,1)}', space=vmem, size = 0x1000, scoped, tag = 'scratch operand']
  %s0 = inlined_call_operand.vmem [shape: bf16[16,32], index: 0, kind: input, shape index: {}]
  %s1 = inlined_call_operand.vmem [shape: f32[1,32], index: 1, kind: input, shape index: {}]
  %s2 = inlined_call_operand.vmem [shape: f32[1,32], index: 2, kind: input, shape index: {}]
  %s3 = inlined_call_operand.vmem [shape: bf16[32,20], index: 3, kind: input, shape index: {}]
  %s4 = inlined_call_operand.vmem [shape: f32[1,20], index: 4, kind: input, shape index: {}]
  %s5 = inlined_call_operand.vmem [shape: bf16[16,20], index: 5, kind: output, shape index: {}]
  %s6 = sld [smem:[#allocation0]]
  $region34: #{gpt_mlp_forward.26} parent=0
    _
  %s8 = ssub.s32 1, %s6
  %s9 = scalar_select 0, %s8, %s6
  // Predicated region
  $region2: #{gpt_mlp_forward.26} parent=0 // pred_check
    _
  $region3: #{gpt_mlp_forward.26} parent=0 // pred_check_branch
    %11 = sbr.rel (0) target = $region5
  $region4: #{gpt_mlp_forward.26} parent=0 // pred_region
    _
  $region5: #{gpt_mlp_forward.26} parent=0 // pred_fallthru
    _
  // Predicated region
  $region6: #{gpt_mlp_forward.26} parent=0 // pred_check
    _
  $region7: #{gpt_mlp_forward.26} parent=0 // pred_check_branch
    %13 = sbr.rel (0) target = $region9
  $region8: #{gpt_mlp_forward.26} parent=0 // pred_region
    _
  $region9: #{gpt_mlp_forward.26} parent=0 // pred_fallthru
    _
  // Predicated region
  $region10: #{gpt_mlp_forward.26} parent=0 // pred_check
    _
  $region11: #{gpt_mlp_forward.26} parent=0 // pred_check_branch
    %15 = sbr.rel (0) target = $region13
  $region12: #{gpt_mlp_forward.26} parent=0 // pred_region
    _
  $region13: #{gpt_mlp_forward.26} parent=0 // pred_fallthru
    _
  // Predicated region
  $region14: #{gpt_mlp_forward.26} parent=0 // pred_check
    _
  $region15: #{gpt_mlp_forward.26} parent=0 // pred_check_branch
    %17 = sbr.rel (0) target = $region17
  $region16: #{gpt_mlp_forward.26} parent=0 // pred_region
    _
  $region17: #{gpt_mlp_forward.26} parent=0 // pred_fallthru
    _
  // Predicated region
  $region18: #{gpt_mlp_forward.26} parent=0 // pred_check
    _
  $region19: #{gpt_mlp_forward.26} parent=0 // pred_check_branch
    %19 = sbr.rel (0) target = $region21
  $region20: #{gpt_mlp_forward.26} parent=0 // pred_region
    _
  $region21: #{gpt_mlp_forward.26} parent=0 // pred_fallthru
    _
  %p21 = scmp.eq.s32.totalorder 0, 0
  // Predicated region
  $region22: #{gpt_mlp_forward.26} parent=0 // pred_check
    %p22 = pneg %p21
  $region23: #{gpt_mlp_forward.26} parent=0 // pred_check_branch
    %24 = sbr.rel (%p22) target = $region25
  $region24: #{gpt_mlp_forward.26} parent=0 // pred_region
    %v25 = vld [vmem:[%s0] sm:$0xf]
    %v26 = vld [vmem:[%s0 + $0x4] sm:$0xf]
    %v27 = vunpack.c.l.bf16 %v25
    %v28 = vunpack.c.l.bf16 %v26
    %vm29 = vcmask 261120
    %v30 = vsel %vm29, %v27, 0.0
    %31 = vadd.xlane.f32.xlu0 %v30
    %v32 = vpop.xlane.xlu0 %31
    %v33 = vsel %vm29, %v28, 0.0
    %34 = vadd.xlane.f32.xlu0 %v33
    %v35 = vpop.xlane.xlu0 %34
    %v36 = vrcp.pop 32.0
    %v37 = vmul.f32 32.0, %v36
    %v38 = vsub.f32 1.0, %v37
    %v39 = vmul.f32 %v36, %v38
    %v40 = vadd.f32 %v36, %v39
    %vm41 = vweird.f32 %v36
    %v42 = vsel %vm41, %v36, %v40
    %v43 = vmul.f32 %v32, %v42
    %v44 = vmul.f32 %v35, %v42
    %v45 = vsub.f32 %v27, %v43
    %v46 = vsub.f32 %v28, %v44
    %v47 = vmul.f32 %v45, %v45
    %v48 = vmul.f32 %v46, %v46
    %v49 = vsel %vm29, %v47, 0.0
    %50 = vadd.xlane.f32.xlu0 %v49
    %v51 = vpop.xlane.xlu0 %50
    %v52 = vsel %vm29, %v48, 0.0
    %53 = vadd.xlane.f32.xlu0 %v52
    %v54 = vpop.xlane.xlu0 %53
    %v55 = vmul.f32 %v51, %v42
    %v56 = vmul.f32 %v54, %v42
    %v57 = vadd.f32 %v55, 1e-05
    %v58 = vadd.f32 %v56, 1e-05
    %v59 = vrsqrt.pop %v57
    %v60 = vmul.f32 %v59, %v57
    %v61 = vmul.f32 %v60, %v59
    %v62 = vmul.f32 0.5, %v61
    %v63 = vsub.f32 1.5, %v62
    %v64 = vmul.f32 %v59, %v63
    %vm65 = vweird.f32 %v57
    %vm66 = vweird.f32 %v59
    %vm67 = vmor %vm65, %vm66
    %v68 = vsel %vm67, %v59, %v64
    %v69 = vrsqrt.pop %v58
    %v70 = vmul.f32 %v69, %v58
    %v71 = vmul.f32 %v70, %v69
    %v72 = vmul.f32 0.5, %v71
    %v73 = vsub.f32 1.5, %v72
    %v74 = vmul.f32 %v69, %v73
    %vm75 = vweird.f32 %v58
    %vm76 = vweird.f32 %v69
    %vm77 = vmor %vm75, %vm76
    %v78 = vsel %vm77, %v69, %v74
    %v79 = vmul.f32 %v45, %v68
    %v80 = vmul.f32 %v46, %v78
    %v81 = vld [vmem:[%s1] sm:$0x1]
    %v83 = vperm.slane %v81, 0
    %v85 = vmul.f32 %v79, %v83
    %v86 = vmul.f32 %v80, %v83
    %v87 = vld [vmem:[%s2] sm:$0x1]
    %v89 = vperm.slane %v87, 0
    %v91 = vadd.f32 %v85, %v89
    %v92 = vadd.f32 %v86, %v89
    %v93 = vpack.c.bf16 %v91, %v91
    %v94 = vpack.c.bf16 %v92, %v92
    %vm95 = vcmask 257024
    %96 = vst.msk [vmem:[#allocation2] sm:$0xf] %vm95, %v93
    %97 = vst.msk [vmem:[#allocation2 + $0x4] sm:$0xf] %vm95, %v94
  $region25: #{gpt_mlp_forward.26} parent=0 // pred_fallthru
    _
  %v98 = vld [vmem:[#allocation2] sm:$0xf]
  %v99 = vld [vmem:[#allocation2 + $0x4] sm:$0xf]
  %v100 = vld [vmem:[%s3] sm:$0xf]
  %v101 = vld [vmem:[%s3 + $0x4] sm:$0xf]
  %v102 = vld [vmem:[%s3 + $0x8] sm:$0xf]
  %v103 = vld [vmem:[%s3 + $0xc] sm:$0xf]
  %v104 = vld [vmem:[%s4] sm:$0x1]
  %v106 = vperm.slane %v104, 0
  %v110 = vunpack.c.l.b16 %v98
  %v111 = vunpack.c.l.b16 %v99
  %v112 = vpack.c.b16 %v111, %v110
  %v117 = vunpack.c.l.b16 %v100
  %v118 = vunpack.c.l.b16 %v101
  %v119 = vunpack.c.l.b16 %v102
  %v120 = vunpack.c.l.b16 %v103
  %v121 = vpack.c.b16 %v118, %v117
  %v122 = vpack.c.b16 %v120, %v119
  %vm125 = vcmask 261120
  %v127 = vsel %vm125, %v112, 0
  %129 = vmatpush.bf16.msra.mxu0 0
  %130 = vmatpush.bf16.msra.mxu0 0
  %131 = vmatpush.bf16.msra.mxu0 0
  %132 = vmatpush.bf16.msra.mxu0 0
  %133 = vmatpush.bf16.msra.mxu0 0
  %134 = vmatpush.bf16.msra.mxu0 0
  %135 = vmatpush.bf16.msra.mxu0 %v122
  %136 = vmatpush.bf16.msra.mxu0 %v121
  %137 = vmatmul.bf16.gmra.mxu0 %v127
  %v138 = vpop.f32.mrf.mxu0
  %v139 = vadd.f32 %v106, %v138
  %v140 = vpop.f32.mrf.mxu0
  %v141 = vadd.f32 %v106, %v140
  %142 = vdwg.mxu0
  %v143 = vmax.f32 %v139, 0.0
  %v144 = vmax.f32 %v141, 0.0
  %v145 = vpack.c.bf16 %v143, %v143
  %v146 = vpack.c.bf16 %v144, %v144
  %vm147 = vcmask 158720
  %148 = vst.msk [vmem:[%s5] sm:$0xf] %vm147, %v145
  %149 = vst.msk [vmem:[%s5 + $0x4] sm:$0xf] %vm147, %v146
  // Predicated region
  $region26: #{gpt_mlp_forward.26} parent=0 // pred_check
    _
  $region27: #{gpt_mlp_forward.26} parent=0 // pred_check_branch
    %151 = sbr.rel (0) target = $region29
  $region28: #{gpt_mlp_forward.26} parent=0 // pred_region
    _
  $region29: #{gpt_mlp_forward.26} parent=0 // pred_fallthru
    _
  // Predicated region
  $region30: #{gpt_mlp_forward.26} parent=0 // pred_check
    _
  $region31: #{gpt_mlp_forward.26} parent=0 // pred_check_branch
    %153 = sbr.rel (0) target = $region33
  $region32: #{gpt_mlp_forward.26} parent=0 // pred_region
    _
  $region33: #{gpt_mlp_forward.26} parent=0 // pred_fallthru
    _

// kernel: gpt_mlp_forward.27
$region0: #{gpt_mlp_forward.27}
  #allocation0 [shape = 'u32[]', space=smem, size = 0x4, offset = 0x4, fixed_abs, tag = 'smem constant byte address 0x4 - core index']
  #allocation1 [shape = 'u32[72,128]{1,0:T(1,128)}', space=vmem, size = 0x9000, scoped, tag = 'internal scratch']
  #allocation2 [shape = 'f32[16,8]{1,0:T(8,128)}', space=vmem, size = 0x2000, scoped, tag = 'scratch operand']
  %s0 = inlined_call_operand.vmem [shape: bf16[16,20], index: 0, kind: input, shape index: {}]
  %s1 = inlined_call_operand.vmem [shape: bf16[20,8], index: 1, kind: input, shape index: {}]
  %s2 = inlined_call_operand.vmem [shape: f32[1,8], index: 2, kind: input, shape index: {}]
  %s3 = inlined_call_operand.vmem [shape: bf16[16,8], index: 3, kind: output, shape index: {}]
  %s4 = sld [smem:[#allocation0]]
  $region30: #{gpt_mlp_forward.27} parent=0
    _
  %s6 = ssub.s32 1, %s4
  %s7 = scalar_select 0, %s6, %s4
  // Predicated region
  $region2: #{gpt_mlp_forward.27} parent=0 // pred_check
    _
  $region3: #{gpt_mlp_forward.27} parent=0 // pred_check_branch
    %9 = sbr.rel (0) target = $region5
  $region4: #{gpt_mlp_forward.27} parent=0 // pred_region
    _
  $region5: #{gpt_mlp_forward.27} parent=0 // pred_fallthru
    _
  // Predicated region
  $region6: #{gpt_mlp_forward.27} parent=0 // pred_check
    _
  $region7: #{gpt_mlp_forward.27} parent=0 // pred_check_branch
    %11 = sbr.rel (0) target = $region9
  $region8: #{gpt_mlp_forward.27} parent=0 // pred_region
    _
  $region9: #{gpt_mlp_forward.27} parent=0 // pred_fallthru
    _
  // Predicated region
  $region10: #{gpt_mlp_forward.27} parent=0 // pred_check
    _
  $region11: #{gpt_mlp_forward.27} parent=0 // pred_check_branch
    %13 = sbr.rel (0) target = $region13
  $region12: #{gpt_mlp_forward.27} parent=0 // pred_region
    _
  $region13: #{gpt_mlp_forward.27} parent=0 // pred_fallthru
    _
  %p15 = scmp.eq.s32.totalorder 0, 0
  // Predicated region
  $region14: #{gpt_mlp_forward.27} parent=0 // pred_check
    %p16 = pneg %p15
  $region15: #{gpt_mlp_forward.27} parent=0 // pred_check_branch
    %18 = sbr.rel (%p16) target = $region17
  $region16: #{gpt_mlp_forward.27} parent=0 // pred_region
    %vm19 = vcmask 64512
    %20 = vst.msk [vmem:[#allocation2] sm:$0xff] %vm19, 0.0
    %21 = vst.msk [vmem:[#allocation2 + $0x8] sm:$0xff] %vm19, 0.0
  $region17: #{gpt_mlp_forward.27} parent=0 // pred_fallthru
    _
  %v22 = vld [vmem:[#allocation2] sm:$0xff]
  %v23 = vld [vmem:[#allocation2 + $0x8] sm:$0xff]
  %v24 = vld [vmem:[%s0] sm:$0xf]
  %v25 = vld [vmem:[%s0 + $0x4] sm:$0xf]
  %v26 = vld [vmem:[%s1] sm:$0xf]
  %v27 = vld [vmem:[%s1 + $0x4] sm:$0xf]
  %v28 = vld [vmem:[%s1 + $0x8] sm:$0x3]
  %v31 = vunpack.c.l.b16 %v24
  %v32 = vunpack.c.l.b16 %v25
  %v33 = vpack.c.b16 %v32, %v31
  %v37 = vunpack.c.l.b16 %v26
  %v38 = vunpack.c.l.b16 %v27
  %v39 = vunpack.c.l.b16 %v28
  %v40 = vpack.c.b16 %v38, %v37
  %v41 = vpack.c.b16 %v39, %v39
  %vm43 = vcmask 162816
  %v45 = vsel %vm43, %v33, 0
  %vm47 = vcmask 1041408
  %v49 = vsel %vm47, %v41, 0
  %51 = vmatpush.bf16.msra.mxu0 0
  %52 = vmatpush.bf16.msra.mxu0 0
  %53 = vmatpush.bf16.msra.mxu0 0
  %54 = vmatpush.bf16.msra.mxu0 0
  %55 = vmatpush.bf16.msra.mxu0 0
  %56 = vmatpush.bf16.msra.mxu0 0
  %57 = vmatpush.bf16.msra.mxu0 %v49
  %58 = vmatpush.bf16.msra.mxu0 %v40
  %59 = vmatmul.bf16.gmra.mxu0 %v45
  %v60 = vpop.f32.mrf.mxu0
  %v61 = vadd.f32 0.0, %v60
  %v62 = vpop.f32.mrf.mxu0
  %v63 = vadd.f32 0.0, %v62
  %64 = vdwg.mxu0
  %v65 = vadd.f32 %v22, %v61
  %v66 = vadd.f32 %v23, %v63
  %vm67 = vcmask 64512
  %68 = vst.msk [vmem:[#allocation2] sm:$0xff] %vm67, %v65
  %69 = vst.msk [vmem:[#allocation2 + $0x8] sm:$0xff] %vm67, %v66
  // Predicated region
  $region18: #{gpt_mlp_forward.27} parent=0 // pred_check
    %p70 = pneg %p15
  $region19: #{gpt_mlp_forward.27} parent=0 // pred_check_branch
    %72 = sbr.rel (%p70) target = $region21
  $region20: #{gpt_mlp_forward.27} parent=0 // pred_region
    %v73 = vld [vmem:[#allocation2] sm:$0xff]
    %v74 = vld [vmem:[#allocation2 + $0x8] sm:$0xff]
    %v75 = vld [vmem:[%s2] sm:$0x1]
    %v77 = vperm.slane %v75, 0
    %v79 = vadd.f32 %v73, %v77
    %v80 = vadd.f32 %v74, %v77
    %v81 = vpack.c.bf16 %v79, %v79
    %v82 = vpack.c.bf16 %v80, %v80
    %vm83 = vcmask 60416
    %84 = vst.msk [vmem:[%s3] sm:$0xf] %vm83, %v81
    %85 = vst.msk [vmem:[%s3 + $0x4] sm:$0xf] %vm83, %v82
  $region21: #{gpt_mlp_forward.27} parent=0 // pred_fallthru
    _
  // Predicated region
  $region22: #{gpt_mlp_forward.27} parent=0 // pred_check
    _
  $region23: #{gpt_mlp_forward.27} parent=0 // pred_check_branch
    %87 = sbr.rel (0) target = $region25
  $region24: #{gpt_mlp_forward.27} parent=0 // pred_region
    _
  $region25: #{gpt_mlp_forward.27} parent=0 // pred_fallthru
    _
  // Predicated region
  $region26: #{gpt_mlp_forward.27} parent=0 // pred_check
    _
  $region27: #{gpt_mlp_forward.27} parent=0 // pred_check_branch
    %89 = sbr.rel (0) target = $region29
  $region28: #{gpt_mlp_forward.27} parent=0 // pred_region
    _
  $region29: #{gpt_mlp_forward.27} parent=0 // pred_fallthru
    _

</llo_original>
